<compile_context>
chip_gen: v5e
topology: v5e:2x2
jax: 0.10.0
libtpu: 0.0.40
codegen_flags: <defaults>
</compile_context>

<pallas_src>
import functools

import jax
import jax.numpy as jnp
from jax.experimental import pallas as pl
from jax.experimental.pallas import tpu as pltpu

LANE = 128


def _round_up(x, m):
    return (x + m - 1) // m * m


# ---------------------------------------------------------------------------
# "Chain" activation format for the stride-1 convs
# ---------------------------------------------------------------------------
def _chain_geom(h, w):
    wp = w + 2                      # wide row width (includes 2 junk columns)
    mw = h * wp                     # wide row count
    lead = _round_up(wp + 1, 8)     # leading zero rows
    total = _round_up(lead + mw + wp + 2, 8)
    return wp, mw, lead, total


def to_chain(y_nhwc):
    """(N, H, W, Cp) -> (N, L, Cp) chain layout (junk cols / lead / tail = 0)."""
    n, h, w, c = y_nhwc.shape
    wp, mw, lead, total = _chain_geom(h, w)
    y = jnp.pad(y_nhwc, ((0, 0), (0, 0), (0, wp - w), (0, 0)))
    y = y.reshape(n, mw, c)
    return jnp.pad(y, ((0, 0), (lead, total - lead - mw), (0, 0)))


def from_chain(c, h, w):
    """(N, L, Cp) chain layout -> (N, H, W, Cp)."""
    n, _, cp = c.shape
    wp, mw, lead, _ = _chain_geom(h, w)
    return c[:, lead:lead + mw, :].reshape(n, h, wp, cp)[:, :, :w, :]


# ---------------------------------------------------------------------------
# Pallas kernels
# ---------------------------------------------------------------------------
def _make_chain_conv_kernel(wp, mw, base, lead, has_add, has_res):
    """3x3 stride-1 conv over the chain layout for one image.

    refs: x[, x_add], w(9,Cin,Cout), b(1,Cout), mask(Mw,1)[, res], out
    """
    def kernel(*refs):
        refs = list(refs)
        x_ref = refs.pop(0)
        x2_ref = refs.pop(0) if has_add else None
        w_ref = refs.pop(0)
        b_ref = refs.pop(0)
        m_ref = refs.pop(0)
        r_ref = refs.pop(0) if has_res else None
        o_ref = refs.pop(0)

        acc = None
        for kh in range(3):
            for kw in range(3):
                s = base + kh * wp + kw
                slab = x_ref[s:s + mw, :]               # contiguous tap slab
                if has_add:
                    slab = slab + x2_ref[s:s + mw, :]   # conv(x + add), fused
                part = jnp.dot(slab, w_ref[kh * 3 + kw],
                               preferred_element_type=jnp.float32)
                acc = part if acc is None else acc + part

        y = jnp.maximum(acc + b_ref[...], 0.0) * m_ref[...]   # bias+ReLU+mask
        if has_res:
            y = y + r_ref[lead:lead + mw, :].astype(jnp.float32)

        o_ref[...] = jnp.zeros_like(o_ref)              # lead/tail rows = 0
        o_ref[lead:lead + mw, :] = y.astype(o_ref.dtype)
    return kernel


def _im2col_conv_kernel(p_ref, w_ref, b_ref, o_ref):
    """relu(patches @ w + b) for one (tm, cout_p) tile (stride-2 convs)."""
    acc = jnp.dot(p_ref[...], w_ref[...], preferred_element_type=jnp.float32)
    o_ref[...] = jnp.maximum(acc + b_ref[...], 0.0).astype(o_ref.dtype)


# ---------------------------------------------------------------------------
# Conv + folded-BN + ReLU wrappers
# ---------------------------------------------------------------------------
def conv_bn_relu_s1(x_chain, h, w, w_hwio, bias,
                    add_chain=None, residual_chain=None):
    """3x3 / stride-1 / pad-1 conv, chain layout in -> chain layout out.

    add_chain:       fused input-side add   (computes conv(x + add))
    residual_chain:  fused output-side add  (computes relu(conv) + residual)
    """
    n, total, cin_p = x_chain.shape
    wp, mw, lead, total_expect = _chain_geom(h, w)
    assert total == total_expect
    base = lead - wp - 1

    cin = w_hwio.shape[2]
    cout = w_hwio.shape[3]
    cout_p = _round_up(cout, LANE)
    assert cin <= cin_p

    wk = jnp.pad(w_hwio, ((0, 0), (0, 0), (0, cin_p - cin), (0, cout_p - cout)))
    wk = wk.reshape(9, cin_p, cout_p).astype(jnp.bfloat16)
    bk = jnp.pad(bias, (0, cout_p - cout)).reshape(1, cout_p).astype(jnp.float32)
    # zero the 2 junk columns of every wide row (keeps the chain invariant)
    col_mask = (jnp.arange(mw) % wp < w).astype(jnp.float32).reshape(mw, 1)

    has_add = add_chain is not None
    has_res = residual_chain is not None

    in_specs = [pl.BlockSpec((None, total, cin_p), lambda i: (i, 0, 0))]
    args = [x_chain]
    if has_add:
        in_specs.append(pl.BlockSpec((None, total, cin_p), lambda i: (i, 0, 0)))
        args.append(add_chain)
    in_specs += [
        pl.BlockSpec((9, cin_p, cout_p), lambda i: (0, 0, 0)),  # resident W
        pl.BlockSpec((1, cout_p), lambda i: (0, 0)),            # resident bias
        pl.BlockSpec((mw, 1), lambda i: (0, 0)),                # resident mask
    ]
    args += [wk, bk, col_mask]
    if has_res:
        in_specs.append(pl.BlockSpec((None, total, cout_p), lambda i: (i, 0, 0)))
        args.append(residual_chain)

    flops = 2 * n * mw * (9 * cin_p) * cout_p
    bytes_accessed = (n * total * cin_p * 2 * (2 if has_add else 1)
                      + int(wk.size) * 2 + int(bk.size) * 4
                      + int(col_mask.size) * 4
                      + n * total * cout_p * 2 * (2 if has_res else 1))

    return pl.pallas_call(
        _make_chain_conv_kernel(wp, mw, base, lead, has_add, has_res),
        out_shape=jax.ShapeDtypeStruct((n, total, cout_p), jnp.bfloat16),
        grid=(n,),
        in_specs=in_specs,
        out_specs=pl.BlockSpec((None, total, cout_p), lambda i: (i, 0, 0)),
        compiler_params=pltpu.CompilerParams(dimension_semantics=("parallel",)),
        cost_estimate=pl.CostEstimate(flops=flops, transcendentals=0,
                                      bytes_accessed=bytes_accessed),
    )(*args)


def conv_bn_relu_s2(x_nhwc, w_hwio, bias):
    """3x3 / stride-2 / pad-1 conv + folded BN + ReLU (the small input layers).

    NHWC in -> padded-channel NHWC (bf16) out.
    """
    n, h, w, cin = x_nhwc.shape
    cout = w_hwio.shape[3]
    cout_p = _round_up(cout, LANE)
    ho = (h + 2 - 3) // 2 + 1
    wo = (w + 2 - 3) // 2 + 1

    xp = jnp.pad(x_nhwc, ((0, 0), (1, 1), (1, 1), (0, 0)))
    cols = [xp[:, kh:kh + 2 * ho:2, kw:kw + 2 * wo:2, :]
            for kh in range(3) for kw in range(3)]
    k = 9 * cin
    m = n * ho * wo
    patches = jnp.concatenate(cols, axis=-1).reshape(m, k).astype(jnp.bfloat16)

    wk = jnp.pad(w_hwio.reshape(k, cout),
                 ((0, 0), (0, cout_p - cout))).astype(jnp.bfloat16)
    bk = jnp.pad(bias, (0, cout_p - cout)).reshape(1, cout_p).astype(jnp.float32)

    m8 = _round_up(m, 8)
    tm = min(512, m8)
    if tm == m8 and m8 % 16 == 0 and m8 >= 16:
        tm = m8 // 2            # >=2 grid steps so both TCs are used on v7x
    m_p = _round_up(m, tm)
    patches = jnp.pad(patches, ((0, m_p - m), (0, 0)))

    flops = 2 * m_p * k * cout_p
    bytes_accessed = m_p * k * 2 + k * cout_p * 2 + cout_p * 4 + m_p * cout_p * 2

    out = pl.pallas_call(
        _im2col_conv_kernel,
        out_shape=jax.ShapeDtypeStruct((m_p, cout_p), jnp.bfloat16),
        grid=(m_p // tm,),
        in_specs=[
            pl.BlockSpec((tm, k), lambda i: (i, 0)),
            pl.BlockSpec((k, cout_p), lambda i: (0, 0)),    # resident weights
            pl.BlockSpec((1, cout_p), lambda i: (0, 0)),    # resident bias
        ],
        out_specs=pl.BlockSpec((tm, cout_p), lambda i: (i, 0)),
        compiler_params=pltpu.CompilerParams(dimension_semantics=("parallel",)),
        cost_estimate=pl.CostEstimate(flops=flops, transcendentals=0,
                                      bytes_accessed=bytes_accessed),
    )(patches, wk, bk)
    return out[:m].reshape(n, ho, wo, cout_p), ho, wo


# ---------------------------------------------------------------------------
# Parameter construction (deterministic, synthetic, inference-mode BN folded)
# ---------------------------------------------------------------------------
def make_convblock_params(key, cin, cout, eps=1e-5):
    kw_, kb_, kg_, kbeta_, km_, kv_ = jax.random.split(key, 6)
    w = jax.random.normal(kw_, (3, 3, cin, cout), jnp.float32) * 0.1
    conv_b = jax.random.normal(kb_, (cout,), jnp.float32) * 0.1
    gamma = 1.0 + 0.1 * jax.random.normal(kg_, (cout,), jnp.float32)
    beta = 0.1 * jax.random.normal(kbeta_, (cout,), jnp.float32)
    r_mean = 0.1 * jax.random.normal(km_, (cout,), jnp.float32)
    r_var = jnp.abs(jax.random.normal(kv_, (cout,), jnp.float32)) + 0.5
    inv = gamma / jnp.sqrt(r_var + eps)
    w_folded = w * inv                               # fold BN scale into W
    bias_folded = (conv_b - r_mean) * inv + beta     # fold conv bias + BN shift
    return (w_folded, bias_folded)


def make_encode_block_params(key, in_channels, out_channels):
    ks = jax.random.split(key, 5)
    return {
        "conv1_1": make_convblock_params(ks[0], in_channels, out_channels),
        # conv1_2 exists in the module but is unused in forward (as in PyTorch).
        "conv1_2": make_convblock_params(ks[1], out_channels, out_channels),
        "conv2_1": make_convblock_params(ks[2], out_channels, out_channels),
        "conv2_2": make_convblock_params(ks[3], out_channels, out_channels),
        "shortcut": make_convblock_params(ks[4], in_channels, out_channels),
    }


# ---------------------------------------------------------------------------
# EncodeBlock forward (Pallas)
# ---------------------------------------------------------------------------
def encode_block_forward(x_nchw, params):
    cout = params["conv2_2"][0].shape[-1]
    x = jnp.transpose(x_nchw, (0, 2, 3, 1)).astype(jnp.bfloat16)  # NCHW->NHWC

    out1a, ho, wo = conv_bn_relu_s2(x, *params["conv1_1"])        # conv1_1(x)
    out1_c = conv_bn_relu_s1(to_chain(out1a), ho, wo, *params["conv2_1"])
    res, _, _ = conv_bn_relu_s2(x, *params["shortcut"])           # shortcut(x)
    # conv2_1(out1 + residue): the add is fused into the conv's input taps.
    out2a_c = conv_bn_relu_s1(out1_c, ho, wo, *params["conv2_1"],
                              add_chain=to_chain(res))
    # conv2_2(out2) + out1: residual fused into the conv epilogue.
    out_c = conv_bn_relu_s1(out2a_c, ho, wo, *params["conv2_2"],
                            residual_chain=out1_c)

    y = from_chain(out_c, ho, wo)[..., :cout]
    return jnp.transpose(y, (0, 3, 1, 2)).astype(jnp.float32)     # NHWC->NCHW


# ---------------------------------------------------------------------------
# Pure-JAX reference (same folded params, same bf16 activation storage)
# ---------------------------------------------------------------------------
def _conv_bn_relu_ref(x, w, b, stride):
    y = jax.lax.conv_general_dilated(
        x.astype(jnp.bfloat16), w.astype(jnp.bfloat16),
        window_strides=(stride, stride), padding=((1, 1), (1, 1)),
        dimension_numbers=("NHWC", "HWIO", "NHWC"),
        preferred_element_type=jnp.float32,
    )
    y = jnp.maximum(y + b.reshape(1, 1, 1, -1), 0.0)
    return y.astype(jnp.bfloat16)


def encode_block_reference(x_nchw, params):
    x = jnp.transpose(x_nchw, (0, 2, 3, 1)).astype(jnp.bfloat16)
    out1a = _conv_bn_relu_ref(x, *params["conv1_1"], 2)
    out1 = _conv_bn_relu_ref(out1a, *params["conv2_1"], 1)
    res = _conv_bn_relu_ref(x, *params["shortcut"], 2)
    out2a = _conv_bn_relu_ref(out1 + res, *params["conv2_1"], 1)
    out2 = _conv_bn_relu_ref(out2a, *params["conv2_2"], 1)
    out = out2.astype(jnp.float32) + out1.astype(jnp.float32)
    return jnp.transpose(out, (0, 3, 1, 2))


# ---------------------------------------------------------------------------
if __name__ == "__main__":
    key = jax.random.PRNGKey(0)
    k_x, k_p = jax.random.split(key)

    in_channels, out_channels = 4, 8
    x = jax.random.normal(k_x, (2, in_channels, 16, 16), jnp.float32)
    params = make_encode_block_params(k_p, in_channels, out_channels)

    fwd = jax.jit(functools.partial(encode_block_forward, params=params))
    y = fwd(x)
    jax.block_until_ready(y)

    assert y.shape == (2, out_channels, 8, 8), y.shape

    y_ref = encode_block_reference(x, params)
    max_err = float(jnp.max(jnp.abs(y - y_ref)))
    assert max_err < 1e-1, max_err

    print("KERNEL_OK")
</pallas_src>

<mosaic_0001>
module attributes {stable_mosaic.version = 11 : i64} {
  func.func @_im2col_conv_kernel(%arg0: i32, %arg1: memref<64x36xbf16, #tpu.memory_space<vmem>>, %arg2: memref<36x128xbf16, #tpu.memory_space<vmem>>, %arg3: memref<1x128xf32, #tpu.memory_space<vmem>>, %arg4: memref<64x128xbf16, #tpu.memory_space<vmem>>) attributes {dimension_semantics = [#tpu.dimension_semantics<parallel>], iteration_bounds = array<i64: 2>, scalar_prefetch = 0 : i64, scratch_operands = 0 : i64, tpu.core_type = #tpu.core_type<tc>, window_params = [{transform_indices = @transform_0, window_bounds = array<i64: 64, 36>}, {pipeline_mode = #tpu.pipeline_mode<synchronous>, transform_indices = @transform_1, window_bounds = array<i64: 36, 128>}, {pipeline_mode = #tpu.pipeline_mode<synchronous>, transform_indices = @transform_2, window_bounds = array<i64: 1, 128>}, {transform_indices = @transform_3, window_bounds = array<i64: 64, 128>}]} {
    %c0 = arith.constant 0 : index
    %c0_0 = arith.constant 0 : index
    %0 = vector.load %arg1[%c0, %c0_0] : memref<64x36xbf16, #tpu.memory_space<vmem>>, vector<64x36xbf16>
    %c0_1 = arith.constant 0 : index
    %c0_2 = arith.constant 0 : index
    %1 = vector.load %arg2[%c0_1, %c0_2] : memref<36x128xbf16, #tpu.memory_space<vmem>>, vector<36x128xbf16>
    %cst = arith.constant dense<0.000000e+00> : vector<64x128xf32>
    %2 = tpu.matmul %0, %1, %cst {dimension_numbers = #tpu.dot_dimension_numbers<[1], [0], [0], [1], [0, 0, 1, 1], [], []>} : vector<64x36xbf16>, vector<36x128xbf16>, vector<64x128xf32> -> vector<64x128xf32>
    %c0_3 = arith.constant 0 : index
    %c0_4 = arith.constant 0 : index
    %3 = vector.load %arg3[%c0_3, %c0_4] : memref<1x128xf32, #tpu.memory_space<vmem>>, vector<1x128xf32>
    %4 = vector.broadcast %3 : vector<1x128xf32> to vector<64x128xf32>
    %5 = arith.addf %2, %4 : vector<64x128xf32>
    %cst_5 = arith.constant 0.000000e+00 : f32
    %6 = vector.broadcast %cst_5 : f32 to vector<64x128xf32>
    %7 = arith.maximumf %5, %6 : vector<64x128xf32>
    %8 = arith.truncf %7 : vector<64x128xf32> to vector<64x128xbf16>
    %c0_6 = arith.constant 0 : index
    %c0_7 = arith.constant 0 : index
    %9 = vector.load %arg4[%c0_6, %c0_7] : memref<64x128xbf16, #tpu.memory_space<vmem>>, vector<64x128xbf16>
    tpu.vector_store %arg4[%c0_6, %c0_7], %8 {strides = array<i32>} : memref<64x128xbf16, #tpu.memory_space<vmem>>, vector<64x128xbf16>,
    return
  }
  func.func @transform_0(%arg0: i32) -> (i32, i32) {
    %c0_i32 = arith.constant 0 : i32
    %c0_i32_0 = arith.constant 0 : i32
    return %arg0, %c0_i32 : i32, i32
  }
  func.func @transform_1(%arg0: i32) -> (i32, i32) {
    %c0_i32 = arith.constant 0 : i32
    %c0_i32_0 = arith.constant 0 : i32
    %c0_i32_1 = arith.constant 0 : i32
    return %c0_i32, %c0_i32_0 : i32, i32
  }
  func.func @transform_2(%arg0: i32) -> (i32, i32) {
    %c0_i32 = arith.constant 0 : i32
    %c0_i32_0 = arith.constant 0 : i32
    %c0_i32_1 = arith.constant 0 : i32
    return %c0_i32, %c0_i32_0 : i32, i32
  }
  func.func @transform_3(%arg0: i32) -> (i32, i32) {
    %c0_i32 = arith.constant 0 : i32
    %c0_i32_0 = arith.constant 0 : i32
    return %arg0, %c0_i32 : i32, i32
  }
}

module attributes {stable_mosaic.version = 11 : i64} {
  func.func @kernel(%arg0: i32, %arg1: memref<1x112x128xbf16, #tpu.memory_space<vmem>>, %arg2: memref<9x128x128xbf16, #tpu.memory_space<vmem>>, %arg3: memref<1x128xf32, #tpu.memory_space<vmem>>, %arg4: memref<80x1xf32, #tpu.memory_space<vmem>>, %arg5: memref<1x112x128xbf16, #tpu.memory_space<vmem>>) attributes {dimension_semantics = [#tpu.dimension_semantics<parallel>], iteration_bounds = array<i64: 2>, scalar_prefetch = 0 : i64, scratch_operands = 0 : i64, tpu.core_type = #tpu.core_type<tc>, window_params = [{transform_indices = @transform_0, window_bounds = array<i64: 1, 112, 128>}, {pipeline_mode = #tpu.pipeline_mode<synchronous>, transform_indices = @transform_1, window_bounds = array<i64: 9, 128, 128>}, {pipeline_mode = #tpu.pipeline_mode<synchronous>, transform_indices = @transform_2, window_bounds = array<i64: 1, 128>}, {pipeline_mode = #tpu.pipeline_mode<synchronous>, transform_indices = @transform_3, window_bounds = array<i64: 80, 1>}, {transform_indices = @transform_4, window_bounds = array<i64: 1, 112, 128>}]} {
    %c0 = arith.constant 0 : index
    %c5 = arith.constant 5 : index
    %c0_0 = arith.constant 0 : index
    %0 = vector.load %arg1[%c0, %c5, %c0_0] : memref<1x112x128xbf16, #tpu.memory_space<vmem>>, vector<1x80x128xbf16>
    %1 = vector.shape_cast %0 : vector<1x80x128xbf16> to vector<80x128xbf16>
    %c0_1 = arith.constant 0 : index
    %c0_2 = arith.constant 0 : index
    %c0_3 = arith.constant 0 : index
    %2 = vector.load %arg2[%c0_1, %c0_2, %c0_3] : memref<9x128x128xbf16, #tpu.memory_space<vmem>>, vector<1x128x128xbf16>
    %3 = vector.shape_cast %2 : vector<1x128x128xbf16> to vector<128x128xbf16>
    %cst = arith.constant dense<0.000000e+00> : vector<80x128xf32>
    %4 = tpu.matmul %1, %3, %cst {dimension_numbers = #tpu.dot_dimension_numbers<[1], [0], [0], [1], [0, 0, 1, 1], [], []>} : vector<80x128xbf16>, vector<128x128xbf16>, vector<80x128xf32> -> vector<80x128xf32>
    %c0_4 = arith.constant 0 : index
    %c6 = arith.constant 6 : index
    %c0_5 = arith.constant 0 : index
    %5 = vector.load %arg1[%c0_4, %c6, %c0_5] : memref<1x112x128xbf16, #tpu.memory_space<vmem>>, vector<1x80x128xbf16>
    %6 = vector.shape_cast %5 : vector<1x80x128xbf16> to vector<80x128xbf16>
    %c1 = arith.constant 1 : index
    %c0_6 = arith.constant 0 : index
    %c0_7 = arith.constant 0 : index
    %7 = vector.load %arg2[%c1, %c0_6, %c0_7] : memref<9x128x128xbf16, #tpu.memory_space<vmem>>, vector<1x128x128xbf16>
    %8 = vector.shape_cast %7 : vector<1x128x128xbf16> to vector<128x128xbf16>
    %cst_8 = arith.constant dense<0.000000e+00> : vector<80x128xf32>
    %9 = tpu.matmul %6, %8, %cst_8 {dimension_numbers = #tpu.dot_dimension_numbers<[1], [0], [0], [1], [0, 0, 1, 1], [], []>} : vector<80x128xbf16>, vector<128x128xbf16>, vector<80x128xf32> -> vector<80x128xf32>
    %10 = arith.addf %4, %9 : vector<80x128xf32>
    %c0_9 = arith.constant 0 : index
    %c7 = arith.constant 7 : index
    %c0_10 = arith.constant 0 : index
    %11 = vector.load %arg1[%c0_9, %c7, %c0_10] : memref<1x112x128xbf16, #tpu.memory_space<vmem>>, vector<1x80x128xbf16>
    %12 = vector.shape_cast %11 : vector<1x80x128xbf16> to vector<80x128xbf16>
    %c2 = arith.constant 2 : index
    %c0_11 = arith.constant 0 : index
    %c0_12 = arith.constant 0 : index
    %13 = vector.load %arg2[%c2, %c0_11, %c0_12] : memref<9x128x128xbf16, #tpu.memory_space<vmem>>, vector<1x128x128xbf16>
    %14 = vector.shape_cast %13 : vector<1x128x128xbf16> to vector<128x128xbf16>
    %cst_13 = arith.constant dense<0.000000e+00> : vector<80x128xf32>
    %15 = tpu.matmul %12, %14, %cst_13 {dimension_numbers = #tpu.dot_dimension_numbers<[1], [0], [0], [1], [0, 0, 1, 1], [], []>} : vector<80x128xbf16>, vector<128x128xbf16>, vector<80x128xf32> -> vector<80x128xf32>
    %16 = arith.addf %10, %15 : vector<80x128xf32>
    %c0_14 = arith.constant 0 : index
    %c15 = arith.constant 15 : index
    %c0_15 = arith.constant 0 : index
    %17 = vector.load %arg1[%c0_14, %c15, %c0_15] : memref<1x112x128xbf16, #tpu.memory_space<vmem>>, vector<1x80x128xbf16>
    %18 = vector.shape_cast %17 : vector<1x80x128xbf16> to vector<80x128xbf16>
    %c3 = arith.constant 3 : index
    %c0_16 = arith.constant 0 : index
    %c0_17 = arith.constant 0 : index
    %19 = vector.load %arg2[%c3, %c0_16, %c0_17] : memref<9x128x128xbf16, #tpu.memory_space<vmem>>, vector<1x128x128xbf16>
    %20 = vector.shape_cast %19 : vector<1x128x128xbf16> to vector<128x128xbf16>
    %cst_18 = arith.constant dense<0.000000e+00> : vector<80x128xf32>
    %21 = tpu.matmul %18, %20, %cst_18 {dimension_numbers = #tpu.dot_dimension_numbers<[1], [0], [0], [1], [0, 0, 1, 1], [], []>} : vector<80x128xbf16>, vector<128x128xbf16>, vector<80x128xf32> -> vector<80x128xf32>
    %22 = arith.addf %16, %21 : vector<80x128xf32>
    %c0_19 = arith.constant 0 : index
    %c16 = arith.constant 16 : index
    %c0_20 = arith.constant 0 : index
    %23 = vector.load %arg1[%c0_19, %c16, %c0_20] : memref<1x112x128xbf16, #tpu.memory_space<vmem>>, vector<1x80x128xbf16>
    %24 = vector.shape_cast %23 : vector<1x80x128xbf16> to vector<80x128xbf16>
    %c4 = arith.constant 4 : index
    %c0_21 = arith.constant 0 : index
    %c0_22 = arith.constant 0 : index
    %25 = vector.load %arg2[%c4, %c0_21, %c0_22] : memref<9x128x128xbf16, #tpu.memory_space<vmem>>, vector<1x128x128xbf16>
    %26 = vector.shape_cast %25 : vector<1x128x128xbf16> to vector<128x128xbf16>
    %cst_23 = arith.constant dense<0.000000e+00> : vector<80x128xf32>
    %27 = tpu.matmul %24, %26, %cst_23 {dimension_numbers = #tpu.dot_dimension_numbers<[1], [0], [0], [1], [0, 0, 1, 1], [], []>} : vector<80x128xbf16>, vector<128x128xbf16>, vector<80x128xf32> -> vector<80x128xf32>
    %28 = arith.addf %22, %27 : vector<80x128xf32>
    %c0_24 = arith.constant 0 : index
    %c17 = arith.constant 17 : index
    %c0_25 = arith.constant 0 : index
    %29 = vector.load %arg1[%c0_24, %c17, %c0_25] : memref<1x112x128xbf16, #tpu.memory_space<vmem>>, vector<1x80x128xbf16>
    %30 = vector.shape_cast %29 : vector<1x80x128xbf16> to vector<80x128xbf16>
    %c5_26 = arith.constant 5 : index
    %c0_27 = arith.constant 0 : index
    %c0_28 = arith.constant 0 : index
    %31 = vector.load %arg2[%c5_26, %c0_27, %c0_28] : memref<9x128x128xbf16, #tpu.memory_space<vmem>>, vector<1x128x128xbf16>
    %32 = vector.shape_cast %31 : vector<1x128x128xbf16> to vector<128x128xbf16>
    %cst_29 = arith.constant dense<0.000000e+00> : vector<80x128xf32>
    %33 = tpu.matmul %30, %32, %cst_29 {dimension_numbers = #tpu.dot_dimension_numbers<[1], [0], [0], [1], [0, 0, 1, 1], [], []>} : vector<80x128xbf16>, vector<128x128xbf16>, vector<80x128xf32> -> vector<80x128xf32>
    %34 = arith.addf %28, %33 : vector<80x128xf32>
    %c0_30 = arith.constant 0 : index
    %c25 = arith.constant 25 : index
    %c0_31 = arith.constant 0 : index
    %35 = vector.load %arg1[%c0_30, %c25, %c0_31] : memref<1x112x128xbf16, #tpu.memory_space<vmem>>, vector<1x80x128xbf16>
    %36 = vector.shape_cast %35 : vector<1x80x128xbf16> to vector<80x128xbf16>
    %c6_32 = arith.constant 6 : index
    %c0_33 = arith.constant 0 : index
    %c0_34 = arith.constant 0 : index
    %37 = vector.load %arg2[%c6_32, %c0_33, %c0_34] : memref<9x128x128xbf16, #tpu.memory_space<vmem>>, vector<1x128x128xbf16>
    %38 = vector.shape_cast %37 : vector<1x128x128xbf16> to vector<128x128xbf16>
    %cst_35 = arith.constant dense<0.000000e+00> : vector<80x128xf32>
    %39 = tpu.matmul %36, %38, %cst_35 {dimension_numbers = #tpu.dot_dimension_numbers<[1], [0], [0], [1], [0, 0, 1, 1], [], []>} : vector<80x128xbf16>, vector<128x128xbf16>, vector<80x128xf32> -> vector<80x128xf32>
    %40 = arith.addf %34, %39 : vector<80x128xf32>
    %c0_36 = arith.constant 0 : index
    %c26 = arith.constant 26 : index
    %c0_37 = arith.constant 0 : index
    %41 = vector.load %arg1[%c0_36, %c26, %c0_37] : memref<1x112x128xbf16, #tpu.memory_space<vmem>>, vector<1x80x128xbf16>
    %42 = vector.shape_cast %41 : vector<1x80x128xbf16> to vector<80x128xbf16>
    %c7_38 = arith.constant 7 : index
    %c0_39 = arith.constant 0 : index
    %c0_40 = arith.constant 0 : index
    %43 = vector.load %arg2[%c7_38, %c0_39, %c0_40] : memref<9x128x128xbf16, #tpu.memory_space<vmem>>, vector<1x128x128xbf16>
    %44 = vector.shape_cast %43 : vector<1x128x128xbf16> to vector<128x128xbf16>
    %cst_41 = arith.constant dense<0.000000e+00> : vector<80x128xf32>
    %45 = tpu.matmul %42, %44, %cst_41 {dimension_numbers = #tpu.dot_dimension_numbers<[1], [0], [0], [1], [0, 0, 1, 1], [], []>} : vector<80x128xbf16>, vector<128x128xbf16>, vector<80x128xf32> -> vector<80x128xf32>
    %46 = arith.addf %40, %45 : vector<80x128xf32>
    %c0_42 = arith.constant 0 : index
    %c27 = arith.constant 27 : index
    %c0_43 = arith.constant 0 : index
    %47 = vector.load %arg1[%c0_42, %c27, %c0_43] : memref<1x112x128xbf16, #tpu.memory_space<vmem>>, vector<1x80x128xbf16>
    %48 = vector.shape_cast %47 : vector<1x80x128xbf16> to vector<80x128xbf16>
    %c8 = arith.constant 8 : index
    %c0_44 = arith.constant 0 : index
    %c0_45 = arith.constant 0 : index
    %49 = vector.load %arg2[%c8, %c0_44, %c0_45] : memref<9x128x128xbf16, #tpu.memory_space<vmem>>, vector<1x128x128xbf16>
    %50 = vector.shape_cast %49 : vector<1x128x128xbf16> to vector<128x128xbf16>
    %cst_46 = arith.constant dense<0.000000e+00> : vector<80x128xf32>
    %51 = tpu.matmul %48, %50, %cst_46 {dimension_numbers = #tpu.dot_dimension_numbers<[1], [0], [0], [1], [0, 0, 1, 1], [], []>} : vector<80x128xbf16>, vector<128x128xbf16>, vector<80x128xf32> -> vector<80x128xf32>
    %52 = arith.addf %46, %51 : vector<80x128xf32>
    %c0_47 = arith.constant 0 : index
    %c0_48 = arith.constant 0 : index
    %53 = vector.load %arg3[%c0_47, %c0_48] : memref<1x128xf32, #tpu.memory_space<vmem>>, vector<1x128xf32>
    %54 = vector.broadcast %53 : vector<1x128xf32> to vector<80x128xf32>
    %55 = arith.addf %52, %54 : vector<80x128xf32>
    %cst_49 = arith.constant 0.000000e+00 : f32
    %56 = vector.broadcast %cst_49 : f32 to vector<80x128xf32>
    %57 = arith.maximumf %55, %56 : vector<80x128xf32>
    %c0_50 = arith.constant 0 : index
    %c0_51 = arith.constant 0 : index
    %58 = vector.load %arg4[%c0_50, %c0_51] : memref<80x1xf32, #tpu.memory_space<vmem>>, vector<80x1xf32>
    %59 = vector.broadcast %58 : vector<80x1xf32> to vector<80x128xf32>
    %60 = arith.mulf %57, %59 : vector<80x128xf32>
    %cst_52 = arith.constant 0.000000e+00 : bf16
    %61 = vector.broadcast %cst_52 : bf16 to vector<112x128xbf16>
    %c0_53 = arith.constant 0 : index
    %c0_54 = arith.constant 0 : index
    %c0_55 = arith.constant 0 : index
    %62 = vector.load %arg5[%c0_53, %c0_54, %c0_55] : memref<1x112x128xbf16, #tpu.memory_space<vmem>>, vector<1x112x128xbf16>
    %63 = vector.shape_cast %62 : vector<1x112x128xbf16> to vector<112x128xbf16>
    %64 = vector.shape_cast %61 : vector<112x128xbf16> to vector<1x112x128xbf16>
    tpu.vector_store %arg5[%c0_53, %c0_54, %c0_55], %64 {strides = array<i32>} : memref<1x112x128xbf16, #tpu.memory_space<vmem>>, vector<1x112x128xbf16>,
    %65 = arith.truncf %60 : vector<80x128xf32> to vector<80x128xbf16>
    %c0_56 = arith.constant 0 : index
    %c16_57 = arith.constant 16 : index
    %c0_58 = arith.constant 0 : index
    %66 = vector.load %arg5[%c0_56, %c16_57, %c0_58] : memref<1x112x128xbf16, #tpu.memory_space<vmem>>, vector<1x80x128xbf16>
    %67 = vector.shape_cast %66 : vector<1x80x128xbf16> to vector<80x128xbf16>
    %68 = vector.shape_cast %65 : vector<80x128xbf16> to vector<1x80x128xbf16>
    tpu.vector_store %arg5[%c0_56, %c16_57, %c0_58], %68 {strides = array<i32>} : memref<1x112x128xbf16, #tpu.memory_space<vmem>>, vector<1x80x128xbf16>,
    return
  }
  func.func @transform_0(%arg0: i32) -> (i32, i32, i32) {
    %c0_i32 = arith.constant 0 : i32
    %c0_i32_0 = arith.constant 0 : i32
    %c0_i32_1 = arith.constant 0 : i32
    return %arg0, %c0_i32, %c0_i32_0 : i32, i32, i32
  }
  func.func @transform_1(%arg0: i32) -> (i32, i32, i32) {
    %c0_i32 = arith.constant 0 : i32
    %c0_i32_0 = arith.constant 0 : i32
    %c0_i32_1 = arith.constant 0 : i32
    %c0_i32_2 = arith.constant 0 : i32
    return %c0_i32, %c0_i32_0, %c0_i32_1 : i32, i32, i32
  }
  func.func @transform_2(%arg0: i32) -> (i32, i32) {
    %c0_i32 = arith.constant 0 : i32
    %c0_i32_0 = arith.constant 0 : i32
    %c0_i32_1 = arith.constant 0 : i32
    return %c0_i32, %c0_i32_0 : i32, i32
  }
  func.func @transform_3(%arg0: i32) -> (i32, i32) {
    %c0_i32 = arith.constant 0 : i32
    %c0_i32_0 = arith.constant 0 : i32
    %c0_i32_1 = arith.constant 0 : i32
    return %c0_i32, %c0_i32_0 : i32, i32
  }
  func.func @transform_4(%arg0: i32) -> (i32, i32, i32) {
    %c0_i32 = arith.constant 0 : i32
    %c0_i32_0 = arith.constant 0 : i32
    %c0_i32_1 = arith.constant 0 : i32
    return %arg0, %c0_i32, %c0_i32_0 : i32, i32, i32
  }
}

module attributes {stable_mosaic.version = 11 : i64} {
  func.func @kernel(%arg0: i32, %arg1: memref<1x112x128xbf16, #tpu.memory_space<vmem>>, %arg2: memref<9x128x128xbf16, #tpu.memory_space<vmem>>, %arg3: memref<1x128xf32, #tpu.memory_space<vmem>>, %arg4: memref<80x1xf32, #tpu.memory_space<vmem>>, %arg5: memref<1x112x128xbf16, #tpu.memory_space<vmem>>, %arg6: memref<1x112x128xbf16, #tpu.memory_space<vmem>>) attributes {dimension_semantics = [#tpu.dimension_semantics<parallel>], iteration_bounds = array<i64: 2>, scalar_prefetch = 0 : i64, scratch_operands = 0 : i64, tpu.core_type = #tpu.core_type<tc>, window_params = [{transform_indices = @transform_0, window_bounds = array<i64: 1, 112, 128>}, {pipeline_mode = #tpu.pipeline_mode<synchronous>, transform_indices = @transform_1, window_bounds = array<i64: 9, 128, 128>}, {pipeline_mode = #tpu.pipeline_mode<synchronous>, transform_indices = @transform_2, window_bounds = array<i64: 1, 128>}, {pipeline_mode = #tpu.pipeline_mode<synchronous>, transform_indices = @transform_3, window_bounds = array<i64: 80, 1>}, {transform_indices = @transform_4, window_bounds = array<i64: 1, 112, 128>}, {transform_indices = @transform_5, window_bounds = array<i64: 1, 112, 128>}]} {
    %c0 = arith.constant 0 : index
    %c5 = arith.constant 5 : index
    %c0_0 = arith.constant 0 : index
    %0 = vector.load %arg1[%c0, %c5, %c0_0] : memref<1x112x128xbf16, #tpu.memory_space<vmem>>, vector<1x80x128xbf16>
    %1 = vector.shape_cast %0 : vector<1x80x128xbf16> to vector<80x128xbf16>
    %c0_1 = arith.constant 0 : index
    %c0_2 = arith.constant 0 : index
    %c0_3 = arith.constant 0 : index
    %2 = vector.load %arg2[%c0_1, %c0_2, %c0_3] : memref<9x128x128xbf16, #tpu.memory_space<vmem>>, vector<1x128x128xbf16>
    %3 = vector.shape_cast %2 : vector<1x128x128xbf16> to vector<128x128xbf16>
    %cst = arith.constant dense<0.000000e+00> : vector<80x128xf32>
    %4 = tpu.matmul %1, %3, %cst {dimension_numbers = #tpu.dot_dimension_numbers<[1], [0], [0], [1], [0, 0, 1, 1], [], []>} : vector<80x128xbf16>, vector<128x128xbf16>, vector<80x128xf32> -> vector<80x128xf32>
    %c0_4 = arith.constant 0 : index
    %c6 = arith.constant 6 : index
    %c0_5 = arith.constant 0 : index
    %5 = vector.load %arg1[%c0_4, %c6, %c0_5] : memref<1x112x128xbf16, #tpu.memory_space<vmem>>, vector<1x80x128xbf16>
    %6 = vector.shape_cast %5 : vector<1x80x128xbf16> to vector<80x128xbf16>
    %c1 = arith.constant 1 : index
    %c0_6 = arith.constant 0 : index
    %c0_7 = arith.constant 0 : index
    %7 = vector.load %arg2[%c1, %c0_6, %c0_7] : memref<9x128x128xbf16, #tpu.memory_space<vmem>>, vector<1x128x128xbf16>
    %8 = vector.shape_cast %7 : vector<1x128x128xbf16> to vector<128x128xbf16>
    %cst_8 = arith.constant dense<0.000000e+00> : vector<80x128xf32>
    %9 = tpu.matmul %6, %8, %cst_8 {dimension_numbers = #tpu.dot_dimension_numbers<[1], [0], [0], [1], [0, 0, 1, 1], [], []>} : vector<80x128xbf16>, vector<128x128xbf16>, vector<80x128xf32> -> vector<80x128xf32>
    %10 = arith.addf %4, %9 : vector<80x128xf32>
    %c0_9 = arith.constant 0 : index
    %c7 = arith.constant 7 : index
    %c0_10 = arith.constant 0 : index
    %11 = vector.load %arg1[%c0_9, %c7, %c0_10] : memref<1x112x128xbf16, #tpu.memory_space<vmem>>, vector<1x80x128xbf16>
    %12 = vector.shape_cast %11 : vector<1x80x128xbf16> to vector<80x128xbf16>
    %c2 = arith.constant 2 : index
    %c0_11 = arith.constant 0 : index
    %c0_12 = arith.constant 0 : index
    %13 = vector.load %arg2[%c2, %c0_11, %c0_12] : memref<9x128x128xbf16, #tpu.memory_space<vmem>>, vector<1x128x128xbf16>
    %14 = vector.shape_cast %13 : vector<1x128x128xbf16> to vector<128x128xbf16>
    %cst_13 = arith.constant dense<0.000000e+00> : vector<80x128xf32>
    %15 = tpu.matmul %12, %14, %cst_13 {dimension_numbers = #tpu.dot_dimension_numbers<[1], [0], [0], [1], [0, 0, 1, 1], [], []>} : vector<80x128xbf16>, vector<128x128xbf16>, vector<80x128xf32> -> vector<80x128xf32>
    %16 = arith.addf %10, %15 : vector<80x128xf32>
    %c0_14 = arith.constant 0 : index
    %c15 = arith.constant 15 : index
    %c0_15 = arith.constant 0 : index
    %17 = vector.load %arg1[%c0_14, %c15, %c0_15] : memref<1x112x128xbf16, #tpu.memory_space<vmem>>, vector<1x80x128xbf16>
    %18 = vector.shape_cast %17 : vector<1x80x128xbf16> to vector<80x128xbf16>
    %c3 = arith.constant 3 : index
    %c0_16 = arith.constant 0 : index
    %c0_17 = arith.constant 0 : index
    %19 = vector.load %arg2[%c3, %c0_16, %c0_17] : memref<9x128x128xbf16, #tpu.memory_space<vmem>>, vector<1x128x128xbf16>
    %20 = vector.shape_cast %19 : vector<1x128x128xbf16> to vector<128x128xbf16>
    %cst_18 = arith.constant dense<0.000000e+00> : vector<80x128xf32>
    %21 = tpu.matmul %18, %20, %cst_18 {dimension_numbers = #tpu.dot_dimension_numbers<[1], [0], [0], [1], [0, 0, 1, 1], [], []>} : vector<80x128xbf16>, vector<128x128xbf16>, vector<80x128xf32> -> vector<80x128xf32>
    %22 = arith.addf %16, %21 : vector<80x128xf32>
    %c0_19 = arith.constant 0 : index
    %c16 = arith.constant 16 : index
    %c0_20 = arith.constant 0 : index
    %23 = vector.load %arg1[%c0_19, %c16, %c0_20] : memref<1x112x128xbf16, #tpu.memory_space<vmem>>, vector<1x80x128xbf16>
    %24 = vector.shape_cast %23 : vector<1x80x128xbf16> to vector<80x128xbf16>
    %c4 = arith.constant 4 : index
    %c0_21 = arith.constant 0 : index
    %c0_22 = arith.constant 0 : index
    %25 = vector.load %arg2[%c4, %c0_21, %c0_22] : memref<9x128x128xbf16, #tpu.memory_space<vmem>>, vector<1x128x128xbf16>
    %26 = vector.shape_cast %25 : vector<1x128x128xbf16> to vector<128x128xbf16>
    %cst_23 = arith.constant dense<0.000000e+00> : vector<80x128xf32>
    %27 = tpu.matmul %24, %26, %cst_23 {dimension_numbers = #tpu.dot_dimension_numbers<[1], [0], [0], [1], [0, 0, 1, 1], [], []>} : vector<80x128xbf16>, vector<128x128xbf16>, vector<80x128xf32> -> vector<80x128xf32>
    %28 = arith.addf %22, %27 : vector<80x128xf32>
    %c0_24 = arith.constant 0 : index
    %c17 = arith.constant 17 : index
    %c0_25 = arith.constant 0 : index
    %29 = vector.load %arg1[%c0_24, %c17, %c0_25] : memref<1x112x128xbf16, #tpu.memory_space<vmem>>, vector<1x80x128xbf16>
    %30 = vector.shape_cast %29 : vector<1x80x128xbf16> to vector<80x128xbf16>
    %c5_26 = arith.constant 5 : index
    %c0_27 = arith.constant 0 : index
    %c0_28 = arith.constant 0 : index
    %31 = vector.load %arg2[%c5_26, %c0_27, %c0_28] : memref<9x128x128xbf16, #tpu.memory_space<vmem>>, vector<1x128x128xbf16>
    %32 = vector.shape_cast %31 : vector<1x128x128xbf16> to vector<128x128xbf16>
    %cst_29 = arith.constant dense<0.000000e+00> : vector<80x128xf32>
    %33 = tpu.matmul %30, %32, %cst_29 {dimension_numbers = #tpu.dot_dimension_numbers<[1], [0], [0], [1], [0, 0, 1, 1], [], []>} : vector<80x128xbf16>, vector<128x128xbf16>, vector<80x128xf32> -> vector<80x128xf32>
    %34 = arith.addf %28, %33 : vector<80x128xf32>
    %c0_30 = arith.constant 0 : index
    %c25 = arith.constant 25 : index
    %c0_31 = arith.constant 0 : index
    %35 = vector.load %arg1[%c0_30, %c25, %c0_31] : memref<1x112x128xbf16, #tpu.memory_space<vmem>>, vector<1x80x128xbf16>
    %36 = vector.shape_cast %35 : vector<1x80x128xbf16> to vector<80x128xbf16>
    %c6_32 = arith.constant 6 : index
    %c0_33 = arith.constant 0 : index
    %c0_34 = arith.constant 0 : index
    %37 = vector.load %arg2[%c6_32, %c0_33, %c0_34] : memref<9x128x128xbf16, #tpu.memory_space<vmem>>, vector<1x128x128xbf16>
    %38 = vector.shape_cast %37 : vector<1x128x128xbf16> to vector<128x128xbf16>
    %cst_35 = arith.constant dense<0.000000e+00> : vector<80x128xf32>
    %39 = tpu.matmul %36, %38, %cst_35 {dimension_numbers = #tpu.dot_dimension_numbers<[1], [0], [0], [1], [0, 0, 1, 1], [], []>} : vector<80x128xbf16>, vector<128x128xbf16>, vector<80x128xf32> -> vector<80x128xf32>
    %40 = arith.addf %34, %39 : vector<80x128xf32>
    %c0_36 = arith.constant 0 : index
    %c26 = arith.constant 26 : index
    %c0_37 = arith.constant 0 : index
    %41 = vector.load %arg1[%c0_36, %c26, %c0_37] : memref<1x112x128xbf16, #tpu.memory_space<vmem>>, vector<1x80x128xbf16>
    %42 = vector.shape_cast %41 : vector<1x80x128xbf16> to vector<80x128xbf16>
    %c7_38 = arith.constant 7 : index
    %c0_39 = arith.constant 0 : index
    %c0_40 = arith.constant 0 : index
    %43 = vector.load %arg2[%c7_38, %c0_39, %c0_40] : memref<9x128x128xbf16, #tpu.memory_space<vmem>>, vector<1x128x128xbf16>
    %44 = vector.shape_cast %43 : vector<1x128x128xbf16> to vector<128x128xbf16>
    %cst_41 = arith.constant dense<0.000000e+00> : vector<80x128xf32>
    %45 = tpu.matmul %42, %44, %cst_41 {dimension_numbers = #tpu.dot_dimension_numbers<[1], [0], [0], [1], [0, 0, 1, 1], [], []>} : vector<80x128xbf16>, vector<128x128xbf16>, vector<80x128xf32> -> vector<80x128xf32>
    %46 = arith.addf %40, %45 : vector<80x128xf32>
    %c0_42 = arith.constant 0 : index
    %c27 = arith.constant 27 : index
    %c0_43 = arith.constant 0 : index
    %47 = vector.load %arg1[%c0_42, %c27, %c0_43] : memref<1x112x128xbf16, #tpu.memory_space<vmem>>, vector<1x80x128xbf16>
    %48 = vector.shape_cast %47 : vector<1x80x128xbf16> to vector<80x128xbf16>
    %c8 = arith.constant 8 : index
    %c0_44 = arith.constant 0 : index
    %c0_45 = arith.constant 0 : index
    %49 = vector.load %arg2[%c8, %c0_44, %c0_45] : memref<9x128x128xbf16, #tpu.memory_space<vmem>>, vector<1x128x128xbf16>
    %50 = vector.shape_cast %49 : vector<1x128x128xbf16> to vector<128x128xbf16>
    %cst_46 = arith.constant dense<0.000000e+00> : vector<80x128xf32>
    %51 = tpu.matmul %48, %50, %cst_46 {dimension_numbers = #tpu.dot_dimension_numbers<[1], [0], [0], [1], [0, 0, 1, 1], [], []>} : vector<80x128xbf16>, vector<128x128xbf16>, vector<80x128xf32> -> vector<80x128xf32>
    %52 = arith.addf %46, %51 : vector<80x128xf32>
    %c0_47 = arith.constant 0 : index
    %c0_48 = arith.constant 0 : index
    %53 = vector.load %arg3[%c0_47, %c0_48] : memref<1x128xf32, #tpu.memory_space<vmem>>, vector<1x128xf32>
    %54 = vector.broadcast %53 : vector<1x128xf32> to vector<80x128xf32>
    %55 = arith.addf %52, %54 : vector<80x128xf32>
    %cst_49 = arith.constant 0.000000e+00 : f32
    %56 = vector.broadcast %cst_49 : f32 to vector<80x128xf32>
    %57 = arith.maximumf %55, %56 : vector<80x128xf32>
    %c0_50 = arith.constant 0 : index
    %c0_51 = arith.constant 0 : index
    %58 = vector.load %arg4[%c0_50, %c0_51] : memref<80x1xf32, #tpu.memory_space<vmem>>, vector<80x1xf32>
    %59 = vector.broadcast %58 : vector<80x1xf32> to vector<80x128xf32>
    %60 = arith.mulf %57, %59 : vector<80x128xf32>
    %c0_52 = arith.constant 0 : index
    %c16_53 = arith.constant 16 : index
    %c0_54 = arith.constant 0 : index
    %61 = vector.load %arg5[%c0_52, %c16_53, %c0_54] : memref<1x112x128xbf16, #tpu.memory_space<vmem>>, vector<1x80x128xbf16>
    %62 = vector.shape_cast %61 : vector<1x80x128xbf16> to vector<80x128xbf16>
    %63 = arith.extf %62 : vector<80x128xbf16> to vector<80x128xf32>
    %64 = arith.addf %60, %63 : vector<80x128xf32>
    %cst_55 = arith.constant 0.000000e+00 : bf16
    %65 = vector.broadcast %cst_55 : bf16 to vector<112x128xbf16>
    %c0_56 = arith.constant 0 : index
    %c0_57 = arith.constant 0 : index
    %c0_58 = arith.constant 0 : index
    %66 = vector.load %arg6[%c0_56, %c0_57, %c0_58] : memref<1x112x128xbf16, #tpu.memory_space<vmem>>, vector<1x112x128xbf16>
    %67 = vector.shape_cast %66 : vector<1x112x128xbf16> to vector<112x128xbf16>
    %68 = vector.shape_cast %65 : vector<112x128xbf16> to vector<1x112x128xbf16>
    tpu.vector_store %arg6[%c0_56, %c0_57, %c0_58], %68 {strides = array<i32>} : memref<1x112x128xbf16, #tpu.memory_space<vmem>>, vector<1x112x128xbf16>,
    %69 = arith.truncf %64 : vector<80x128xf32> to vector<80x128xbf16>
    %c0_59 = arith.constant 0 : index
    %c16_60 = arith.constant 16 : index
    %c0_61 = arith.constant 0 : index
    %70 = vector.load %arg6[%c0_59, %c16_60, %c0_61] : memref<1x112x128xbf16, #tpu.memory_space<vmem>>, vector<1x80x128xbf16>
    %71 = vector.shape_cast %70 : vector<1x80x128xbf16> to vector<80x128xbf16>
    %72 = vector.shape_cast %69 : vector<80x128xbf16> to vector<1x80x128xbf16>
    tpu.vector_store %arg6[%c0_59, %c16_60, %c0_61], %72 {strides = array<i32>} : memref<1x112x128xbf16, #tpu.memory_space<vmem>>, vector<1x80x128xbf16>,
    return
  }
  func.func @transform_0(%arg0: i32) -> (i32, i32, i32) {
    %c0_i32 = arith.constant 0 : i32
    %c0_i32_0 = arith.constant 0 : i32
    %c0_i32_1 = arith.constant 0 : i32
    return %arg0, %c0_i32, %c0_i32_0 : i32, i32, i32
  }
  func.func @transform_1(%arg0: i32) -> (i32, i32, i32) {
    %c0_i32 = arith.constant 0 : i32
    %c0_i32_0 = arith.constant 0 : i32
    %c0_i32_1 = arith.constant 0 : i32
    %c0_i32_2 = arith.constant 0 : i32
    return %c0_i32, %c0_i32_0, %c0_i32_1 : i32, i32, i32
  }
  func.func @transform_2(%arg0: i32) -> (i32, i32) {
    %c0_i32 = arith.constant 0 : i32
    %c0_i32_0 = arith.constant 0 : i32
    %c0_i32_1 = arith.constant 0 : i32
    return %c0_i32, %c0_i32_0 : i32, i32
  }
  func.func @transform_3(%arg0: i32) -> (i32, i32) {
    %c0_i32 = arith.constant 0 : i32
    %c0_i32_0 = arith.constant 0 : i32
    %c0_i32_1 = arith.constant 0 : i32
    return %c0_i32, %c0_i32_0 : i32, i32
  }
  func.func @transform_4(%arg0: i32) -> (i32, i32, i32) {
    %c0_i32 = arith.constant 0 : i32
    %c0_i32_0 = arith.constant 0 : i32
    %c0_i32_1 = arith.constant 0 : i32
    return %arg0, %c0_i32, %c0_i32_0 : i32, i32, i32
  }
  func.func @transform_5(%arg0: i32) -> (i32, i32, i32) {
    %c0_i32 = arith.constant 0 : i32
    %c0_i32_0 = arith.constant 0 : i32
    %c0_i32_1 = arith.constant 0 : i32
    return %arg0, %c0_i32, %c0_i32_0 : i32, i32, i32
  }
}

module attributes {stable_mosaic.version = 11 : i64} {
  func.func @kernel(%arg0: i32, %arg1: memref<1x112x128xbf16, #tpu.memory_space<vmem>>, %arg2: memref<1x112x128xbf16, #tpu.memory_space<vmem>>, %arg3: memref<9x128x128xbf16, #tpu.memory_space<vmem>>, %arg4: memref<1x128xf32, #tpu.memory_space<vmem>>, %arg5: memref<80x1xf32, #tpu.memory_space<vmem>>, %arg6: memref<1x112x128xbf16, #tpu.memory_space<vmem>>) attributes {dimension_semantics = [#tpu.dimension_semantics<parallel>], iteration_bounds = array<i64: 2>, scalar_prefetch = 0 : i64, scratch_operands = 0 : i64, tpu.core_type = #tpu.core_type<tc>, window_params = [{transform_indices = @transform_0, window_bounds = array<i64: 1, 112, 128>}, {transform_indices = @transform_1, window_bounds = array<i64: 1, 112, 128>}, {pipeline_mode = #tpu.pipeline_mode<synchronous>, transform_indices = @transform_2, window_bounds = array<i64: 9, 128, 128>}, {pipeline_mode = #tpu.pipeline_mode<synchronous>, transform_indices = @transform_3, window_bounds = array<i64: 1, 128>}, {pipeline_mode = #tpu.pipeline_mode<synchronous>, transform_indices = @transform_4, window_bounds = array<i64: 80, 1>}, {transform_indices = @transform_5, window_bounds = array<i64: 1, 112, 128>}]} {
    %c0 = arith.constant 0 : index
    %c5 = arith.constant 5 : index
    %c0_0 = arith.constant 0 : index
    %0 = vector.load %arg1[%c0, %c5, %c0_0] : memref<1x112x128xbf16, #tpu.memory_space<vmem>>, vector<1x80x128xbf16>
    %1 = vector.shape_cast %0 : vector<1x80x128xbf16> to vector<80x128xbf16>
    %c0_1 = arith.constant 0 : index
    %c5_2 = arith.constant 5 : index
    %c0_3 = arith.constant 0 : index
    %2 = vector.load %arg2[%c0_1, %c5_2, %c0_3] : memref<1x112x128xbf16, #tpu.memory_space<vmem>>, vector<1x80x128xbf16>
    %3 = vector.shape_cast %2 : vector<1x80x128xbf16> to vector<80x128xbf16>
    %4 = arith.addf %1, %3 : vector<80x128xbf16>
    %c0_4 = arith.constant 0 : index
    %c0_5 = arith.constant 0 : index
    %c0_6 = arith.constant 0 : index
    %5 = vector.load %arg3[%c0_4, %c0_5, %c0_6] : memref<9x128x128xbf16, #tpu.memory_space<vmem>>, vector<1x128x128xbf16>
    %6 = vector.shape_cast %5 : vector<1x128x128xbf16> to vector<128x128xbf16>
    %cst = arith.constant dense<0.000000e+00> : vector<80x128xf32>
    %7 = tpu.matmul %4, %6, %cst {dimension_numbers = #tpu.dot_dimension_numbers<[1], [0], [0], [1], [0, 0, 1, 1], [], []>} : vector<80x128xbf16>, vector<128x128xbf16>, vector<80x128xf32> -> vector<80x128xf32>
    %c0_7 = arith.constant 0 : index
    %c6 = arith.constant 6 : index
    %c0_8 = arith.constant 0 : index
    %8 = vector.load %arg1[%c0_7, %c6, %c0_8] : memref<1x112x128xbf16, #tpu.memory_space<vmem>>, vector<1x80x128xbf16>
    %9 = vector.shape_cast %8 : vector<1x80x128xbf16> to vector<80x128xbf16>
    %c0_9 = arith.constant 0 : index
    %c6_10 = arith.constant 6 : index
    %c0_11 = arith.constant 0 : index
    %10 = vector.load %arg2[%c0_9, %c6_10, %c0_11] : memref<1x112x128xbf16, #tpu.memory_space<vmem>>, vector<1x80x128xbf16>
    %11 = vector.shape_cast %10 : vector<1x80x128xbf16> to vector<80x128xbf16>
    %12 = arith.addf %9, %11 : vector<80x128xbf16>
    %c1 = arith.constant 1 : index
    %c0_12 = arith.constant 0 : index
    %c0_13 = arith.constant 0 : index
    %13 = vector.load %arg3[%c1, %c0_12, %c0_13] : memref<9x128x128xbf16, #tpu.memory_space<vmem>>, vector<1x128x128xbf16>
    %14 = vector.shape_cast %13 : vector<1x128x128xbf16> to vector<128x128xbf16>
    %cst_14 = arith.constant dense<0.000000e+00> : vector<80x128xf32>
    %15 = tpu.matmul %12, %14, %cst_14 {dimension_numbers = #tpu.dot_dimension_numbers<[1], [0], [0], [1], [0, 0, 1, 1], [], []>} : vector<80x128xbf16>, vector<128x128xbf16>, vector<80x128xf32> -> vector<80x128xf32>
    %16 = arith.addf %7, %15 : vector<80x128xf32>
    %c0_15 = arith.constant 0 : index
    %c7 = arith.constant 7 : index
    %c0_16 = arith.constant 0 : index
    %17 = vector.load %arg1[%c0_15, %c7, %c0_16] : memref<1x112x128xbf16, #tpu.memory_space<vmem>>, vector<1x80x128xbf16>
    %18 = vector.shape_cast %17 : vector<1x80x128xbf16> to vector<80x128xbf16>
    %c0_17 = arith.constant 0 : index
    %c7_18 = arith.constant 7 : index
    %c0_19 = arith.constant 0 : index
    %19 = vector.load %arg2[%c0_17, %c7_18, %c0_19] : memref<1x112x128xbf16, #tpu.memory_space<vmem>>, vector<1x80x128xbf16>
    %20 = vector.shape_cast %19 : vector<1x80x128xbf16> to vector<80x128xbf16>
    %21 = arith.addf %18, %20 : vector<80x128xbf16>
    %c2 = arith.constant 2 : index
    %c0_20 = arith.constant 0 : index
    %c0_21 = arith.constant 0 : index
    %22 = vector.load %arg3[%c2, %c0_20, %c0_21] : memref<9x128x128xbf16, #tpu.memory_space<vmem>>, vector<1x128x128xbf16>
    %23 = vector.shape_cast %22 : vector<1x128x128xbf16> to vector<128x128xbf16>
    %cst_22 = arith.constant dense<0.000000e+00> : vector<80x128xf32>
    %24 = tpu.matmul %21, %23, %cst_22 {dimension_numbers = #tpu.dot_dimension_numbers<[1], [0], [0], [1], [0, 0, 1, 1], [], []>} : vector<80x128xbf16>, vector<128x128xbf16>, vector<80x128xf32> -> vector<80x128xf32>
    %25 = arith.addf %16, %24 : vector<80x128xf32>
    %c0_23 = arith.constant 0 : index
    %c15 = arith.constant 15 : index
    %c0_24 = arith.constant 0 : index
    %26 = vector.load %arg1[%c0_23, %c15, %c0_24] : memref<1x112x128xbf16, #tpu.memory_space<vmem>>, vector<1x80x128xbf16>
    %27 = vector.shape_cast %26 : vector<1x80x128xbf16> to vector<80x128xbf16>
    %c0_25 = arith.constant 0 : index
    %c15_26 = arith.constant 15 : index
    %c0_27 = arith.constant 0 : index
    %28 = vector.load %arg2[%c0_25, %c15_26, %c0_27] : memref<1x112x128xbf16, #tpu.memory_space<vmem>>, vector<1x80x128xbf16>
    %29 = vector.shape_cast %28 : vector<1x80x128xbf16> to vector<80x128xbf16>
    %30 = arith.addf %27, %29 : vector<80x128xbf16>
    %c3 = arith.constant 3 : index
    %c0_28 = arith.constant 0 : index
    %c0_29 = arith.constant 0 : index
    %31 = vector.load %arg3[%c3, %c0_28, %c0_29] : memref<9x128x128xbf16, #tpu.memory_space<vmem>>, vector<1x128x128xbf16>
    %32 = vector.shape_cast %31 : vector<1x128x128xbf16> to vector<128x128xbf16>
    %cst_30 = arith.constant dense<0.000000e+00> : vector<80x128xf32>
    %33 = tpu.matmul %30, %32, %cst_30 {dimension_numbers = #tpu.dot_dimension_numbers<[1], [0], [0], [1], [0, 0, 1, 1], [], []>} : vector<80x128xbf16>, vector<128x128xbf16>, vector<80x128xf32> -> vector<80x128xf32>
    %34 = arith.addf %25, %33 : vector<80x128xf32>
    %c0_31 = arith.constant 0 : index
    %c16 = arith.constant 16 : index
    %c0_32 = arith.constant 0 : index
    %35 = vector.load %arg1[%c0_31, %c16, %c0_32] : memref<1x112x128xbf16, #tpu.memory_space<vmem>>, vector<1x80x128xbf16>
    %36 = vector.shape_cast %35 : vector<1x80x128xbf16> to vector<80x128xbf16>
    %c0_33 = arith.constant 0 : index
    %c16_34 = arith.constant 16 : index
    %c0_35 = arith.constant 0 : index
    %37 = vector.load %arg2[%c0_33, %c16_34, %c0_35] : memref<1x112x128xbf16, #tpu.memory_space<vmem>>, vector<1x80x128xbf16>
    %38 = vector.shape_cast %37 : vector<1x80x128xbf16> to vector<80x128xbf16>
    %39 = arith.addf %36, %38 : vector<80x128xbf16>
    %c4 = arith.constant 4 : index
    %c0_36 = arith.constant 0 : index
    %c0_37 = arith.constant 0 : index
    %40 = vector.load %arg3[%c4, %c0_36, %c0_37] : memref<9x128x128xbf16, #tpu.memory_space<vmem>>, vector<1x128x128xbf16>
    %41 = vector.shape_cast %40 : vector<1x128x128xbf16> to vector<128x128xbf16>
    %cst_38 = arith.constant dense<0.000000e+00> : vector<80x128xf32>
    %42 = tpu.matmul %39, %41, %cst_38 {dimension_numbers = #tpu.dot_dimension_numbers<[1], [0], [0], [1], [0, 0, 1, 1], [], []>} : vector<80x128xbf16>, vector<128x128xbf16>, vector<80x128xf32> -> vector<80x128xf32>
    %43 = arith.addf %34, %42 : vector<80x128xf32>
    %c0_39 = arith.constant 0 : index
    %c17 = arith.constant 17 : index
    %c0_40 = arith.constant 0 : index
    %44 = vector.load %arg1[%c0_39, %c17, %c0_40] : memref<1x112x128xbf16, #tpu.memory_space<vmem>>, vector<1x80x128xbf16>
    %45 = vector.shape_cast %44 : vector<1x80x128xbf16> to vector<80x128xbf16>
    %c0_41 = arith.constant 0 : index
    %c17_42 = arith.constant 17 : index
    %c0_43 = arith.constant 0 : index
    %46 = vector.load %arg2[%c0_41, %c17_42, %c0_43] : memref<1x112x128xbf16, #tpu.memory_space<vmem>>, vector<1x80x128xbf16>
    %47 = vector.shape_cast %46 : vector<1x80x128xbf16> to vector<80x128xbf16>
    %48 = arith.addf %45, %47 : vector<80x128xbf16>
    %c5_44 = arith.constant 5 : index
    %c0_45 = arith.constant 0 : index
    %c0_46 = arith.constant 0 : index
    %49 = vector.load %arg3[%c5_44, %c0_45, %c0_46] : memref<9x128x128xbf16, #tpu.memory_space<vmem>>, vector<1x128x128xbf16>
    %50 = vector.shape_cast %49 : vector<1x128x128xbf16> to vector<128x128xbf16>
    %cst_47 = arith.constant dense<0.000000e+00> : vector<80x128xf32>
    %51 = tpu.matmul %48, %50, %cst_47 {dimension_numbers = #tpu.dot_dimension_numbers<[1], [0], [0], [1], [0, 0, 1, 1], [], []>} : vector<80x128xbf16>, vector<128x128xbf16>, vector<80x128xf32> -> vector<80x128xf32>
    %52 = arith.addf %43, %51 : vector<80x128xf32>
    %c0_48 = arith.constant 0 : index
    %c25 = arith.constant 25 : index
    %c0_49 = arith.constant 0 : index
    %53 = vector.load %arg1[%c0_48, %c25, %c0_49] : memref<1x112x128xbf16, #tpu.memory_space<vmem>>, vector<1x80x128xbf16>
    %54 = vector.shape_cast %53 : vector<1x80x128xbf16> to vector<80x128xbf16>
    %c0_50 = arith.constant 0 : index
    %c25_51 = arith.constant 25 : index
    %c0_52 = arith.constant 0 : index
    %55 = vector.load %arg2[%c0_50, %c25_51, %c0_52] : memref<1x112x128xbf16, #tpu.memory_space<vmem>>, vector<1x80x128xbf16>
    %56 = vector.shape_cast %55 : vector<1x80x128xbf16> to vector<80x128xbf16>
    %57 = arith.addf %54, %56 : vector<80x128xbf16>
    %c6_53 = arith.constant 6 : index
    %c0_54 = arith.constant 0 : index
    %c0_55 = arith.constant 0 : index
    %58 = vector.load %arg3[%c6_53, %c0_54, %c0_55] : memref<9x128x128xbf16, #tpu.memory_space<vmem>>, vector<1x128x128xbf16>
    %59 = vector.shape_cast %58 : vector<1x128x128xbf16> to vector<128x128xbf16>
    %cst_56 = arith.constant dense<0.000000e+00> : vector<80x128xf32>
    %60 = tpu.matmul %57, %59, %cst_56 {dimension_numbers = #tpu.dot_dimension_numbers<[1], [0], [0], [1], [0, 0, 1, 1], [], []>} : vector<80x128xbf16>, vector<128x128xbf16>, vector<80x128xf32> -> vector<80x128xf32>
    %61 = arith.addf %52, %60 : vector<80x128xf32>
    %c0_57 = arith.constant 0 : index
    %c26 = arith.constant 26 : index
    %c0_58 = arith.constant 0 : index
    %62 = vector.load %arg1[%c0_57, %c26, %c0_58] : memref<1x112x128xbf16, #tpu.memory_space<vmem>>, vector<1x80x128xbf16>
    %63 = vector.shape_cast %62 : vector<1x80x128xbf16> to vector<80x128xbf16>
    %c0_59 = arith.constant 0 : index
    %c26_60 = arith.constant 26 : index
    %c0_61 = arith.constant 0 : index
    %64 = vector.load %arg2[%c0_59, %c26_60, %c0_61] : memref<1x112x128xbf16, #tpu.memory_space<vmem>>, vector<1x80x128xbf16>
    %65 = vector.shape_cast %64 : vector<1x80x128xbf16> to vector<80x128xbf16>
    %66 = arith.addf %63, %65 : vector<80x128xbf16>
    %c7_62 = arith.constant 7 : index
    %c0_63 = arith.constant 0 : index
    %c0_64 = arith.constant 0 : index
    %67 = vector.load %arg3[%c7_62, %c0_63, %c0_64] : memref<9x128x128xbf16, #tpu.memory_space<vmem>>, vector<1x128x128xbf16>
    %68 = vector.shape_cast %67 : vector<1x128x128xbf16> to vector<128x128xbf16>
    %cst_65 = arith.constant dense<0.000000e+00> : vector<80x128xf32>
    %69 = tpu.matmul %66, %68, %cst_65 {dimension_numbers = #tpu.dot_dimension_numbers<[1], [0], [0], [1], [0, 0, 1, 1], [], []>} : vector<80x128xbf16>, vector<128x128xbf16>, vector<80x128xf32> -> vector<80x128xf32>
    %70 = arith.addf %61, %69 : vector<80x128xf32>
    %c0_66 = arith.constant 0 : index
    %c27 = arith.constant 27 : index
    %c0_67 = arith.constant 0 : index
    %71 = vector.load %arg1[%c0_66, %c27, %c0_67] : memref<1x112x128xbf16, #tpu.memory_space<vmem>>, vector<1x80x128xbf16>
    %72 = vector.shape_cast %71 : vector<1x80x128xbf16> to vector<80x128xbf16>
    %c0_68 = arith.constant 0 : index
    %c27_69 = arith.constant 27 : index
    %c0_70 = arith.constant 0 : index
    %73 = vector.load %arg2[%c0_68, %c27_69, %c0_70] : memref<1x112x128xbf16, #tpu.memory_space<vmem>>, vector<1x80x128xbf16>
    %74 = vector.shape_cast %73 : vector<1x80x128xbf16> to vector<80x128xbf16>
    %75 = arith.addf %72, %74 : vector<80x128xbf16>
    %c8 = arith.constant 8 : index
    %c0_71 = arith.constant 0 : index
    %c0_72 = arith.constant 0 : index
    %76 = vector.load %arg3[%c8, %c0_71, %c0_72] : memref<9x128x128xbf16, #tpu.memory_space<vmem>>, vector<1x128x128xbf16>
    %77 = vector.shape_cast %76 : vector<1x128x128xbf16> to vector<128x128xbf16>
    %cst_73 = arith.constant dense<0.000000e+00> : vector<80x128xf32>
    %78 = tpu.matmul %75, %77, %cst_73 {dimension_numbers = #tpu.dot_dimension_numbers<[1], [0], [0], [1], [0, 0, 1, 1], [], []>} : vector<80x128xbf16>, vector<128x128xbf16>, vector<80x128xf32> -> vector<80x128xf32>
    %79 = arith.addf %70, %78 : vector<80x128xf32>
    %c0_74 = arith.constant 0 : index
    %c0_75 = arith.constant 0 : index
    %80 = vector.load %arg4[%c0_74, %c0_75] : memref<1x128xf32, #tpu.memory_space<vmem>>, vector<1x128xf32>
    %81 = vector.broadcast %80 : vector<1x128xf32> to vector<80x128xf32>
    %82 = arith.addf %79, %81 : vector<80x128xf32>
    %cst_76 = arith.constant 0.000000e+00 : f32
    %83 = vector.broadcast %cst_76 : f32 to vector<80x128xf32>
    %84 = arith.maximumf %82, %83 : vector<80x128xf32>
    %c0_77 = arith.constant 0 : index
    %c0_78 = arith.constant 0 : index
    %85 = vector.load %arg5[%c0_77, %c0_78] : memref<80x1xf32, #tpu.memory_space<vmem>>, vector<80x1xf32>
    %86 = vector.broadcast %85 : vector<80x1xf32> to vector<80x128xf32>
    %87 = arith.mulf %84, %86 : vector<80x128xf32>
    %cst_79 = arith.constant 0.000000e+00 : bf16
    %88 = vector.broadcast %cst_79 : bf16 to vector<112x128xbf16>
    %c0_80 = arith.constant 0 : index
    %c0_81 = arith.constant 0 : index
    %c0_82 = arith.constant 0 : index
    %89 = vector.load %arg6[%c0_80, %c0_81, %c0_82] : memref<1x112x128xbf16, #tpu.memory_space<vmem>>, vector<1x112x128xbf16>
    %90 = vector.shape_cast %89 : vector<1x112x128xbf16> to vector<112x128xbf16>
    %91 = vector.shape_cast %88 : vector<112x128xbf16> to vector<1x112x128xbf16>
    tpu.vector_store %arg6[%c0_80, %c0_81, %c0_82], %91 {strides = array<i32>} : memref<1x112x128xbf16, #tpu.memory_space<vmem>>, vector<1x112x128xbf16>,
    %92 = arith.truncf %87 : vector<80x128xf32> to vector<80x128xbf16>
    %c0_83 = arith.constant 0 : index
    %c16_84 = arith.constant 16 : index
    %c0_85 = arith.constant 0 : index
    %93 = vector.load %arg6[%c0_83, %c16_84, %c0_85] : memref<1x112x128xbf16, #tpu.memory_space<vmem>>, vector<1x80x128xbf16>
    %94 = vector.shape_cast %93 : vector<1x80x128xbf16> to vector<80x128xbf16>
    %95 = vector.shape_cast %92 : vector<80x128xbf16> to vector<1x80x128xbf16>
    tpu.vector_store %arg6[%c0_83, %c16_84, %c0_85], %95 {strides = array<i32>} : memref<1x112x128xbf16, #tpu.memory_space<vmem>>, vector<1x80x128xbf16>,
    return
  }
  func.func @transform_0(%arg0: i32) -> (i32, i32, i32) {
    %c0_i32 = arith.constant 0 : i32
    %c0_i32_0 = arith.constant 0 : i32
    %c0_i32_1 = arith.constant 0 : i32
    return %arg0, %c0_i32, %c0_i32_0 : i32, i32, i32
  }
  func.func @transform_1(%arg0: i32) -> (i32, i32, i32) {
    %c0_i32 = arith.constant 0 : i32
    %c0_i32_0 = arith.constant 0 : i32
    %c0_i32_1 = arith.constant 0 : i32
    return %arg0, %c0_i32, %c0_i32_0 : i32, i32, i32
  }
  func.func @transform_2(%arg0: i32) -> (i32, i32, i32) {
    %c0_i32 = arith.constant 0 : i32
    %c0_i32_0 = arith.constant 0 : i32
    %c0_i32_1 = arith.constant 0 : i32
    %c0_i32_2 = arith.constant 0 : i32
    return %c0_i32, %c0_i32_0, %c0_i32_1 : i32, i32, i32
  }
  func.func @transform_3(%arg0: i32) -> (i32, i32) {
    %c0_i32 = arith.constant 0 : i32
    %c0_i32_0 = arith.constant 0 : i32
    %c0_i32_1 = arith.constant 0 : i32
    return %c0_i32, %c0_i32_0 : i32, i32
  }
  func.func @transform_4(%arg0: i32) -> (i32, i32) {
    %c0_i32 = arith.constant 0 : i32
    %c0_i32_0 = arith.constant 0 : i32
    %c0_i32_1 = arith.constant 0 : i32
    return %c0_i32, %c0_i32_0 : i32, i32
  }
  func.func @transform_5(%arg0: i32) -> (i32, i32, i32) {
    %c0_i32 = arith.constant 0 : i32
    %c0_i32_0 = arith.constant 0 : i32
    %c0_i32_1 = arith.constant 0 : i32
    return %arg0, %c0_i32, %c0_i32_0 : i32, i32, i32
  }
}

</mosaic_0001>

<llo_original>
// kernel: encode_block_forward.7
$region0: #{encode_block_forward.7}
  #allocation0 [shape = 'u32[]', space=smem, size = 0x4, offset = 0x4, fixed_abs, tag = 'smem constant byte address 0x4 - core index']
  #allocation1 [shape = 'u32[72,128]{1,0:T(1,128)}', space=vmem, size = 0x9000, scoped, tag = 'internal scratch']
  %s0 = inlined_call_operand.vmem [shape: bf16[128,36], index: 0, kind: input, shape index: {}]
  %s1 = inlined_call_operand.vmem [shape: bf16[36,128], index: 1, kind: input, shape index: {}]
  %s2 = inlined_call_operand.vmem [shape: f32[1,128], index: 2, kind: input, shape index: {}]
  %s3 = inlined_call_operand.vmem [shape: bf16[128,128], index: 3, kind: output, shape index: {}]
  %s4 = sld [smem:[#allocation0]]
  $region45: #{encode_block_forward.7} parent=0
    _
  %s6 = ssub.s32 1, %s4
  %s7 = scalar_select 0, %s6, %s4
  loop: start=0, step=1, limit=4
  $region2: #{encode_block_forward.7} parent=0 // loop_pre_header
    _
  $region3: #{encode_block_forward.7} parent=0 // loop_header
    %s9 = sphi 0, %s13
    %p10 = scmp.ge.s32.totalorder %s9, 4
    %s19 = sphi 0, %s21
    %s22 = sphi 0, %s19
    %s23 = sphi 0, %s22
    %s39 = sphi 0, %s23
    %s43 = sphi 0, %s43
    %s45 = sphi 0, %s43
    %s46 = sphi 0, %s45
    %s60 = sphi 0, %s46
    %s64 = sphi 0, %s64
    %s66 = sphi 0, %s64
    %s67 = sphi 0, %s66
    %s81 = sphi 0, %s67
    %s87 = sphi 0, %s89
    %s90 = sphi 0, %s87
    %s91 = sphi 0, %s90
    %s107 = sphi 0, %s91
  $region4: #{encode_block_forward.7} parent=0 // loop_header_branch
    %12 = sbr.rel (%p10) target = $region8
  $region5: #{encode_block_forward.7} parent=0 // loop_body
    %s14 = ssub.s32 %s9, 1
    %s15 = ssub.s32 %s9, 2
    %s16 = sadd.s32 %s9, 1
    %s17 = ssub.s32 %s9, %s16
    %p18 = scmp.eq.s32.totalorder %s17, 0
    %s20 = sadd.s32 %s19, 1
    %s21 = scalar_select %p18, %s19, %s20
    %p24 = pneg %p18
    %p25 = scmp.eq.s32.totalorder %s9, 1
    %p26 = por %p24, %p25
    %p27 = scmp.ne.s32.totalorder %s19, %s22
    %p28 = scmp.eq.s32.totalorder %s9, 0
    %p29 = por %p27, %p28
    %p30 = scmp.ne.s32.totalorder %s19, %s22
    %p31 = scmp.eq.s32.totalorder %s14, 1
    %p32 = por %p30, %p31
    %p33 = scmp.ne.s32.totalorder %s22, %s23
    %p34 = scmp.eq.s32.totalorder %s14, 0
    %p35 = por %p33, %p34
    %p36 = scmp.ne.s32.totalorder %s22, %s23
    %p37 = scmp.eq.s32.totalorder %s15, 1
    %p38 = por %p36, %p37
    %p40 = scmp.ne.s32.totalorder %s23, %s39
    %p41 = scmp.eq.s32.totalorder %s15, 0
    %p42 = por %p40, %p41
    %s44 = sadd.s32 %s43, 1
    %p47 = scmp.eq.s32.totalorder %s9, 1
    %p48 = scmp.ne.s32.totalorder %s43, %s45
    %p49 = scmp.eq.s32.totalorder %s9, 0
    %p50 = por %p48, %p49
    %p51 = scmp.ne.s32.totalorder %s43, %s45
    %p52 = scmp.eq.s32.totalorder %s14, 1
    %p53 = por %p51, %p52
    %p54 = scmp.ne.s32.totalorder %s45, %s46
    %p55 = scmp.eq.s32.totalorder %s14, 0
    %p56 = por %p54, %p55
    %p57 = scmp.ne.s32.totalorder %s45, %s46
    %p58 = scmp.eq.s32.totalorder %s15, 1
    %p59 = por %p57, %p58
    %p61 = scmp.ne.s32.totalorder %s46, %s60
    %p62 = scmp.eq.s32.totalorder %s15, 0
    %p63 = por %p61, %p62
    %s65 = sadd.s32 %s64, 1
    %p68 = scmp.eq.s32.totalorder %s9, 1
    %p69 = scmp.ne.s32.totalorder %s64, %s66
    %p70 = scmp.eq.s32.totalorder %s9, 0
    %p71 = por %p69, %p70
    %p72 = scmp.ne.s32.totalorder %s64, %s66
    %p73 = scmp.eq.s32.totalorder %s14, 1
    %p74 = por %p72, %p73
    %p75 = scmp.ne.s32.totalorder %s66, %s67
    %p76 = scmp.eq.s32.totalorder %s14, 0
    %p77 = por %p75, %p76
    %p78 = scmp.ne.s32.totalorder %s66, %s67
    %p79 = scmp.eq.s32.totalorder %s15, 1
    %p80 = por %p78, %p79
    %p82 = scmp.ne.s32.totalorder %s67, %s81
    %p83 = scmp.eq.s32.totalorder %s15, 0
    %p84 = por %p82, %p83
    %s85 = ssub.s32 %s9, %s16
    %p86 = scmp.eq.s32.totalorder %s85, 0
    %s88 = sadd.s32 %s87, 1
    %s89 = scalar_select %p86, %s87, %s88
    %p92 = pneg %p86
    %p93 = scmp.eq.s32.totalorder %s9, 1
    %p94 = por %p92, %p93
    %p95 = scmp.ne.s32.totalorder %s87, %s90
    %p96 = scmp.eq.s32.totalorder %s9, 0
    %p97 = por %p95, %p96
    %p98 = scmp.ne.s32.totalorder %s87, %s90
    %p99 = scmp.eq.s32.totalorder %s14, 1
    %p100 = por %p98, %p99
    %p101 = scmp.ne.s32.totalorder %s90, %s91
    %p102 = scmp.eq.s32.totalorder %s14, 0
    %p103 = por %p101, %p102
    %p104 = scmp.ne.s32.totalorder %s90, %s91
    %p105 = scmp.eq.s32.totalorder %s15, 1
    %p106 = por %p104, %p105
    %p108 = scmp.ne.s32.totalorder %s91, %s107
    %p109 = scmp.eq.s32.totalorder %s15, 0
    %p110 = por %p108, %p109
    %p111 = scmp.le.s32.totalorder 1, %s9
    %p112 = scmp.lt.s32.totalorder %s9, 3
    %p113 = pnand %p111, %p112
    %p114 = pneg %p113
    // Predicated region
    $region9: #{encode_block_forward.7} parent=5 // pred_check
      _
    $region10: #{encode_block_forward.7} parent=5 // pred_check_branch
      %116 = sbr.rel (%p113) target = $region12
    $region11: #{encode_block_forward.7} parent=5 // pred_region
      %s117 = ssub.s32 %s9, 1
      // Predicated region
      $region13: #{encode_block_forward.7} parent=11 // pred_check
        %p118 = pneg %p56
      $region14: #{encode_block_forward.7} parent=11 // pred_check_branch
        %120 = sbr.rel (%p118) target = $region16
      $region15: #{encode_block_forward.7} parent=11 // pred_region
        _
      $region16: #{encode_block_forward.7} parent=11 // pred_fallthru
        _
      // Predicated region
      $region17: #{encode_block_forward.7} parent=11 // pred_check
        %p121 = pneg %p77
      $region18: #{encode_block_forward.7} parent=11 // pred_check_branch
        %123 = sbr.rel (%p121) target = $region20
      $region19: #{encode_block_forward.7} parent=11 // pred_region
        _
      $region20: #{encode_block_forward.7} parent=11 // pred_fallthru
        _
    $region12: #{encode_block_forward.7} parent=5 // pred_fallthru
      _
    %p124 = scmp.lt.s32.totalorder %s9, 2
    // Predicated region
    $region21: #{encode_block_forward.7} parent=5 // pred_check
      %p125 = pneg %p124
    $region22: #{encode_block_forward.7} parent=5 // pred_check_branch
      %127 = sbr.rel (%p125) target = $region24
    $region23: #{encode_block_forward.7} parent=5 // pred_region
      // Predicated region
      $region25: #{encode_block_forward.7} parent=23 // pred_check
        %p128 = pneg %p29
      $region26: #{encode_block_forward.7} parent=23 // pred_check_branch
        %130 = sbr.rel (%p128) target = $region28
      $region27: #{encode_block_forward.7} parent=23 // pred_region
        %s131 = smul.u32 8, %s9
        %p132 = scmp.lt.s32.totalorder %s131, 15
        %s133 = scalar_select %p132, %s131, 15
        %s134 = smul.addr %s133, 4
        %s135 = scalar_lea.vmem %s0, %s134
        %s136 = smul.u32 8, %s9
      $region28: #{encode_block_forward.7} parent=23 // pred_fallthru
        _
    $region24: #{encode_block_forward.7} parent=5 // pred_fallthru
      _
    %p137 = scmp.le.s32.totalorder 1, %s9
    %p138 = scmp.lt.s32.totalorder %s9, 3
    %p139 = pnand %p137, %p138
    %p140 = pneg %p139
    // Predicated region
    $region29: #{encode_block_forward.7} parent=5 // pred_check
      _
    $region30: #{encode_block_forward.7} parent=5 // pred_check_branch
      %142 = sbr.rel (%p139) target = $region32
    $region31: #{encode_block_forward.7} parent=5 // pred_region
      %s143 = ssub.s32 %s9, 1
      %s144 = smul.u32 8, %s14
      %p145 = scmp.lt.s32.totalorder %s144, 15
      %s146 = scalar_select %p145, %s144, 15
      %s147 = smul.addr %s146, 4
      %s148 = scalar_lea.vmem %s0, %s147
      %p149 = pneg %p35
      %p150 = pneg %p32
      %p151 = pneg %p56
      %p152 = pneg %p53
      %p153 = pneg %p77
      %p154 = pneg %p74
      %p155 = pneg %p103
      %p156 = pneg %p100
      %s157 = smul.u32 8, %s14
      %p158 = scmp.lt.s32.totalorder %s157, 15
      %s159 = scalar_select %p158, %s157, 15
      %s160 = smul.addr %s159, 4
      %s161 = scalar_lea.vmem %s3, %s160
      %s162 = smul.u32 8, %s14
      %p163 = scmp.lt.s32.totalorder %s162, 15
      %s164 = scalar_select %p163, %s162, 15
      %s165 = smul.addr %s164, 4
      %s166 = scalar_lea.vmem %s0, %s165
      %s167 = smul.u32 8, %s14
      %s168 = smul.u32 8, %s14
      %p169 = scmp.lt.s32.totalorder %s168, 15
      %s170 = scalar_select %p169, %s168, 15
      %s171 = smul.addr %s170, 4
      %s172 = scalar_lea.vmem %s3, %s171
      %s173 = smul.u32 8, %s14
      %v175 = vld [vmem:[%s166] sm:$0xf]
      %v176 = vld [vmem:[%s166 + $0x4] sm:$0xf]
      %v177 = vld [vmem:[%s166 + $0x8] sm:$0xf]
      %v178 = vld [vmem:[%s166 + $0xc] sm:$0xf]
      %v179 = vld [vmem:[%s166 + $0x10] sm:$0xf]
      %v180 = vld [vmem:[%s166 + $0x14] sm:$0xf]
      %v181 = vld [vmem:[%s166 + $0x18] sm:$0xf]
      %v182 = vld [vmem:[%s166 + $0x1c] sm:$0xf]
      %v183 = vld [vmem:[%s1] sm:$0xf]
      %v184 = vld [vmem:[%s1 + $0x4] sm:$0xf]
      %v185 = vld [vmem:[%s1 + $0x8] sm:$0xf]
      %v186 = vld [vmem:[%s1 + $0xc] sm:$0xf]
      %v187 = vld [vmem:[%s1 + $0x10] sm:$0x3]
      %v188 = vld [vmem:[%s2] sm:$0x1]
      %v190 = vperm.slane %v188, 0
      %v200 = vunpack.c.l.b16 %v175
      %v201 = vunpack.c.l.b16 %v176
      %v202 = vunpack.c.l.b16 %v177
      %v203 = vunpack.c.l.b16 %v178
      %v204 = vunpack.c.l.b16 %v179
      %v205 = vunpack.c.l.b16 %v180
      %v206 = vunpack.c.l.b16 %v181
      %v207 = vunpack.c.l.b16 %v182
      %v208 = vpack.c.b16 %v201, %v200
      %v209 = vpack.c.b16 %v203, %v202
      %v210 = vpack.c.b16 %v205, %v204
      %v211 = vpack.c.b16 %v207, %v206
      %v217 = vunpack.c.l.b16 %v183
      %v218 = vunpack.c.l.b16 %v184
      %v219 = vunpack.c.l.b16 %v185
      %v220 = vunpack.c.l.b16 %v186
      %v221 = vunpack.c.l.b16 %v187
      %v222 = vpack.c.b16 %v218, %v217
      %v223 = vpack.c.b16 %v220, %v219
      %v224 = vpack.c.b16 %v221, %v221
      %vm227 = vcmask 293888
      %v229 = vsel %vm227, %v208, 0
      %v232 = vsel %vm227, %v209, 0
      %v235 = vsel %vm227, %v210, 0
      %v238 = vsel %vm227, %v211, 0
      %vm240 = vcmask 1041408
      %v242 = vsel %vm240, %v224, 0
      %244 = vmatpush.bf16.msra.mxu0 0
      %245 = vmatpush.bf16.msra.mxu0 0
      %246 = vmatpush.bf16.msra.mxu0 0
      %247 = vmatpush.bf16.msra.mxu0 0
      %248 = vmatpush.bf16.msra.mxu0 0
      %249 = vmatpush.bf16.msra.mxu0 %v242
      %250 = vmatpush.bf16.msra.mxu0 %v223
      %251 = vmatpush.bf16.msra.mxu0 %v222
      %252 = vmatmul.bf16.gmra.mxu0 %v229
      %v253 = vpop.f32.mrf.mxu0
      %v254 = vadd.f32 %v190, %v253
      %v255 = vpop.f32.mrf.mxu0
      %v256 = vadd.f32 %v190, %v255
      %257 = vmatmul.bf16.gmra.mxu0 %v232
      %v258 = vpop.f32.mrf.mxu0
      %v259 = vadd.f32 %v190, %v258
      %v260 = vpop.f32.mrf.mxu0
      %v261 = vadd.f32 %v190, %v260
      %262 = vmatmul.bf16.gmra.mxu0 %v235
      %v263 = vpop.f32.mrf.mxu0
      %v264 = vadd.f32 %v190, %v263
      %v265 = vpop.f32.mrf.mxu0
      %v266 = vadd.f32 %v190, %v265
      %267 = vmatmul.bf16.gmra.mxu0 %v238
      %v268 = vpop.f32.mrf.mxu0
      %v269 = vadd.f32 %v190, %v268
      %v270 = vpop.f32.mrf.mxu0
      %v271 = vadd.f32 %v190, %v270
      %272 = vdwg.mxu0
      %v273 = vmax.f32 %v254, 0.0
      %v274 = vmax.f32 %v256, 0.0
      %v275 = vmax.f32 %v259, 0.0
      %v276 = vmax.f32 %v261, 0.0
      %v277 = vmax.f32 %v264, 0.0
      %v278 = vmax.f32 %v266, 0.0
      %v279 = vmax.f32 %v269, 0.0
      %v280 = vmax.f32 %v271, 0.0
      %v281 = vpack.c.bf16 %v273, %v273
      %v282 = vpack.c.bf16 %v274, %v274
      %v283 = vpack.c.bf16 %v275, %v275
      %v284 = vpack.c.bf16 %v276, %v276
      %v285 = vpack.c.bf16 %v277, %v277
      %v286 = vpack.c.bf16 %v278, %v278
      %v287 = vpack.c.bf16 %v279, %v279
      %v288 = vpack.c.bf16 %v280, %v280
      %289 = vst [vmem:[%s172] sm:$0xf] %v281
      %290 = vst [vmem:[%s172 + $0x4] sm:$0xf] %v282
      %291 = vst [vmem:[%s172 + $0x8] sm:$0xf] %v283
      %292 = vst [vmem:[%s172 + $0xc] sm:$0xf] %v284
      %293 = vst [vmem:[%s172 + $0x10] sm:$0xf] %v285
      %294 = vst [vmem:[%s172 + $0x14] sm:$0xf] %v286
      %295 = vst [vmem:[%s172 + $0x18] sm:$0xf] %v287
      %296 = vst [vmem:[%s172 + $0x1c] sm:$0xf] %v288
      %s297 = smul.u32 8, %s14
      %p298 = scmp.lt.s32.totalorder %s297, 15
      %s299 = scalar_select %p298, %s297, 15
      %s300 = smul.addr %s299, 4
      %s301 = scalar_lea.vmem %s3, %s300
      // Predicated region
      $region33: #{encode_block_forward.7} parent=31 // pred_check
        %p302 = pneg %p100
      $region34: #{encode_block_forward.7} parent=31 // pred_check_branch
        %304 = sbr.rel (%p302) target = $region36
      $region35: #{encode_block_forward.7} parent=31 // pred_region
        %s305 = smul.u32 8, %s14
      $region36: #{encode_block_forward.7} parent=31 // pred_fallthru
        _
    $region32: #{encode_block_forward.7} parent=5 // pred_fallthru
      _
    %p306 = scmp.le.s32.totalorder 2, %s9
    // Predicated region
    $region37: #{encode_block_forward.7} parent=5 // pred_check
      %p307 = pneg %p306
    $region38: #{encode_block_forward.7} parent=5 // pred_check_branch
      %309 = sbr.rel (%p307) target = $region40
    $region39: #{encode_block_forward.7} parent=5 // pred_region
      %s310 = ssub.s32 %s9, 2
      // Predicated region
      $region41: #{encode_block_forward.7} parent=39 // pred_check
        %p311 = pneg %p106
      $region42: #{encode_block_forward.7} parent=39 // pred_check_branch
        %313 = sbr.rel (%p311) target = $region44
      $region43: #{encode_block_forward.7} parent=39 // pred_region
        %s314 = smul.u32 8, %s15
        %p315 = scmp.lt.s32.totalorder %s314, 15
        %s316 = scalar_select %p315, %s314, 15
        %s317 = smul.addr %s316, 4
        %s318 = scalar_lea.vmem %s3, %s317
      $region44: #{encode_block_forward.7} parent=39 // pred_fallthru
        _
    $region40: #{encode_block_forward.7} parent=5 // pred_fallthru
      _
  $region6: #{encode_block_forward.7} parent=0 // loop_footer
    %s13 = sadd.s32 1, %s9
  $region7: #{encode_block_forward.7} parent=0 // loop_footer_branch
    %8 = sbr.rel target = $region3
  $region8: #{encode_block_forward.7} parent=0 // loop_exit
    _

// kernel: encode_block_forward.9
$region0: #{encode_block_forward.9}
  #allocation0 [shape = 'u32[]', space=smem, size = 0x4, offset = 0x4, fixed_abs, tag = 'smem constant byte address 0x4 - core index']
  #allocation1 [shape = 'u32[72,128]{1,0:T(1,128)}', space=vmem, size = 0x9000, scoped, tag = 'internal scratch']
  %s0 = inlined_call_operand.vmem [shape: bf16[2,112,128], index: 0, kind: input, shape index: {}]
  %s1 = inlined_call_operand.vmem [shape: bf16[9,128,128], index: 1, kind: input, shape index: {}]
  %s2 = inlined_call_operand.vmem [shape: f32[1,128], index: 2, kind: input, shape index: {}]
  %s3 = inlined_call_operand.vmem [shape: f32[80,1], index: 3, kind: input, shape index: {}]
  %s4 = inlined_call_operand.vmem [shape: bf16[2,112,128], index: 4, kind: input, shape index: {}]
  %s5 = inlined_call_operand.vmem [shape: bf16[2,112,128], index: 5, kind: output, shape index: {}]
  %s6 = sld [smem:[#allocation0]]
  $region53: #{encode_block_forward.9} parent=0
    _
  %s8 = ssub.s32 1, %s6
  %s9 = scalar_select 0, %s8, %s6
  loop: start=0, step=1, limit=4
  $region2: #{encode_block_forward.9} parent=0 // loop_pre_header
    _
  $region3: #{encode_block_forward.9} parent=0 // loop_header
    %s11 = sphi 0, %s15
    %p12 = scmp.ge.s32.totalorder %s11, 4
    %s21 = sphi 0, %s23
    %s24 = sphi 0, %s21
    %s25 = sphi 0, %s24
    %s41 = sphi 0, %s25
    %s45 = sphi 0, %s45
    %s47 = sphi 0, %s45
    %s48 = sphi 0, %s47
    %s62 = sphi 0, %s48
    %s66 = sphi 0, %s66
    %s68 = sphi 0, %s66
    %s69 = sphi 0, %s68
    %s83 = sphi 0, %s69
    %s87 = sphi 0, %s87
    %s89 = sphi 0, %s87
    %s90 = sphi 0, %s89
    %s104 = sphi 0, %s90
    %s110 = sphi 0, %s112
    %s113 = sphi 0, %s110
    %s114 = sphi 0, %s113
    %s130 = sphi 0, %s114
    %s136 = sphi 0, %s138
    %s139 = sphi 0, %s136
    %s140 = sphi 0, %s139
    %s156 = sphi 0, %s140
  $region4: #{encode_block_forward.9} parent=0 // loop_header_branch
    %14 = sbr.rel (%p12) target = $region8
  $region5: #{encode_block_forward.9} parent=0 // loop_body
    %s16 = ssub.s32 %s11, 1
    %s17 = ssub.s32 %s11, 2
    %s18 = sadd.s32 %s11, 1
    %s19 = ssub.s32 %s11, %s18
    %p20 = scmp.eq.s32.totalorder %s19, 0
    %s22 = sadd.s32 %s21, 1
    %s23 = scalar_select %p20, %s21, %s22
    %p26 = pneg %p20
    %p27 = scmp.eq.s32.totalorder %s11, 1
    %p28 = por %p26, %p27
    %p29 = scmp.ne.s32.totalorder %s21, %s24
    %p30 = scmp.eq.s32.totalorder %s11, 0
    %p31 = por %p29, %p30
    %p32 = scmp.ne.s32.totalorder %s21, %s24
    %p33 = scmp.eq.s32.totalorder %s16, 1
    %p34 = por %p32, %p33
    %p35 = scmp.ne.s32.totalorder %s24, %s25
    %p36 = scmp.eq.s32.totalorder %s16, 0
    %p37 = por %p35, %p36
    %p38 = scmp.ne.s32.totalorder %s24, %s25
    %p39 = scmp.eq.s32.totalorder %s17, 1
    %p40 = por %p38, %p39
    %p42 = scmp.ne.s32.totalorder %s25, %s41
    %p43 = scmp.eq.s32.totalorder %s17, 0
    %p44 = por %p42, %p43
    %s46 = sadd.s32 %s45, 1
    %p49 = scmp.eq.s32.totalorder %s11, 1
    %p50 = scmp.ne.s32.totalorder %s45, %s47
    %p51 = scmp.eq.s32.totalorder %s11, 0
    %p52 = por %p50, %p51
    %p53 = scmp.ne.s32.totalorder %s45, %s47
    %p54 = scmp.eq.s32.totalorder %s16, 1
    %p55 = por %p53, %p54
    %p56 = scmp.ne.s32.totalorder %s47, %s48
    %p57 = scmp.eq.s32.totalorder %s16, 0
    %p58 = por %p56, %p57
    %p59 = scmp.ne.s32.totalorder %s47, %s48
    %p60 = scmp.eq.s32.totalorder %s17, 1
    %p61 = por %p59, %p60
    %p63 = scmp.ne.s32.totalorder %s48, %s62
    %p64 = scmp.eq.s32.totalorder %s17, 0
    %p65 = por %p63, %p64
    %s67 = sadd.s32 %s66, 1
    %p70 = scmp.eq.s32.totalorder %s11, 1
    %p71 = scmp.ne.s32.totalorder %s66, %s68
    %p72 = scmp.eq.s32.totalorder %s11, 0
    %p73 = por %p71, %p72
    %p74 = scmp.ne.s32.totalorder %s66, %s68
    %p75 = scmp.eq.s32.totalorder %s16, 1
    %p76 = por %p74, %p75
    %p77 = scmp.ne.s32.totalorder %s68, %s69
    %p78 = scmp.eq.s32.totalorder %s16, 0
    %p79 = por %p77, %p78
    %p80 = scmp.ne.s32.totalorder %s68, %s69
    %p81 = scmp.eq.s32.totalorder %s17, 1
    %p82 = por %p80, %p81
    %p84 = scmp.ne.s32.totalorder %s69, %s83
    %p85 = scmp.eq.s32.totalorder %s17, 0
    %p86 = por %p84, %p85
    %s88 = sadd.s32 %s87, 1
    %p91 = scmp.eq.s32.totalorder %s11, 1
    %p92 = scmp.ne.s32.totalorder %s87, %s89
    %p93 = scmp.eq.s32.totalorder %s11, 0
    %p94 = por %p92, %p93
    %p95 = scmp.ne.s32.totalorder %s87, %s89
    %p96 = scmp.eq.s32.totalorder %s16, 1
    %p97 = por %p95, %p96
    %p98 = scmp.ne.s32.totalorder %s89, %s90
    %p99 = scmp.eq.s32.totalorder %s16, 0
    %p100 = por %p98, %p99
    %p101 = scmp.ne.s32.totalorder %s89, %s90
    %p102 = scmp.eq.s32.totalorder %s17, 1
    %p103 = por %p101, %p102
    %p105 = scmp.ne.s32.totalorder %s90, %s104
    %p106 = scmp.eq.s32.totalorder %s17, 0
    %p107 = por %p105, %p106
    %s108 = ssub.s32 %s11, %s18
    %p109 = scmp.eq.s32.totalorder %s108, 0
    %s111 = sadd.s32 %s110, 1
    %s112 = scalar_select %p109, %s110, %s111
    %p115 = pneg %p109
    %p116 = scmp.eq.s32.totalorder %s11, 1
    %p117 = por %p115, %p116
    %p118 = scmp.ne.s32.totalorder %s110, %s113
    %p119 = scmp.eq.s32.totalorder %s11, 0
    %p120 = por %p118, %p119
    %p121 = scmp.ne.s32.totalorder %s110, %s113
    %p122 = scmp.eq.s32.totalorder %s16, 1
    %p123 = por %p121, %p122
    %p124 = scmp.ne.s32.totalorder %s113, %s114
    %p125 = scmp.eq.s32.totalorder %s16, 0
    %p126 = por %p124, %p125
    %p127 = scmp.ne.s32.totalorder %s113, %s114
    %p128 = scmp.eq.s32.totalorder %s17, 1
    %p129 = por %p127, %p128
    %p131 = scmp.ne.s32.totalorder %s114, %s130
    %p132 = scmp.eq.s32.totalorder %s17, 0
    %p133 = por %p131, %p132
    %s134 = ssub.s32 %s11, %s18
    %p135 = scmp.eq.s32.totalorder %s134, 0
    %s137 = sadd.s32 %s136, 1
    %s138 = scalar_select %p135, %s136, %s137
    %p141 = pneg %p135
    %p142 = scmp.eq.s32.totalorder %s11, 1
    %p143 = por %p141, %p142
    %p144 = scmp.ne.s32.totalorder %s136, %s139
    %p145 = scmp.eq.s32.totalorder %s11, 0
    %p146 = por %p144, %p145
    %p147 = scmp.ne.s32.totalorder %s136, %s139
    %p148 = scmp.eq.s32.totalorder %s16, 1
    %p149 = por %p147, %p148
    %p150 = scmp.ne.s32.totalorder %s139, %s140
    %p151 = scmp.eq.s32.totalorder %s16, 0
    %p152 = por %p150, %p151
    %p153 = scmp.ne.s32.totalorder %s139, %s140
    %p154 = scmp.eq.s32.totalorder %s17, 1
    %p155 = por %p153, %p154
    %p157 = scmp.ne.s32.totalorder %s140, %s156
    %p158 = scmp.eq.s32.totalorder %s17, 0
    %p159 = por %p157, %p158
    %p160 = scmp.le.s32.totalorder 1, %s11
    %p161 = scmp.lt.s32.totalorder %s11, 3
    %p162 = pnand %p160, %p161
    %p163 = pneg %p162
    // Predicated region
    $region9: #{encode_block_forward.9} parent=5 // pred_check
      _
    $region10: #{encode_block_forward.9} parent=5 // pred_check_branch
      %165 = sbr.rel (%p162) target = $region12
    $region11: #{encode_block_forward.9} parent=5 // pred_region
      %s166 = ssub.s32 %s11, 1
      // Predicated region
      $region13: #{encode_block_forward.9} parent=11 // pred_check
        %p167 = pneg %p58
      $region14: #{encode_block_forward.9} parent=11 // pred_check_branch
        %169 = sbr.rel (%p167) target = $region16
      $region15: #{encode_block_forward.9} parent=11 // pred_region
        _
      $region16: #{encode_block_forward.9} parent=11 // pred_fallthru
        _
      // Predicated region
      $region17: #{encode_block_forward.9} parent=11 // pred_check
        %p170 = pneg %p79
      $region18: #{encode_block_forward.9} parent=11 // pred_check_branch
        %172 = sbr.rel (%p170) target = $region20
      $region19: #{encode_block_forward.9} parent=11 // pred_region
        _
      $region20: #{encode_block_forward.9} parent=11 // pred_fallthru
        _
      // Predicated region
      $region21: #{encode_block_forward.9} parent=11 // pred_check
        %p173 = pneg %p100
      $region22: #{encode_block_forward.9} parent=11 // pred_check_branch
        %175 = sbr.rel (%p173) target = $region24
      $region23: #{encode_block_forward.9} parent=11 // pred_region
        _
      $region24: #{encode_block_forward.9} parent=11 // pred_fallthru
        _
    $region12: #{encode_block_forward.9} parent=5 // pred_fallthru
      _
    %p176 = scmp.lt.s32.totalorder %s11, 2
    // Predicated region
    $region25: #{encode_block_forward.9} parent=5 // pred_check
      %p177 = pneg %p176
    $region26: #{encode_block_forward.9} parent=5 // pred_check_branch
      %179 = sbr.rel (%p177) target = $region28
    $region27: #{encode_block_forward.9} parent=5 // pred_region
      // Predicated region
      $region29: #{encode_block_forward.9} parent=27 // pred_check
        %p180 = pneg %p31
      $region30: #{encode_block_forward.9} parent=27 // pred_check_branch
        %182 = sbr.rel (%p180) target = $region32
      $region31: #{encode_block_forward.9} parent=27 // pred_region
        %p183 = scmp.lt.s32.totalorder %s11, 1
        %s184 = scalar_select %p183, %s11, 1
        %s185 = smul.addr %s184, 14
        %s186 = smul.addr %s185, 4
        %s187 = scalar_lea.vmem %s0, %s186
      $region32: #{encode_block_forward.9} parent=27 // pred_fallthru
        _
      // Predicated region
      $region33: #{encode_block_forward.9} parent=27 // pred_check
        %p188 = pneg %p120
      $region34: #{encode_block_forward.9} parent=27 // pred_check_branch
        %190 = sbr.rel (%p188) target = $region36
      $region35: #{encode_block_forward.9} parent=27 // pred_region
        %p191 = scmp.lt.s32.totalorder %s11, 1
        %s192 = scalar_select %p191, %s11, 1
        %s193 = smul.addr %s192, 14
        %s194 = smul.addr %s193, 4
        %s195 = scalar_lea.vmem %s4, %s194
      $region36: #{encode_block_forward.9} parent=27 // pred_fallthru
        _
    $region28: #{encode_block_forward.9} parent=5 // pred_fallthru
      _
    %p196 = scmp.le.s32.totalorder 1, %s11
    %p197 = scmp.lt.s32.totalorder %s11, 3
    %p198 = pnand %p196, %p197
    %p199 = pneg %p198
    // Predicated region
    $region37: #{encode_block_forward.9} parent=5 // pred_check
      _
    $region38: #{encode_block_forward.9} parent=5 // pred_check_branch
      %201 = sbr.rel (%p198) target = $region40
    $region39: #{encode_block_forward.9} parent=5 // pred_region
      %s202 = ssub.s32 %s11, 1
      %p203 = scmp.lt.s32.totalorder %s16, 1
      %s204 = scalar_select %p203, %s16, 1
      %s205 = smul.addr %s204, 14
      %s206 = smul.addr %s205, 4
      %s207 = scalar_lea.vmem %s0, %s206
      %p208 = pneg %p37
      %p209 = pneg %p34
      %p210 = pneg %p58
      %p211 = pneg %p55
      %p212 = pneg %p79
      %p213 = pneg %p76
      %p214 = pneg %p100
      %p215 = pneg %p97
      %p216 = scmp.lt.s32.totalorder %s16, 1
      %s217 = scalar_select %p216, %s16, 1
      %s218 = smul.addr %s217, 14
      %s219 = smul.addr %s218, 4
      %s220 = scalar_lea.vmem %s4, %s219
      %p221 = pneg %p126
      %p222 = pneg %p123
      %p223 = pneg %p152
      %p224 = pneg %p149
      %p225 = scmp.lt.s32.totalorder %s16, 1
      %s226 = scalar_select %p225, %s16, 1
      %s227 = smul.addr %s226, 14
      %s228 = smul.addr %s227, 4
      %s229 = scalar_lea.vmem %s5, %s228
      %p230 = scmp.lt.s32.totalorder %s16, 1
      %s231 = scalar_select %p230, %s16, 1
      %s232 = smul.addr %s231, 14
      %s233 = smul.addr %s232, 4
      %s234 = scalar_lea.vmem %s0, %s233
      %p235 = scmp.lt.s32.totalorder %s16, 1
      %s236 = scalar_select %p235, %s16, 1
      %s237 = smul.addr %s236, 14
      %s238 = smul.addr %s237, 4
      %s239 = scalar_lea.vmem %s4, %s238
      %p240 = scmp.lt.s32.totalorder %s16, 1
      %s241 = scalar_select %p240, %s16, 1
      %s242 = smul.addr %s241, 14
      %s243 = smul.addr %s242, 4
      %s244 = scalar_lea.vmem %s5, %s243
      %v246 = vld [vmem:[%s234] sm:$0xc]
      %v247 = vld [vmem:[%s234 + $0x4] sm:$0xf]
      %v248 = vld [vmem:[%s234 + $0x8] sm:$0xf]
      %v249 = vld [vmem:[%s234 + $0xc] sm:$0xf]
      %v250 = vld [vmem:[%s234 + $0x10] sm:$0xf]
      %v251 = vld [vmem:[%s234 + $0x14] sm:$0xf]
      %v252 = vld [vmem:[%s234 + $0x18] sm:$0xf]
      %v253 = vld [vmem:[%s234 + $0x1c] sm:$0xf]
      %v254 = vld [vmem:[%s234 + $0x20] sm:$0xf]
      %v255 = vld [vmem:[%s234 + $0x24] sm:$0xf]
      %v256 = vld [vmem:[%s234 + $0x28] sm:$0x7]
      %v257 = vld [vmem:[%s1] sm:$0xf]
      %v258 = vld [vmem:[%s1 + $0x4] sm:$0xf]
      %v259 = vld [vmem:[%s1 + $0x8] sm:$0xf]
      %v260 = vld [vmem:[%s1 + $0xc] sm:$0xf]
      %v261 = vld [vmem:[%s1 + $0x10] sm:$0xf]
      %v262 = vld [vmem:[%s1 + $0x14] sm:$0xf]
      %v263 = vld [vmem:[%s1 + $0x18] sm:$0xf]
      %v264 = vld [vmem:[%s1 + $0x1c] sm:$0xf]
      %v265 = vld [vmem:[%s1 + $0x20] sm:$0xf]
      %v266 = vld [vmem:[%s1 + $0x24] sm:$0xf]
      %v267 = vld [vmem:[%s1 + $0x28] sm:$0xf]
      %v268 = vld [vmem:[%s1 + $0x2c] sm:$0xf]
      %v269 = vld [vmem:[%s1 + $0x30] sm:$0xf]
      %v270 = vld [vmem:[%s1 + $0x34] sm:$0xf]
      %v271 = vld [vmem:[%s1 + $0x38] sm:$0xf]
      %v272 = vld [vmem:[%s1 + $0x3c] sm:$0xf]
      %v273 = vld [vmem:[%s234] sm:$0x8]
      %s274 = scalar_lea.vmem %s1, 64
      %v275 = vld [vmem:[%s274] sm:$0xf]
      %v276 = vld [vmem:[%s274 + $0x4] sm:$0xf]
      %v277 = vld [vmem:[%s274 + $0x8] sm:$0xf]
      %v278 = vld [vmem:[%s274 + $0xc] sm:$0xf]
      %v279 = vld [vmem:[%s274 + $0x10] sm:$0xf]
      %v280 = vld [vmem:[%s274 + $0x14] sm:$0xf]
      %v281 = vld [vmem:[%s274 + $0x18] sm:$0xf]
      %v282 = vld [vmem:[%s274 + $0x1c] sm:$0xf]
      %v283 = vld [vmem:[%s274 + $0x20] sm:$0xf]
      %v284 = vld [vmem:[%s274 + $0x24] sm:$0xf]
      %v285 = vld [vmem:[%s274 + $0x28] sm:$0xf]
      %v286 = vld [vmem:[%s274 + $0x2c] sm:$0xf]
      %v287 = vld [vmem:[%s274 + $0x30] sm:$0xf]
      %v288 = vld [vmem:[%s274 + $0x34] sm:$0xf]
      %v289 = vld [vmem:[%s274 + $0x38] sm:$0xf]
      %v290 = vld [vmem:[%s274 + $0x3c] sm:$0xf]
      %v302 = vunpack.c.l.b16 %v273
      %v303 = vunpack.c.l.b16 %v247
      %v304 = vunpack.c.l.b16 %v248
      %v305 = vunpack.c.l.b16 %v249
      %v306 = vunpack.c.l.b16 %v250
      %v307 = vunpack.c.l.b16 %v251
      %v308 = vunpack.c.l.b16 %v252
      %v309 = vunpack.c.l.b16 %v253
      %v310 = vunpack.c.l.b16 %v254
      %v311 = vunpack.c.l.b16 %v255
      %v312 = vunpack.c.l.b16 %v256
      %v313 = vpack.c.b16 %v303, %v302
      %v314 = vpack.c.b16 %v305, %v304
      %v315 = vpack.c.b16 %v307, %v306
      %v316 = vpack.c.b16 %v309, %v308
      %v317 = vpack.c.b16 %v311, %v310
      %v318 = vpack.c.b16 %v312, %v312
      %vm319 = vcmask 1044480
      %v320 = vrot.slane %v313, 3
      %v321 = vrot.slane %v314, 3
      %v322 = vsel %vm319, %v320, %v321
      %v323 = vrot.slane %v315, 3
      %v324 = vsel %vm319, %v321, %v323
      %v325 = vrot.slane %v316, 3
      %v326 = vsel %vm319, %v323, %v325
      %v327 = vrot.slane %v317, 3
      %v328 = vsel %vm319, %v325, %v327
      %v329 = vrot.slane %v318, 3
      %v330 = vsel %vm319, %v327, %v329
      %v352 = vunpack.c.l.b16 %v275
      %v353 = vunpack.c.l.b16 %v276
      %v354 = vunpack.c.l.b16 %v277
      %v355 = vunpack.c.l.b16 %v278
      %v356 = vunpack.c.l.b16 %v279
      %v357 = vunpack.c.l.b16 %v280
      %v358 = vunpack.c.l.b16 %v281
      %v359 = vunpack.c.l.b16 %v282
      %v360 = vunpack.c.l.b16 %v283
      %v361 = vunpack.c.l.b16 %v284
      %v362 = vunpack.c.l.b16 %v285
      %v363 = vunpack.c.l.b16 %v286
      %v364 = vunpack.c.l.b16 %v287
      %v365 = vunpack.c.l.b16 %v288
      %v366 = vunpack.c.l.b16 %v289
      %v367 = vunpack.c.l.b16 %v290
      %v368 = vpack.c.b16 %v353, %v352
      %v369 = vpack.c.b16 %v355, %v354
      %v370 = vpack.c.b16 %v357, %v356
      %v371 = vpack.c.b16 %v359, %v358
      %v372 = vpack.c.b16 %v361, %v360
      %v373 = vpack.c.b16 %v363, %v362
      %v374 = vpack.c.b16 %v365, %v364
      %v375 = vpack.c.b16 %v367, %v366
      %384 = vmatpush.bf16.msra.mxu0 %v375
      %385 = vmatpush.bf16.msra.mxu0 %v374
      %386 = vmatpush.bf16.msra.mxu0 %v373
      %387 = vmatpush.bf16.msra.mxu0 %v372
      %388 = vmatpush.bf16.msra.mxu0 %v371
      %389 = vmatpush.bf16.msra.mxu0 %v370
      %390 = vmatpush.bf16.msra.mxu0 %v369
      %391 = vmatpush.bf16.msra.mxu0 %v368
      %392 = vmatmul.bf16.gmra.mxu0 %v322
      %v393 = vpop.f32.mrf.mxu0
      %v394 = vadd.f32 0.0, %v393
      %v395 = vpop.f32.mrf.mxu0
      %v396 = vadd.f32 0.0, %v395
      %397 = vmatmul.bf16.gmra.mxu0 %v324
      %v398 = vpop.f32.mrf.mxu0
      %v399 = vadd.f32 0.0, %v398
      %v400 = vpop.f32.mrf.mxu0
      %v401 = vadd.f32 0.0, %v400
      %402 = vmatmul.bf16.gmra.mxu0 %v326
      %v403 = vpop.f32.mrf.mxu0
      %v404 = vadd.f32 0.0, %v403
      %v405 = vpop.f32.mrf.mxu0
      %v406 = vadd.f32 0.0, %v405
      %407 = vmatmul.bf16.gmra.mxu0 %v328
      %v408 = vpop.f32.mrf.mxu0
      %v409 = vadd.f32 0.0, %v408
      %v410 = vpop.f32.mrf.mxu0
      %v411 = vadd.f32 0.0, %v410
      %412 = vmatmul.bf16.gmra.mxu0 %v330
      %v413 = vpop.f32.mrf.mxu0
      %v414 = vadd.f32 0.0, %v413
      %v415 = vpop.f32.mrf.mxu0
      %v416 = vadd.f32 0.0, %v415
      %417 = vdwg.mxu0
      %v419 = vunpack.c.l.b16 %v246
      %v420 = vpack.c.b16 %v303, %v419
      %vm421 = vsmask.f32 5376
      %v423 = vshrl.u32 %v420, 16
      %v425 = vrot.slane %v423, 2
      %v426 = vshll.u32 %v420, 16
      %v428 = vrot.slane %v426, 3
      %v429 = vor.u32 %v425, %v428
      %v431 = vshrl.u32 %v314, 16
      %v433 = vrot.slane %v431, 2
      %v434 = vshll.u32 %v314, 16
      %v436 = vrot.slane %v434, 3
      %v437 = vor.u32 %v433, %v436
      %v438 = vsel %vm421, %v429, %v437
      %v440 = vshrl.u32 %v315, 16
      %v442 = vrot.slane %v440, 2
      %v443 = vshll.u32 %v315, 16
      %v445 = vrot.slane %v443, 3
      %v446 = vor.u32 %v442, %v445
      %v447 = vsel %vm421, %v437, %v446
      %v449 = vshrl.u32 %v316, 16
      %v451 = vrot.slane %v449, 2
      %v452 = vshll.u32 %v316, 16
      %v454 = vrot.slane %v452, 3
      %v455 = vor.u32 %v451, %v454
      %v456 = vsel %vm421, %v446, %v455
      %v458 = vshrl.u32 %v317, 16
      %v460 = vrot.slane %v458, 2
      %v461 = vshll.u32 %v317, 16
      %v463 = vrot.slane %v461, 3
      %v464 = vor.u32 %v460, %v463
      %v465 = vsel %vm421, %v455, %v464
      %v467 = vshrl.u32 %v318, 16
      %v469 = vrot.slane %v467, 2
      %v470 = vshll.u32 %v318, 16
      %v472 = vrot.slane %v470, 3
      %v473 = vor.u32 %v469, %v472
      %v474 = vsel %vm421, %v464, %v473
      %v496 = vunpack.c.l.b16 %v257
      %v497 = vunpack.c.l.b16 %v258
      %v498 = vunpack.c.l.b16 %v259
      %v499 = vunpack.c.l.b16 %v260
      %v500 = vunpack.c.l.b16 %v261
      %v501 = vunpack.c.l.b16 %v262
      %v502 = vunpack.c.l.b16 %v263
      %v503 = vunpack.c.l.b16 %v264
      %v504 = vunpack.c.l.b16 %v265
      %v505 = vunpack.c.l.b16 %v266
      %v506 = vunpack.c.l.b16 %v267
      %v507 = vunpack.c.l.b16 %v268
      %v508 = vunpack.c.l.b16 %v269
      %v509 = vunpack.c.l.b16 %v270
      %v510 = vunpack.c.l.b16 %v271
      %v511 = vunpack.c.l.b16 %v272
      %v512 = vpack.c.b16 %v497, %v496
      %v513 = vpack.c.b16 %v499, %v498
      %v514 = vpack.c.b16 %v501, %v500
      %v515 = vpack.c.b16 %v503, %v502
      %v516 = vpack.c.b16 %v505, %v504
      %v517 = vpack.c.b16 %v507, %v506
      %v518 = vpack.c.b16 %v509, %v508
      %v519 = vpack.c.b16 %v511, %v510
      %528 = vmatpush.bf16.msra.mxu0 %v519
      %529 = vmatpush.bf16.msra.mxu0 %v518
      %530 = vmatpush.bf16.msra.mxu0 %v517
      %531 = vmatpush.bf16.msra.mxu0 %v516
      %532 = vmatpush.bf16.msra.mxu0 %v515
      %533 = vmatpush.bf16.msra.mxu0 %v514
      %534 = vmatpush.bf16.msra.mxu0 %v513
      %535 = vmatpush.bf16.msra.mxu0 %v512
      %536 = vmatmul.bf16.gmra.mxu0 %v438
      %v537 = vpop.f32.mrf.mxu0
      %v538 = vadd.f32 %v394, %v537
      %v539 = vpop.f32.mrf.mxu0
      %v540 = vadd.f32 %v396, %v539
      %541 = vmatmul.bf16.gmra.mxu0 %v447
      %v542 = vpop.f32.mrf.mxu0
      %v543 = vadd.f32 %v399, %v542
      %v544 = vpop.f32.mrf.mxu0
      %v545 = vadd.f32 %v401, %v544
      %546 = vmatmul.bf16.gmra.mxu0 %v456
      %v547 = vpop.f32.mrf.mxu0
      %v548 = vadd.f32 %v404, %v547
      %v549 = vpop.f32.mrf.mxu0
      %v550 = vadd.f32 %v406, %v549
      %551 = vmatmul.bf16.gmra.mxu0 %v465
      %v552 = vpop.f32.mrf.mxu0
      %v553 = vadd.f32 %v409, %v552
      %v554 = vpop.f32.mrf.mxu0
      %v555 = vadd.f32 %v411, %v554
      %556 = vmatmul.bf16.gmra.mxu0 %v474
      %v557 = vpop.f32.mrf.mxu0
      %v558 = vadd.f32 %v414, %v557
      %v559 = vpop.f32.mrf.mxu0
      %v560 = vadd.f32 %v416, %v559
      %561 = vdwg.mxu0
      %v562 = vld [vmem:[%s234 + $0x28] sm:$0xf]
      %s563 = scalar_lea.vmem %s1, 128
      %v564 = vld [vmem:[%s563] sm:$0xf]
      %v565 = vld [vmem:[%s563 + $0x4] sm:$0xf]
      %v566 = vld [vmem:[%s563 + $0x8] sm:$0xf]
      %v567 = vld [vmem:[%s563 + $0xc] sm:$0xf]
      %v568 = vld [vmem:[%s563 + $0x10] sm:$0xf]
      %v569 = vld [vmem:[%s563 + $0x14] sm:$0xf]
      %v570 = vld [vmem:[%s563 + $0x18] sm:$0xf]
      %v571 = vld [vmem:[%s563 + $0x1c] sm:$0xf]
      %v572 = vld [vmem:[%s563 + $0x20] sm:$0xf]
      %v573 = vld [vmem:[%s563 + $0x24] sm:$0xf]
      %v574 = vld [vmem:[%s563 + $0x28] sm:$0xf]
      %v575 = vld [vmem:[%s563 + $0x2c] sm:$0xf]
      %v576 = vld [vmem:[%s563 + $0x30] sm:$0xf]
      %v577 = vld [vmem:[%s563 + $0x34] sm:$0xf]
      %v578 = vld [vmem:[%s563 + $0x38] sm:$0xf]
      %v579 = vld [vmem:[%s563 + $0x3c] sm:$0xf]
      %v581 = vunpack.c.l.b16 %v562
      %v582 = vpack.c.b16 %v581, %v581
      %vm583 = vsmask.f32 4352
      %v585 = vshrl.u32 %v313, 16
      %v587 = vrot.slane %v585, 3
      %v588 = vshll.u32 %v313, 16
      %v590 = vrot.slane %v588, 4
      %v591 = vor.u32 %v587, %v590
      %v592 = vrot.slane %v431, 3
      %v593 = vrot.slane %v434, 4
      %v594 = vor.u32 %v592, %v593
      %v595 = vsel %vm583, %v591, %v594
      %v596 = vrot.slane %v440, 3
      %v597 = vrot.slane %v443, 4
      %v598 = vor.u32 %v596, %v597
      %v599 = vsel %vm583, %v594, %v598
      %v600 = vrot.slane %v449, 3
      %v601 = vrot.slane %v452, 4
      %v602 = vor.u32 %v600, %v601
      %v603 = vsel %vm583, %v598, %v602
      %v604 = vrot.slane %v458, 3
      %v605 = vrot.slane %v461, 4
      %v606 = vor.u32 %v604, %v605
      %v607 = vsel %vm583, %v602, %v606
      %v609 = vshrl.u32 %v582, 16
      %v611 = vrot.slane %v609, 3
      %v612 = vshll.u32 %v582, 16
      %v614 = vrot.slane %v612, 4
      %v615 = vor.u32 %v611, %v614
      %v616 = vsel %vm583, %v606, %v615
      %v638 = vunpack.c.l.b16 %v564
      %v639 = vunpack.c.l.b16 %v565
      %v640 = vunpack.c.l.b16 %v566
      %v641 = vunpack.c.l.b16 %v567
      %v642 = vunpack.c.l.b16 %v568
      %v643 = vunpack.c.l.b16 %v569
      %v644 = vunpack.c.l.b16 %v570
      %v645 = vunpack.c.l.b16 %v571
      %v646 = vunpack.c.l.b16 %v572
      %v647 = vunpack.c.l.b16 %v573
      %v648 = vunpack.c.l.b16 %v574
      %v649 = vunpack.c.l.b16 %v575
      %v650 = vunpack.c.l.b16 %v576
      %v651 = vunpack.c.l.b16 %v577
      %v652 = vunpack.c.l.b16 %v578
      %v653 = vunpack.c.l.b16 %v579
      %v654 = vpack.c.b16 %v639, %v638
      %v655 = vpack.c.b16 %v641, %v640
      %v656 = vpack.c.b16 %v643, %v642
      %v657 = vpack.c.b16 %v645, %v644
      %v658 = vpack.c.b16 %v647, %v646
      %v659 = vpack.c.b16 %v649, %v648
      %v660 = vpack.c.b16 %v651, %v650
      %v661 = vpack.c.b16 %v653, %v652
      %670 = vmatpush.bf16.msra.mxu0 %v661
      %671 = vmatpush.bf16.msra.mxu0 %v660
      %672 = vmatpush.bf16.msra.mxu0 %v659
      %673 = vmatpush.bf16.msra.mxu0 %v658
      %674 = vmatpush.bf16.msra.mxu0 %v657
      %675 = vmatpush.bf16.msra.mxu0 %v656
      %676 = vmatpush.bf16.msra.mxu0 %v655
      %677 = vmatpush.bf16.msra.mxu0 %v654
      %678 = vmatmul.bf16.gmra.mxu0 %v595
      %v679 = vpop.f32.mrf.mxu0
      %v680 = vadd.f32 0.0, %v679
      %v681 = vpop.f32.mrf.mxu0
      %v682 = vadd.f32 0.0, %v681
      %683 = vmatmul.bf16.gmra.mxu0 %v599
      %v684 = vpop.f32.mrf.mxu0
      %v685 = vadd.f32 0.0, %v684
      %v686 = vpop.f32.mrf.mxu0
      %v687 = vadd.f32 0.0, %v686
      %688 = vmatmul.bf16.gmra.mxu0 %v603
      %v689 = vpop.f32.mrf.mxu0
      %v690 = vadd.f32 0.0, %v689
      %v691 = vpop.f32.mrf.mxu0
      %v692 = vadd.f32 0.0, %v691
      %693 = vmatmul.bf16.gmra.mxu0 %v607
      %v694 = vpop.f32.mrf.mxu0
      %v695 = vadd.f32 0.0, %v694
      %v696 = vpop.f32.mrf.mxu0
      %v697 = vadd.f32 0.0, %v696
      %698 = vmatmul.bf16.gmra.mxu0 %v616
      %v699 = vpop.f32.mrf.mxu0
      %v700 = vadd.f32 0.0, %v699
      %v701 = vpop.f32.mrf.mxu0
      %v702 = vadd.f32 0.0, %v701
      %703 = vdwg.mxu0
      %v704 = vadd.f32 %v538, %v680
      %v705 = vadd.f32 %v540, %v682
      %v706 = vadd.f32 %v543, %v685
      %v707 = vadd.f32 %v545, %v687
      %v708 = vadd.f32 %v548, %v690
      %v709 = vadd.f32 %v550, %v692
      %v710 = vadd.f32 %v553, %v695
      %v711 = vadd.f32 %v555, %v697
      %v712 = vadd.f32 %v558, %v700
      %v713 = vadd.f32 %v560, %v702
      %v714 = vld [vmem:[%s234 + $0x4] sm:$0x8]
      %v715 = vld [vmem:[%s234 + $0x8] sm:$0xf]
      %v716 = vld [vmem:[%s234 + $0xc] sm:$0xf]
      %v717 = vld [vmem:[%s234 + $0x10] sm:$0xf]
      %v718 = vld [vmem:[%s234 + $0x14] sm:$0xf]
      %v719 = vld [vmem:[%s234 + $0x18] sm:$0xf]
      %v720 = vld [vmem:[%s234 + $0x1c] sm:$0xf]
      %v721 = vld [vmem:[%s234 + $0x20] sm:$0xf]
      %v722 = vld [vmem:[%s234 + $0x24] sm:$0xf]
      %v723 = vld [vmem:[%s234 + $0x28] sm:$0xf]
      %v724 = vld [vmem:[%s234 + $0x2c] sm:$0xf]
      %s725 = scalar_lea.vmem %s1, 192
      %v726 = vld [vmem:[%s725] sm:$0xf]
      %v727 = vld [vmem:[%s725 + $0x4] sm:$0xf]
      %v728 = vld [vmem:[%s725 + $0x8] sm:$0xf]
      %v729 = vld [vmem:[%s725 + $0xc] sm:$0xf]
      %v730 = vld [vmem:[%s725 + $0x10] sm:$0xf]
      %v731 = vld [vmem:[%s725 + $0x14] sm:$0xf]
      %v732 = vld [vmem:[%s725 + $0x18] sm:$0xf]
      %v733 = vld [vmem:[%s725 + $0x1c] sm:$0xf]
      %v734 = vld [vmem:[%s725 + $0x20] sm:$0xf]
      %v735 = vld [vmem:[%s725 + $0x24] sm:$0xf]
      %v736 = vld [vmem:[%s725 + $0x28] sm:$0xf]
      %v737 = vld [vmem:[%s725 + $0x2c] sm:$0xf]
      %v738 = vld [vmem:[%s725 + $0x30] sm:$0xf]
      %v739 = vld [vmem:[%s725 + $0x34] sm:$0xf]
      %v740 = vld [vmem:[%s725 + $0x38] sm:$0xf]
      %v741 = vld [vmem:[%s725 + $0x3c] sm:$0xf]
      %v753 = vunpack.c.l.b16 %v714
      %v754 = vunpack.c.l.b16 %v715
      %v755 = vunpack.c.l.b16 %v716
      %v756 = vunpack.c.l.b16 %v717
      %v757 = vunpack.c.l.b16 %v718
      %v758 = vunpack.c.l.b16 %v719
      %v759 = vunpack.c.l.b16 %v720
      %v760 = vunpack.c.l.b16 %v721
      %v761 = vunpack.c.l.b16 %v722
      %v762 = vunpack.c.l.b16 %v723
      %v763 = vunpack.c.l.b16 %v724
      %v764 = vpack.c.b16 %v754, %v753
      %v765 = vpack.c.b16 %v756, %v755
      %v766 = vpack.c.b16 %v758, %v757
      %v767 = vpack.c.b16 %v760, %v759
      %v768 = vpack.c.b16 %v762, %v761
      %v769 = vpack.c.b16 %v763, %v763
      %v771 = vshrl.u32 %v764, 16
      %v773 = vrot.slane %v771, 3
      %v774 = vshll.u32 %v764, 16
      %v776 = vrot.slane %v774, 4
      %v777 = vor.u32 %v773, %v776
      %v779 = vshrl.u32 %v765, 16
      %v781 = vrot.slane %v779, 3
      %v782 = vshll.u32 %v765, 16
      %v784 = vrot.slane %v782, 4
      %v785 = vor.u32 %v781, %v784
      %v786 = vsel %vm583, %v777, %v785
      %v788 = vshrl.u32 %v766, 16
      %v790 = vrot.slane %v788, 3
      %v791 = vshll.u32 %v766, 16
      %v793 = vrot.slane %v791, 4
      %v794 = vor.u32 %v790, %v793
      %v795 = vsel %vm583, %v785, %v794
      %v797 = vshrl.u32 %v767, 16
      %v799 = vrot.slane %v797, 3
      %v800 = vshll.u32 %v767, 16
      %v802 = vrot.slane %v800, 4
      %v803 = vor.u32 %v799, %v802
      %v804 = vsel %vm583, %v794, %v803
      %v806 = vshrl.u32 %v768, 16
      %v808 = vrot.slane %v806, 3
      %v809 = vshll.u32 %v768, 16
      %v811 = vrot.slane %v809, 4
      %v812 = vor.u32 %v808, %v811
      %v813 = vsel %vm583, %v803, %v812
      %v815 = vshrl.u32 %v769, 16
      %v817 = vrot.slane %v815, 3
      %v818 = vshll.u32 %v769, 16
      %v820 = vrot.slane %v818, 4
      %v821 = vor.u32 %v817, %v820
      %v822 = vsel %vm583, %v812, %v821
      %v844 = vunpack.c.l.b16 %v726
      %v845 = vunpack.c.l.b16 %v727
      %v846 = vunpack.c.l.b16 %v728
      %v847 = vunpack.c.l.b16 %v729
      %v848 = vunpack.c.l.b16 %v730
      %v849 = vunpack.c.l.b16 %v731
      %v850 = vunpack.c.l.b16 %v732
      %v851 = vunpack.c.l.b16 %v733
      %v852 = vunpack.c.l.b16 %v734
      %v853 = vunpack.c.l.b16 %v735
      %v854 = vunpack.c.l.b16 %v736
      %v855 = vunpack.c.l.b16 %v737
      %v856 = vunpack.c.l.b16 %v738
      %v857 = vunpack.c.l.b16 %v739
      %v858 = vunpack.c.l.b16 %v740
      %v859 = vunpack.c.l.b16 %v741
      %v860 = vpack.c.b16 %v845, %v844
      %v861 = vpack.c.b16 %v847, %v846
      %v862 = vpack.c.b16 %v849, %v848
      %v863 = vpack.c.b16 %v851, %v850
      %v864 = vpack.c.b16 %v853, %v852
      %v865 = vpack.c.b16 %v855, %v854
      %v866 = vpack.c.b16 %v857, %v856
      %v867 = vpack.c.b16 %v859, %v858
      %876 = vmatpush.bf16.msra.mxu0 %v867
      %877 = vmatpush.bf16.msra.mxu0 %v866
      %878 = vmatpush.bf16.msra.mxu0 %v865
      %879 = vmatpush.bf16.msra.mxu0 %v864
      %880 = vmatpush.bf16.msra.mxu0 %v863
      %881 = vmatpush.bf16.msra.mxu0 %v862
      %882 = vmatpush.bf16.msra.mxu0 %v861
      %883 = vmatpush.bf16.msra.mxu0 %v860
      %884 = vmatmul.bf16.gmra.mxu0 %v786
      %v885 = vpop.f32.mrf.mxu0
      %v886 = vadd.f32 0.0, %v885
      %v887 = vpop.f32.mrf.mxu0
      %v888 = vadd.f32 0.0, %v887
      %889 = vmatmul.bf16.gmra.mxu0 %v795
      %v890 = vpop.f32.mrf.mxu0
      %v891 = vadd.f32 0.0, %v890
      %v892 = vpop.f32.mrf.mxu0
      %v893 = vadd.f32 0.0, %v892
      %894 = vmatmul.bf16.gmra.mxu0 %v804
      %v895 = vpop.f32.mrf.mxu0
      %v896 = vadd.f32 0.0, %v895
      %v897 = vpop.f32.mrf.mxu0
      %v898 = vadd.f32 0.0, %v897
      %899 = vmatmul.bf16.gmra.mxu0 %v813
      %v900 = vpop.f32.mrf.mxu0
      %v901 = vadd.f32 0.0, %v900
      %v902 = vpop.f32.mrf.mxu0
      %v903 = vadd.f32 0.0, %v902
      %904 = vmatmul.bf16.gmra.mxu0 %v822
      %v905 = vpop.f32.mrf.mxu0
      %v906 = vadd.f32 0.0, %v905
      %v907 = vpop.f32.mrf.mxu0
      %v908 = vadd.f32 0.0, %v907
      %909 = vdwg.mxu0
      %v910 = vadd.f32 %v704, %v886
      %v911 = vadd.f32 %v705, %v888
      %v912 = vadd.f32 %v706, %v891
      %v913 = vadd.f32 %v707, %v893
      %v914 = vadd.f32 %v708, %v896
      %v915 = vadd.f32 %v709, %v898
      %v916 = vadd.f32 %v710, %v901
      %v917 = vadd.f32 %v711, %v903
      %v918 = vadd.f32 %v712, %v906
      %v919 = vadd.f32 %v713, %v908
      %s920 = scalar_lea.vmem %s1, 256
      %v921 = vld [vmem:[%s920] sm:$0xf]
      %v922 = vld [vmem:[%s920 + $0x4] sm:$0xf]
      %v923 = vld [vmem:[%s920 + $0x8] sm:$0xf]
      %v924 = vld [vmem:[%s920 + $0xc] sm:$0xf]
      %v925 = vld [vmem:[%s920 + $0x10] sm:$0xf]
      %v926 = vld [vmem:[%s920 + $0x14] sm:$0xf]
      %v927 = vld [vmem:[%s920 + $0x18] sm:$0xf]
      %v928 = vld [vmem:[%s920 + $0x1c] sm:$0xf]
      %v929 = vld [vmem:[%s920 + $0x20] sm:$0xf]
      %v930 = vld [vmem:[%s920 + $0x24] sm:$0xf]
      %v931 = vld [vmem:[%s920 + $0x28] sm:$0xf]
      %v932 = vld [vmem:[%s920 + $0x2c] sm:$0xf]
      %v933 = vld [vmem:[%s920 + $0x30] sm:$0xf]
      %v934 = vld [vmem:[%s920 + $0x34] sm:$0xf]
      %v935 = vld [vmem:[%s920 + $0x38] sm:$0xf]
      %v936 = vld [vmem:[%s920 + $0x3c] sm:$0xf]
      %v937 = vpack.c.b16 %v755, %v754
      %v938 = vpack.c.b16 %v757, %v756
      %v939 = vpack.c.b16 %v759, %v758
      %v940 = vpack.c.b16 %v761, %v760
      %v941 = vpack.c.b16 %v763, %v762
      %v963 = vunpack.c.l.b16 %v921
      %v964 = vunpack.c.l.b16 %v922
      %v965 = vunpack.c.l.b16 %v923
      %v966 = vunpack.c.l.b16 %v924
      %v967 = vunpack.c.l.b16 %v925
      %v968 = vunpack.c.l.b16 %v926
      %v969 = vunpack.c.l.b16 %v927
      %v970 = vunpack.c.l.b16 %v928
      %v971 = vunpack.c.l.b16 %v929
      %v972 = vunpack.c.l.b16 %v930
      %v973 = vunpack.c.l.b16 %v931
      %v974 = vunpack.c.l.b16 %v932
      %v975 = vunpack.c.l.b16 %v933
      %v976 = vunpack.c.l.b16 %v934
      %v977 = vunpack.c.l.b16 %v935
      %v978 = vunpack.c.l.b16 %v936
      %v979 = vpack.c.b16 %v964, %v963
      %v980 = vpack.c.b16 %v966, %v965
      %v981 = vpack.c.b16 %v968, %v967
      %v982 = vpack.c.b16 %v970, %v969
      %v983 = vpack.c.b16 %v972, %v971
      %v984 = vpack.c.b16 %v974, %v973
      %v985 = vpack.c.b16 %v976, %v975
      %v986 = vpack.c.b16 %v978, %v977
      %995 = vmatpush.bf16.msra.mxu0 %v986
      %996 = vmatpush.bf16.msra.mxu0 %v985
      %997 = vmatpush.bf16.msra.mxu0 %v984
      %998 = vmatpush.bf16.msra.mxu0 %v983
      %999 = vmatpush.bf16.msra.mxu0 %v982
      %1000 = vmatpush.bf16.msra.mxu0 %v981
      %1001 = vmatpush.bf16.msra.mxu0 %v980
      %1002 = vmatpush.bf16.msra.mxu0 %v979
      %1003 = vmatmul.bf16.gmra.mxu0 %v937
      %v1004 = vpop.f32.mrf.mxu0
      %v1005 = vadd.f32 0.0, %v1004
      %v1006 = vpop.f32.mrf.mxu0
      %v1007 = vadd.f32 0.0, %v1006
      %1008 = vmatmul.bf16.gmra.mxu0 %v938
      %v1009 = vpop.f32.mrf.mxu0
      %v1010 = vadd.f32 0.0, %v1009
      %v1011 = vpop.f32.mrf.mxu0
      %v1012 = vadd.f32 0.0, %v1011
      %1013 = vmatmul.bf16.gmra.mxu0 %v939
      %v1014 = vpop.f32.mrf.mxu0
      %v1015 = vadd.f32 0.0, %v1014
      %v1016 = vpop.f32.mrf.mxu0
      %v1017 = vadd.f32 0.0, %v1016
      %1018 = vmatmul.bf16.gmra.mxu0 %v940
      %v1019 = vpop.f32.mrf.mxu0
      %v1020 = vadd.f32 0.0, %v1019
      %v1021 = vpop.f32.mrf.mxu0
      %v1022 = vadd.f32 0.0, %v1021
      %1023 = vmatmul.bf16.gmra.mxu0 %v941
      %v1024 = vpop.f32.mrf.mxu0
      %v1025 = vadd.f32 0.0, %v1024
      %v1026 = vpop.f32.mrf.mxu0
      %v1027 = vadd.f32 0.0, %v1026
      %1028 = vdwg.mxu0
      %v1029 = vadd.f32 %v910, %v1005
      %v1030 = vadd.f32 %v911, %v1007
      %v1031 = vadd.f32 %v912, %v1010
      %v1032 = vadd.f32 %v913, %v1012
      %v1033 = vadd.f32 %v914, %v1015
      %v1034 = vadd.f32 %v915, %v1017
      %v1035 = vadd.f32 %v916, %v1020
      %v1036 = vadd.f32 %v917, %v1022
      %v1037 = vadd.f32 %v918, %v1025
      %v1038 = vadd.f32 %v919, %v1027
      %v1039 = vld [vmem:[%s234 + $0x8] sm:$0xf]
      %v1040 = vld [vmem:[%s234 + $0xc] sm:$0xf]
      %v1041 = vld [vmem:[%s234 + $0x10] sm:$0xf]
      %v1042 = vld [vmem:[%s234 + $0x14] sm:$0xf]
      %v1043 = vld [vmem:[%s234 + $0x18] sm:$0xf]
      %v1044 = vld [vmem:[%s234 + $0x1c] sm:$0xf]
      %v1045 = vld [vmem:[%s234 + $0x20] sm:$0xf]
      %v1046 = vld [vmem:[%s234 + $0x24] sm:$0xf]
      %v1047 = vld [vmem:[%s234 + $0x28] sm:$0xf]
      %v1048 = vld [vmem:[%s234 + $0x2c] sm:$0xf]
      %v1049 = vld [vmem:[%s234 + $0x30] sm:$0x1]
      %s1050 = scalar_lea.vmem %s1, 320
      %v1051 = vld [vmem:[%s1050] sm:$0xf]
      %v1052 = vld [vmem:[%s1050 + $0x4] sm:$0xf]
      %v1053 = vld [vmem:[%s1050 + $0x8] sm:$0xf]
      %v1054 = vld [vmem:[%s1050 + $0xc] sm:$0xf]
      %v1055 = vld [vmem:[%s1050 + $0x10] sm:$0xf]
      %v1056 = vld [vmem:[%s1050 + $0x14] sm:$0xf]
      %v1057 = vld [vmem:[%s1050 + $0x18] sm:$0xf]
      %v1058 = vld [vmem:[%s1050 + $0x1c] sm:$0xf]
      %v1059 = vld [vmem:[%s1050 + $0x20] sm:$0xf]
      %v1060 = vld [vmem:[%s1050 + $0x24] sm:$0xf]
      %v1061 = vld [vmem:[%s1050 + $0x28] sm:$0xf]
      %v1062 = vld [vmem:[%s1050 + $0x2c] sm:$0xf]
      %v1063 = vld [vmem:[%s1050 + $0x30] sm:$0xf]
      %v1064 = vld [vmem:[%s1050 + $0x34] sm:$0xf]
      %v1065 = vld [vmem:[%s1050 + $0x38] sm:$0xf]
      %v1066 = vld [vmem:[%s1050 + $0x3c] sm:$0xf]
      %v1078 = vunpack.c.l.b16 %v1039
      %v1079 = vunpack.c.l.b16 %v1040
      %v1080 = vunpack.c.l.b16 %v1041
      %v1081 = vunpack.c.l.b16 %v1042
      %v1082 = vunpack.c.l.b16 %v1043
      %v1083 = vunpack.c.l.b16 %v1044
      %v1084 = vunpack.c.l.b16 %v1045
      %v1085 = vunpack.c.l.b16 %v1046
      %v1086 = vunpack.c.l.b16 %v1047
      %v1087 = vunpack.c.l.b16 %v1048
      %v1088 = vunpack.c.l.b16 %v1049
      %v1089 = vpack.c.b16 %v1079, %v1078
      %v1090 = vpack.c.b16 %v1081, %v1080
      %v1091 = vpack.c.b16 %v1083, %v1082
      %v1092 = vpack.c.b16 %v1085, %v1084
      %v1093 = vpack.c.b16 %v1087, %v1086
      %v1094 = vpack.c.b16 %v1088, %v1088
      %vm1095 = vsmask.f32 7424
      %v1097 = vshrl.u32 %v1089, 16
      %v1099 = vshll.u32 %v1089, 16
      %v1101 = vrot.slane %v1099, 1
      %v1102 = vor.u32 %v1097, %v1101
      %v1104 = vshll.u32 %v1090, 16
      %v1106 = vrot.slane %v1104, 1
      %v1107 = vsel %vm1095, %v1102, %v1106
      %v1108 = vshrl.u32 %v1090, 16
      %v1110 = vor.u32 %v1108, %v1106
      %v1112 = vshll.u32 %v1091, 16
      %v1114 = vrot.slane %v1112, 1
      %v1115 = vsel %vm1095, %v1110, %v1114
      %v1116 = vshrl.u32 %v1091, 16
      %v1118 = vor.u32 %v1116, %v1114
      %v1120 = vshll.u32 %v1092, 16
      %v1122 = vrot.slane %v1120, 1
      %v1123 = vsel %vm1095, %v1118, %v1122
      %v1124 = vshrl.u32 %v1092, 16
      %v1126 = vor.u32 %v1124, %v1122
      %v1128 = vshll.u32 %v1093, 16
      %v1130 = vrot.slane %v1128, 1
      %v1131 = vsel %vm1095, %v1126, %v1130
      %v1132 = vshrl.u32 %v1093, 16
      %v1134 = vor.u32 %v1132, %v1130
      %v1136 = vshll.u32 %v1094, 16
      %v1138 = vrot.slane %v1136, 1
      %v1139 = vsel %vm1095, %v1134, %v1138
      %v1161 = vunpack.c.l.b16 %v1051
      %v1162 = vunpack.c.l.b16 %v1052
      %v1163 = vunpack.c.l.b16 %v1053
      %v1164 = vunpack.c.l.b16 %v1054
      %v1165 = vunpack.c.l.b16 %v1055
      %v1166 = vunpack.c.l.b16 %v1056
      %v1167 = vunpack.c.l.b16 %v1057
      %v1168 = vunpack.c.l.b16 %v1058
      %v1169 = vunpack.c.l.b16 %v1059
      %v1170 = vunpack.c.l.b16 %v1060
      %v1171 = vunpack.c.l.b16 %v1061
      %v1172 = vunpack.c.l.b16 %v1062
      %v1173 = vunpack.c.l.b16 %v1063
      %v1174 = vunpack.c.l.b16 %v1064
      %v1175 = vunpack.c.l.b16 %v1065
      %v1176 = vunpack.c.l.b16 %v1066
      %v1177 = vpack.c.b16 %v1162, %v1161
      %v1178 = vpack.c.b16 %v1164, %v1163
      %v1179 = vpack.c.b16 %v1166, %v1165
      %v1180 = vpack.c.b16 %v1168, %v1167
      %v1181 = vpack.c.b16 %v1170, %v1169
      %v1182 = vpack.c.b16 %v1172, %v1171
      %v1183 = vpack.c.b16 %v1174, %v1173
      %v1184 = vpack.c.b16 %v1176, %v1175
      %1193 = vmatpush.bf16.msra.mxu0 %v1184
      %1194 = vmatpush.bf16.msra.mxu0 %v1183
      %1195 = vmatpush.bf16.msra.mxu0 %v1182
      %1196 = vmatpush.bf16.msra.mxu0 %v1181
      %1197 = vmatpush.bf16.msra.mxu0 %v1180
      %1198 = vmatpush.bf16.msra.mxu0 %v1179
      %1199 = vmatpush.bf16.msra.mxu0 %v1178
      %1200 = vmatpush.bf16.msra.mxu0 %v1177
      %1201 = vmatmul.bf16.gmra.mxu0 %v1107
      %v1202 = vpop.f32.mrf.mxu0
      %v1203 = vadd.f32 0.0, %v1202
      %v1204 = vpop.f32.mrf.mxu0
      %v1205 = vadd.f32 0.0, %v1204
      %1206 = vmatmul.bf16.gmra.mxu0 %v1115
      %v1207 = vpop.f32.mrf.mxu0
      %v1208 = vadd.f32 0.0, %v1207
      %v1209 = vpop.f32.mrf.mxu0
      %v1210 = vadd.f32 0.0, %v1209
      %1211 = vmatmul.bf16.gmra.mxu0 %v1123
      %v1212 = vpop.f32.mrf.mxu0
      %v1213 = vadd.f32 0.0, %v1212
      %v1214 = vpop.f32.mrf.mxu0
      %v1215 = vadd.f32 0.0, %v1214
      %1216 = vmatmul.bf16.gmra.mxu0 %v1131
      %v1217 = vpop.f32.mrf.mxu0
      %v1218 = vadd.f32 0.0, %v1217
      %v1219 = vpop.f32.mrf.mxu0
      %v1220 = vadd.f32 0.0, %v1219
      %1221 = vmatmul.bf16.gmra.mxu0 %v1139
      %v1222 = vpop.f32.mrf.mxu0
      %v1223 = vadd.f32 0.0, %v1222
      %v1224 = vpop.f32.mrf.mxu0
      %v1225 = vadd.f32 0.0, %v1224
      %1226 = vdwg.mxu0
      %v1227 = vadd.f32 %v1029, %v1203
      %v1228 = vadd.f32 %v1030, %v1205
      %v1229 = vadd.f32 %v1031, %v1208
      %v1230 = vadd.f32 %v1032, %v1210
      %v1231 = vadd.f32 %v1033, %v1213
      %v1232 = vadd.f32 %v1034, %v1215
      %v1233 = vadd.f32 %v1035, %v1218
      %v1234 = vadd.f32 %v1036, %v1220
      %v1235 = vadd.f32 %v1037, %v1223
      %v1236 = vadd.f32 %v1038, %v1225
      %v1237 = vld [vmem:[%s234 + $0xc] sm:$0xf]
      %v1238 = vld [vmem:[%s234 + $0x10] sm:$0xf]
      %v1239 = vld [vmem:[%s234 + $0x14] sm:$0xf]
      %v1240 = vld [vmem:[%s234 + $0x18] sm:$0xf]
      %v1241 = vld [vmem:[%s234 + $0x1c] sm:$0xf]
      %v1242 = vld [vmem:[%s234 + $0x20] sm:$0xf]
      %v1243 = vld [vmem:[%s234 + $0x24] sm:$0xf]
      %v1244 = vld [vmem:[%s234 + $0x28] sm:$0xf]
      %v1245 = vld [vmem:[%s234 + $0x2c] sm:$0xf]
      %v1246 = vld [vmem:[%s234 + $0x30] sm:$0xf]
      %v1247 = vld [vmem:[%s234 + $0x34] sm:$0x1]
      %s1248 = scalar_lea.vmem %s1, 384
      %v1249 = vld [vmem:[%s1248] sm:$0xf]
      %v1250 = vld [vmem:[%s1248 + $0x4] sm:$0xf]
      %v1251 = vld [vmem:[%s1248 + $0x8] sm:$0xf]
      %v1252 = vld [vmem:[%s1248 + $0xc] sm:$0xf]
      %v1253 = vld [vmem:[%s1248 + $0x10] sm:$0xf]
      %v1254 = vld [vmem:[%s1248 + $0x14] sm:$0xf]
      %v1255 = vld [vmem:[%s1248 + $0x18] sm:$0xf]
      %v1256 = vld [vmem:[%s1248 + $0x1c] sm:$0xf]
      %v1257 = vld [vmem:[%s1248 + $0x20] sm:$0xf]
      %v1258 = vld [vmem:[%s1248 + $0x24] sm:$0xf]
      %v1259 = vld [vmem:[%s1248 + $0x28] sm:$0xf]
      %v1260 = vld [vmem:[%s1248 + $0x2c] sm:$0xf]
      %v1261 = vld [vmem:[%s1248 + $0x30] sm:$0xf]
      %v1262 = vld [vmem:[%s1248 + $0x34] sm:$0xf]
      %v1263 = vld [vmem:[%s1248 + $0x38] sm:$0xf]
      %v1264 = vld [vmem:[%s1248 + $0x3c] sm:$0xf]
      %v1276 = vunpack.c.l.b16 %v1237
      %v1277 = vunpack.c.l.b16 %v1238
      %v1278 = vunpack.c.l.b16 %v1239
      %v1279 = vunpack.c.l.b16 %v1240
      %v1280 = vunpack.c.l.b16 %v1241
      %v1281 = vunpack.c.l.b16 %v1242
      %v1282 = vunpack.c.l.b16 %v1243
      %v1283 = vunpack.c.l.b16 %v1244
      %v1284 = vunpack.c.l.b16 %v1245
      %v1285 = vunpack.c.l.b16 %v1246
      %v1286 = vunpack.c.l.b16 %v1247
      %v1287 = vpack.c.b16 %v1277, %v1276
      %v1288 = vpack.c.b16 %v1279, %v1278
      %v1289 = vpack.c.b16 %v1281, %v1280
      %v1290 = vpack.c.b16 %v1283, %v1282
      %v1291 = vpack.c.b16 %v1285, %v1284
      %v1292 = vpack.c.b16 %v1286, %v1286
      %v1294 = vshrl.u32 %v1287, 16
      %v1296 = vshll.u32 %v1287, 16
      %v1298 = vrot.slane %v1296, 1
      %v1299 = vor.u32 %v1294, %v1298
      %v1301 = vshll.u32 %v1288, 16
      %v1303 = vrot.slane %v1301, 1
      %v1304 = vsel %vm1095, %v1299, %v1303
      %v1305 = vshrl.u32 %v1288, 16
      %v1307 = vor.u32 %v1305, %v1303
      %v1309 = vshll.u32 %v1289, 16
      %v1311 = vrot.slane %v1309, 1
      %v1312 = vsel %vm1095, %v1307, %v1311
      %v1313 = vshrl.u32 %v1289, 16
      %v1315 = vor.u32 %v1313, %v1311
      %v1317 = vshll.u32 %v1290, 16
      %v1319 = vrot.slane %v1317, 1
      %v1320 = vsel %vm1095, %v1315, %v1319
      %v1321 = vshrl.u32 %v1290, 16
      %v1323 = vor.u32 %v1321, %v1319
      %v1325 = vshll.u32 %v1291, 16
      %v1327 = vrot.slane %v1325, 1
      %v1328 = vsel %vm1095, %v1323, %v1327
      %v1329 = vshrl.u32 %v1291, 16
      %v1331 = vor.u32 %v1329, %v1327
      %v1333 = vshll.u32 %v1292, 16
      %v1335 = vrot.slane %v1333, 1
      %v1336 = vsel %vm1095, %v1331, %v1335
      %v1358 = vunpack.c.l.b16 %v1249
      %v1359 = vunpack.c.l.b16 %v1250
      %v1360 = vunpack.c.l.b16 %v1251
      %v1361 = vunpack.c.l.b16 %v1252
      %v1362 = vunpack.c.l.b16 %v1253
      %v1363 = vunpack.c.l.b16 %v1254
      %v1364 = vunpack.c.l.b16 %v1255
      %v1365 = vunpack.c.l.b16 %v1256
      %v1366 = vunpack.c.l.b16 %v1257
      %v1367 = vunpack.c.l.b16 %v1258
      %v1368 = vunpack.c.l.b16 %v1259
      %v1369 = vunpack.c.l.b16 %v1260
      %v1370 = vunpack.c.l.b16 %v1261
      %v1371 = vunpack.c.l.b16 %v1262
      %v1372 = vunpack.c.l.b16 %v1263
      %v1373 = vunpack.c.l.b16 %v1264
      %v1374 = vpack.c.b16 %v1359, %v1358
      %v1375 = vpack.c.b16 %v1361, %v1360
      %v1376 = vpack.c.b16 %v1363, %v1362
      %v1377 = vpack.c.b16 %v1365, %v1364
      %v1378 = vpack.c.b16 %v1367, %v1366
      %v1379 = vpack.c.b16 %v1369, %v1368
      %v1380 = vpack.c.b16 %v1371, %v1370
      %v1381 = vpack.c.b16 %v1373, %v1372
      %1390 = vmatpush.bf16.msra.mxu0 %v1381
      %1391 = vmatpush.bf16.msra.mxu0 %v1380
      %1392 = vmatpush.bf16.msra.mxu0 %v1379
      %1393 = vmatpush.bf16.msra.mxu0 %v1378
      %1394 = vmatpush.bf16.msra.mxu0 %v1377
      %1395 = vmatpush.bf16.msra.mxu0 %v1376
      %1396 = vmatpush.bf16.msra.mxu0 %v1375
      %1397 = vmatpush.bf16.msra.mxu0 %v1374
      %1398 = vmatmul.bf16.gmra.mxu0 %v1304
      %v1399 = vpop.f32.mrf.mxu0
      %v1400 = vadd.f32 0.0, %v1399
      %v1401 = vpop.f32.mrf.mxu0
      %v1402 = vadd.f32 0.0, %v1401
      %1403 = vmatmul.bf16.gmra.mxu0 %v1312
      %v1404 = vpop.f32.mrf.mxu0
      %v1405 = vadd.f32 0.0, %v1404
      %v1406 = vpop.f32.mrf.mxu0
      %v1407 = vadd.f32 0.0, %v1406
      %1408 = vmatmul.bf16.gmra.mxu0 %v1320
      %v1409 = vpop.f32.mrf.mxu0
      %v1410 = vadd.f32 0.0, %v1409
      %v1411 = vpop.f32.mrf.mxu0
      %v1412 = vadd.f32 0.0, %v1411
      %1413 = vmatmul.bf16.gmra.mxu0 %v1328
      %v1414 = vpop.f32.mrf.mxu0
      %v1415 = vadd.f32 0.0, %v1414
      %v1416 = vpop.f32.mrf.mxu0
      %v1417 = vadd.f32 0.0, %v1416
      %1418 = vmatmul.bf16.gmra.mxu0 %v1336
      %v1419 = vpop.f32.mrf.mxu0
      %v1420 = vadd.f32 0.0, %v1419
      %v1421 = vpop.f32.mrf.mxu0
      %v1422 = vadd.f32 0.0, %v1421
      %1423 = vdwg.mxu0
      %v1424 = vadd.f32 %v1227, %v1400
      %v1425 = vadd.f32 %v1228, %v1402
      %v1426 = vadd.f32 %v1229, %v1405
      %v1427 = vadd.f32 %v1230, %v1407
      %v1428 = vadd.f32 %v1231, %v1410
      %v1429 = vadd.f32 %v1232, %v1412
      %v1430 = vadd.f32 %v1233, %v1415
      %v1431 = vadd.f32 %v1234, %v1417
      %v1432 = vadd.f32 %v1235, %v1420
      %v1433 = vadd.f32 %v1236, %v1422
      %v1434 = vld [vmem:[%s234 + $0xc] sm:$0xe]
      %s1435 = scalar_lea.vmem %s1, 448
      %v1436 = vld [vmem:[%s1435] sm:$0xf]
      %v1437 = vld [vmem:[%s1435 + $0x4] sm:$0xf]
      %v1438 = vld [vmem:[%s1435 + $0x8] sm:$0xf]
      %v1439 = vld [vmem:[%s1435 + $0xc] sm:$0xf]
      %v1440 = vld [vmem:[%s1435 + $0x10] sm:$0xf]
      %v1441 = vld [vmem:[%s1435 + $0x14] sm:$0xf]
      %v1442 = vld [vmem:[%s1435 + $0x18] sm:$0xf]
      %v1443 = vld [vmem:[%s1435 + $0x1c] sm:$0xf]
      %v1444 = vld [vmem:[%s1435 + $0x20] sm:$0xf]
      %v1445 = vld [vmem:[%s1435 + $0x24] sm:$0xf]
      %v1446 = vld [vmem:[%s1435 + $0x28] sm:$0xf]
      %v1447 = vld [vmem:[%s1435 + $0x2c] sm:$0xf]
      %v1448 = vld [vmem:[%s1435 + $0x30] sm:$0xf]
      %v1449 = vld [vmem:[%s1435 + $0x34] sm:$0xf]
      %v1450 = vld [vmem:[%s1435 + $0x38] sm:$0xf]
      %v1451 = vld [vmem:[%s1435 + $0x3c] sm:$0xf]
      %v1453 = vunpack.c.l.b16 %v1434
      %v1454 = vpack.c.b16 %v1277, %v1453
      %vm1455 = vcmask 1046528
      %v1456 = vrot.slane %v1454, 1
      %v1457 = vrot.slane %v1288, 1
      %v1458 = vsel %vm1455, %v1456, %v1457
      %v1459 = vrot.slane %v1289, 1
      %v1460 = vsel %vm1455, %v1457, %v1459
      %v1461 = vrot.slane %v1290, 1
      %v1462 = vsel %vm1455, %v1459, %v1461
      %v1463 = vrot.slane %v1291, 1
      %v1464 = vsel %vm1455, %v1461, %v1463
      %v1465 = vrot.slane %v1292, 1
      %v1466 = vsel %vm1455, %v1463, %v1465
      %v1488 = vunpack.c.l.b16 %v1436
      %v1489 = vunpack.c.l.b16 %v1437
      %v1490 = vunpack.c.l.b16 %v1438
      %v1491 = vunpack.c.l.b16 %v1439
      %v1492 = vunpack.c.l.b16 %v1440
      %v1493 = vunpack.c.l.b16 %v1441
      %v1494 = vunpack.c.l.b16 %v1442
      %v1495 = vunpack.c.l.b16 %v1443
      %v1496 = vunpack.c.l.b16 %v1444
      %v1497 = vunpack.c.l.b16 %v1445
      %v1498 = vunpack.c.l.b16 %v1446
      %v1499 = vunpack.c.l.b16 %v1447
      %v1500 = vunpack.c.l.b16 %v1448
      %v1501 = vunpack.c.l.b16 %v1449
      %v1502 = vunpack.c.l.b16 %v1450
      %v1503 = vunpack.c.l.b16 %v1451
      %v1504 = vpack.c.b16 %v1489, %v1488
      %v1505 = vpack.c.b16 %v1491, %v1490
      %v1506 = vpack.c.b16 %v1493, %v1492
      %v1507 = vpack.c.b16 %v1495, %v1494
      %v1508 = vpack.c.b16 %v1497, %v1496
      %v1509 = vpack.c.b16 %v1499, %v1498
      %v1510 = vpack.c.b16 %v1501, %v1500
      %v1511 = vpack.c.b16 %v1503, %v1502
      %1520 = vmatpush.bf16.msra.mxu0 %v1511
      %1521 = vmatpush.bf16.msra.mxu0 %v1510
      %1522 = vmatpush.bf16.msra.mxu0 %v1509
      %1523 = vmatpush.bf16.msra.mxu0 %v1508
      %1524 = vmatpush.bf16.msra.mxu0 %v1507
      %1525 = vmatpush.bf16.msra.mxu0 %v1506
      %1526 = vmatpush.bf16.msra.mxu0 %v1505
      %1527 = vmatpush.bf16.msra.mxu0 %v1504
      %1528 = vmatmul.bf16.gmra.mxu0 %v1458
      %v1529 = vpop.f32.mrf.mxu0
      %v1530 = vadd.f32 0.0, %v1529
      %v1531 = vpop.f32.mrf.mxu0
      %v1532 = vadd.f32 0.0, %v1531
      %1533 = vmatmul.bf16.gmra.mxu0 %v1460
      %v1534 = vpop.f32.mrf.mxu0
      %v1535 = vadd.f32 0.0, %v1534
      %v1536 = vpop.f32.mrf.mxu0
      %v1537 = vadd.f32 0.0, %v1536
      %1538 = vmatmul.bf16.gmra.mxu0 %v1462
      %v1539 = vpop.f32.mrf.mxu0
      %v1540 = vadd.f32 0.0, %v1539
      %v1541 = vpop.f32.mrf.mxu0
      %v1542 = vadd.f32 0.0, %v1541
      %1543 = vmatmul.bf16.gmra.mxu0 %v1464
      %v1544 = vpop.f32.mrf.mxu0
      %v1545 = vadd.f32 0.0, %v1544
      %v1546 = vpop.f32.mrf.mxu0
      %v1547 = vadd.f32 0.0, %v1546
      %1548 = vmatmul.bf16.gmra.mxu0 %v1466
      %v1549 = vpop.f32.mrf.mxu0
      %v1550 = vadd.f32 0.0, %v1549
      %v1551 = vpop.f32.mrf.mxu0
      %v1552 = vadd.f32 0.0, %v1551
      %1553 = vdwg.mxu0
      %v1554 = vadd.f32 %v1424, %v1530
      %v1555 = vadd.f32 %v1425, %v1532
      %v1556 = vadd.f32 %v1426, %v1535
      %v1557 = vadd.f32 %v1427, %v1537
      %v1558 = vadd.f32 %v1428, %v1540
      %v1559 = vadd.f32 %v1429, %v1542
      %v1560 = vadd.f32 %v1430, %v1545
      %v1561 = vadd.f32 %v1431, %v1547
      %v1562 = vadd.f32 %v1432, %v1550
      %v1563 = vadd.f32 %v1433, %v1552
      %v1564 = vld [vmem:[%s234 + $0x34] sm:$0x3]
      %s1565 = scalar_lea.vmem %s1, 512
      %v1566 = vld [vmem:[%s1565] sm:$0xf]
      %v1567 = vld [vmem:[%s1565 + $0x4] sm:$0xf]
      %v1568 = vld [vmem:[%s1565 + $0x8] sm:$0xf]
      %v1569 = vld [vmem:[%s1565 + $0xc] sm:$0xf]
      %v1570 = vld [vmem:[%s1565 + $0x10] sm:$0xf]
      %v1571 = vld [vmem:[%s1565 + $0x14] sm:$0xf]
      %v1572 = vld [vmem:[%s1565 + $0x18] sm:$0xf]
      %v1573 = vld [vmem:[%s1565 + $0x1c] sm:$0xf]
      %v1574 = vld [vmem:[%s1565 + $0x20] sm:$0xf]
      %v1575 = vld [vmem:[%s1565 + $0x24] sm:$0xf]
      %v1576 = vld [vmem:[%s1565 + $0x28] sm:$0xf]
      %v1577 = vld [vmem:[%s1565 + $0x2c] sm:$0xf]
      %v1578 = vld [vmem:[%s1565 + $0x30] sm:$0xf]
      %v1579 = vld [vmem:[%s1565 + $0x34] sm:$0xf]
      %v1580 = vld [vmem:[%s1565 + $0x38] sm:$0xf]
      %v1581 = vld [vmem:[%s1565 + $0x3c] sm:$0xf]
      %v1583 = vunpack.c.l.b16 %v1564
      %v1584 = vpack.c.b16 %v1583, %v1583
      %vm1585 = vsmask.f32 6400
      %v1587 = vshrl.u32 %v1454, 16
      %v1589 = vrot.slane %v1587, 1
      %v1590 = vshll.u32 %v1454, 16
      %v1592 = vrot.slane %v1590, 2
      %v1593 = vor.u32 %v1589, %v1592
      %v1594 = vrot.slane %v1305, 1
      %v1595 = vrot.slane %v1301, 2
      %v1596 = vor.u32 %v1594, %v1595
      %v1597 = vsel %vm1585, %v1593, %v1596
      %v1598 = vrot.slane %v1313, 1
      %v1599 = vrot.slane %v1309, 2
      %v1600 = vor.u32 %v1598, %v1599
      %v1601 = vsel %vm1585, %v1596, %v1600
      %v1602 = vrot.slane %v1321, 1
      %v1603 = vrot.slane %v1317, 2
      %v1604 = vor.u32 %v1602, %v1603
      %v1605 = vsel %vm1585, %v1600, %v1604
      %v1606 = vrot.slane %v1329, 1
      %v1607 = vrot.slane %v1325, 2
      %v1608 = vor.u32 %v1606, %v1607
      %v1609 = vsel %vm1585, %v1604, %v1608
      %v1611 = vshrl.u32 %v1584, 16
      %v1613 = vrot.slane %v1611, 1
      %v1614 = vshll.u32 %v1584, 16
      %v1616 = vrot.slane %v1614, 2
      %v1617 = vor.u32 %v1613, %v1616
      %v1618 = vsel %vm1585, %v1608, %v1617
      %v1640 = vunpack.c.l.b16 %v1566
      %v1641 = vunpack.c.l.b16 %v1567
      %v1642 = vunpack.c.l.b16 %v1568
      %v1643 = vunpack.c.l.b16 %v1569
      %v1644 = vunpack.c.l.b16 %v1570
      %v1645 = vunpack.c.l.b16 %v1571
      %v1646 = vunpack.c.l.b16 %v1572
      %v1647 = vunpack.c.l.b16 %v1573
      %v1648 = vunpack.c.l.b16 %v1574
      %v1649 = vunpack.c.l.b16 %v1575
      %v1650 = vunpack.c.l.b16 %v1576
      %v1651 = vunpack.c.l.b16 %v1577
      %v1652 = vunpack.c.l.b16 %v1578
      %v1653 = vunpack.c.l.b16 %v1579
      %v1654 = vunpack.c.l.b16 %v1580
      %v1655 = vunpack.c.l.b16 %v1581
      %v1656 = vpack.c.b16 %v1641, %v1640
      %v1657 = vpack.c.b16 %v1643, %v1642
      %v1658 = vpack.c.b16 %v1645, %v1644
      %v1659 = vpack.c.b16 %v1647, %v1646
      %v1660 = vpack.c.b16 %v1649, %v1648
      %v1661 = vpack.c.b16 %v1651, %v1650
      %v1662 = vpack.c.b16 %v1653, %v1652
      %v1663 = vpack.c.b16 %v1655, %v1654
      %1672 = vmatpush.bf16.msra.mxu0 %v1663
      %1673 = vmatpush.bf16.msra.mxu0 %v1662
      %1674 = vmatpush.bf16.msra.mxu0 %v1661
      %1675 = vmatpush.bf16.msra.mxu0 %v1660
      %1676 = vmatpush.bf16.msra.mxu0 %v1659
      %1677 = vmatpush.bf16.msra.mxu0 %v1658
      %1678 = vmatpush.bf16.msra.mxu0 %v1657
      %1679 = vmatpush.bf16.msra.mxu0 %v1656
      %1680 = vmatmul.bf16.gmra.mxu0 %v1597
      %v1681 = vpop.f32.mrf.mxu0
      %v1682 = vadd.f32 0.0, %v1681
      %v1683 = vpop.f32.mrf.mxu0
      %v1684 = vadd.f32 0.0, %v1683
      %1685 = vmatmul.bf16.gmra.mxu0 %v1601
      %v1686 = vpop.f32.mrf.mxu0
      %v1687 = vadd.f32 0.0, %v1686
      %v1688 = vpop.f32.mrf.mxu0
      %v1689 = vadd.f32 0.0, %v1688
      %1690 = vmatmul.bf16.gmra.mxu0 %v1605
      %v1691 = vpop.f32.mrf.mxu0
      %v1692 = vadd.f32 0.0, %v1691
      %v1693 = vpop.f32.mrf.mxu0
      %v1694 = vadd.f32 0.0, %v1693
      %1695 = vmatmul.bf16.gmra.mxu0 %v1609
      %v1696 = vpop.f32.mrf.mxu0
      %v1697 = vadd.f32 0.0, %v1696
      %v1698 = vpop.f32.mrf.mxu0
      %v1699 = vadd.f32 0.0, %v1698
      %1700 = vmatmul.bf16.gmra.mxu0 %v1618
      %v1701 = vpop.f32.mrf.mxu0
      %v1702 = vadd.f32 0.0, %v1701
      %v1703 = vpop.f32.mrf.mxu0
      %v1704 = vadd.f32 0.0, %v1703
      %1705 = vdwg.mxu0
      %v1706 = vadd.f32 %v1554, %v1682
      %v1707 = vadd.f32 %v1555, %v1684
      %v1708 = vadd.f32 %v1556, %v1687
      %v1709 = vadd.f32 %v1557, %v1689
      %v1710 = vadd.f32 %v1558, %v1692
      %v1711 = vadd.f32 %v1559, %v1694
      %v1712 = vadd.f32 %v1560, %v1697
      %v1713 = vadd.f32 %v1561, %v1699
      %v1714 = vadd.f32 %v1562, %v1702
      %v1715 = vadd.f32 %v1563, %v1704
      %v1716 = vld [vmem:[%s2] sm:$0x1]
      %v1718 = vperm.slane %v1716, 0
      %v1720 = vadd.f32 %v1706, %v1718
      %v1721 = vadd.f32 %v1707, %v1718
      %v1722 = vadd.f32 %v1708, %v1718
      %v1723 = vadd.f32 %v1709, %v1718
      %v1724 = vadd.f32 %v1710, %v1718
      %v1725 = vadd.f32 %v1711, %v1718
      %v1726 = vadd.f32 %v1712, %v1718
      %v1727 = vadd.f32 %v1713, %v1718
      %v1728 = vadd.f32 %v1714, %v1718
      %v1729 = vadd.f32 %v1715, %v1718
      %v1730 = vmax.f32 %v1720, 0.0
      %v1731 = vmax.f32 %v1721, 0.0
      %v1732 = vmax.f32 %v1722, 0.0
      %v1733 = vmax.f32 %v1723, 0.0
      %v1734 = vmax.f32 %v1724, 0.0
      %v1735 = vmax.f32 %v1725, 0.0
      %v1736 = vmax.f32 %v1726, 0.0
      %v1737 = vmax.f32 %v1727, 0.0
      %v1738 = vmax.f32 %v1728, 0.0
      %v1739 = vmax.f32 %v1729, 0.0
      %v1740 = vld [vmem:[%s3] sm:$0xff]
      %v1741 = vld [vmem:[%s3 + $0x8] sm:$0xff]
      %v1742 = vld [vmem:[%s3 + $0x10] sm:$0xff]
      %v1743 = vld [vmem:[%s3 + $0x18] sm:$0xff]
      %v1744 = vld [vmem:[%s3 + $0x20] sm:$0xff]
      %v1745 = vld [vmem:[%s3 + $0x28] sm:$0xff]
      %v1746 = vld [vmem:[%s3 + $0x30] sm:$0xff]
      %v1747 = vld [vmem:[%s3 + $0x38] sm:$0xff]
      %v1748 = vld [vmem:[%s3 + $0x40] sm:$0xff]
      %v1749 = vld [vmem:[%s3 + $0x48] sm:$0xff]
      %1751 = vset.pattern.permute.xlu0 0
      %1752 = vperm.xlu0 %1751, %v1740
      %v1753 = vpop.permute.xlu0 %1752
      %1756 = vset.pattern.permute.xlu0 0
      %1757 = vperm.xlu0 %1756, %v1741
      %v1758 = vpop.permute.xlu0 %1757
      %1761 = vset.pattern.permute.xlu0 0
      %1762 = vperm.xlu0 %1761, %v1742
      %v1763 = vpop.permute.xlu0 %1762
      %1766 = vset.pattern.permute.xlu0 0
      %1767 = vperm.xlu0 %1766, %v1743
      %v1768 = vpop.permute.xlu0 %1767
      %1771 = vset.pattern.permute.xlu0 0
      %1772 = vperm.xlu0 %1771, %v1744
      %v1773 = vpop.permute.xlu0 %1772
      %1776 = vset.pattern.permute.xlu0 0
      %1777 = vperm.xlu0 %1776, %v1745
      %v1778 = vpop.permute.xlu0 %1777
      %1781 = vset.pattern.permute.xlu0 0
      %1782 = vperm.xlu0 %1781, %v1746
      %v1783 = vpop.permute.xlu0 %1782
      %1786 = vset.pattern.permute.xlu0 0
      %1787 = vperm.xlu0 %1786, %v1747
      %v1788 = vpop.permute.xlu0 %1787
      %1791 = vset.pattern.permute.xlu0 0
      %1792 = vperm.xlu0 %1791, %v1748
      %v1793 = vpop.permute.xlu0 %1792
      %1796 = vset.pattern.permute.xlu0 0
      %1797 = vperm.xlu0 %1796, %v1749
      %v1798 = vpop.permute.xlu0 %1797
      %v1800 = vmul.f32 %v1730, %v1753
      %v1801 = vmul.f32 %v1731, %v1758
      %v1802 = vmul.f32 %v1732, %v1763
      %v1803 = vmul.f32 %v1733, %v1768
      %v1804 = vmul.f32 %v1734, %v1773
      %v1805 = vmul.f32 %v1735, %v1778
      %v1806 = vmul.f32 %v1736, %v1783
      %v1807 = vmul.f32 %v1737, %v1788
      %v1808 = vmul.f32 %v1738, %v1793
      %v1809 = vmul.f32 %v1739, %v1798
      %v1810 = vld [vmem:[%s239 + $0x8] sm:$0xf]
      %v1811 = vld [vmem:[%s239 + $0xc] sm:$0xf]
      %v1812 = vld [vmem:[%s239 + $0x10] sm:$0xf]
      %v1813 = vld [vmem:[%s239 + $0x14] sm:$0xf]
      %v1814 = vld [vmem:[%s239 + $0x18] sm:$0xf]
      %v1815 = vld [vmem:[%s239 + $0x1c] sm:$0xf]
      %v1816 = vld [vmem:[%s239 + $0x20] sm:$0xf]
      %v1817 = vld [vmem:[%s239 + $0x24] sm:$0xf]
      %v1818 = vld [vmem:[%s239 + $0x28] sm:$0xf]
      %v1819 = vld [vmem:[%s239 + $0x2c] sm:$0xf]
      %v1820 = vunpack.c.l.bf16 %v1810
      %v1821 = vunpack.c.l.bf16 %v1811
      %v1822 = vunpack.c.l.bf16 %v1812
      %v1823 = vunpack.c.l.bf16 %v1813
      %v1824 = vunpack.c.l.bf16 %v1814
      %v1825 = vunpack.c.l.bf16 %v1815
      %v1826 = vunpack.c.l.bf16 %v1816
      %v1827 = vunpack.c.l.bf16 %v1817
      %v1828 = vunpack.c.l.bf16 %v1818
      %v1829 = vunpack.c.l.bf16 %v1819
      %v1830 = vadd.f32 %v1800, %v1820
      %v1831 = vadd.f32 %v1801, %v1821
      %v1832 = vadd.f32 %v1802, %v1822
      %v1833 = vadd.f32 %v1803, %v1823
      %v1834 = vadd.f32 %v1804, %v1824
      %v1835 = vadd.f32 %v1805, %v1825
      %v1836 = vadd.f32 %v1806, %v1826
      %v1837 = vadd.f32 %v1807, %v1827
      %v1838 = vadd.f32 %v1808, %v1828
      %v1839 = vadd.f32 %v1809, %v1829
      %1840 = vst [vmem:[%s244] sm:$0xf] 0
      %1841 = vst [vmem:[%s244 + $0x4] sm:$0xf] 0
      %1842 = vst [vmem:[%s244 + $0x8] sm:$0xf] 0
      %1843 = vst [vmem:[%s244 + $0xc] sm:$0xf] 0
      %1844 = vst [vmem:[%s244 + $0x10] sm:$0xf] 0
      %1845 = vst [vmem:[%s244 + $0x14] sm:$0xf] 0
      %1846 = vst [vmem:[%s244 + $0x18] sm:$0xf] 0
      %1847 = vst [vmem:[%s244 + $0x1c] sm:$0xf] 0
      %1848 = vst [vmem:[%s244 + $0x20] sm:$0xf] 0
      %1849 = vst [vmem:[%s244 + $0x24] sm:$0xf] 0
      %1850 = vst [vmem:[%s244 + $0x28] sm:$0xf] 0
      %1851 = vst [vmem:[%s244 + $0x2c] sm:$0xf] 0
      %1852 = vst [vmem:[%s244 + $0x30] sm:$0xf] 0
      %1853 = vst [vmem:[%s244 + $0x34] sm:$0xf] 0
      %v1854 = vpack.c.bf16 %v1830, %v1830
      %v1855 = vpack.c.bf16 %v1831, %v1831
      %v1856 = vpack.c.bf16 %v1832, %v1832
      %v1857 = vpack.c.bf16 %v1833, %v1833
      %v1858 = vpack.c.bf16 %v1834, %v1834
      %v1859 = vpack.c.bf16 %v1835, %v1835
      %v1860 = vpack.c.bf16 %v1836, %v1836
      %v1861 = vpack.c.bf16 %v1837, %v1837
      %v1862 = vpack.c.bf16 %v1838, %v1838
      %v1863 = vpack.c.bf16 %v1839, %v1839
      %1864 = vst [vmem:[%s244 + $0x8] sm:$0xf] %v1854
      %1865 = vst [vmem:[%s244 + $0xc] sm:$0xf] %v1855
      %1866 = vst [vmem:[%s244 + $0x10] sm:$0xf] %v1856
      %1867 = vst [vmem:[%s244 + $0x14] sm:$0xf] %v1857
      %1868 = vst [vmem:[%s244 + $0x18] sm:$0xf] %v1858
      %1869 = vst [vmem:[%s244 + $0x1c] sm:$0xf] %v1859
      %1870 = vst [vmem:[%s244 + $0x20] sm:$0xf] %v1860
      %1871 = vst [vmem:[%s244 + $0x24] sm:$0xf] %v1861
      %1872 = vst [vmem:[%s244 + $0x28] sm:$0xf] %v1862
      %1873 = vst [vmem:[%s244 + $0x2c] sm:$0xf] %v1863
      %p1874 = scmp.lt.s32.totalorder %s16, 1
      %s1875 = scalar_select %p1874, %s16, 1
      %s1876 = smul.addr %s1875, 14
      %s1877 = smul.addr %s1876, 4
      %s1878 = scalar_lea.vmem %s5, %s1877
      // Predicated region
      $region41: #{encode_block_forward.9} parent=39 // pred_check
        %p1879 = pneg %p149
      $region42: #{encode_block_forward.9} parent=39 // pred_check_branch
        %1881 = sbr.rel (%p1879) target = $region44
      $region43: #{encode_block_forward.9} parent=39 // pred_region
        _
      $region44: #{encode_block_forward.9} parent=39 // pred_fallthru
        _
    $region40: #{encode_block_forward.9} parent=5 // pred_fallthru
      _
    %p1882 = scmp.le.s32.totalorder 2, %s11
    // Predicated region
    $region45: #{encode_block_forward.9} parent=5 // pred_check
      %p1883 = pneg %p1882
    $region46: #{encode_block_forward.9} parent=5 // pred_check_branch
      %1885 = sbr.rel (%p1883) target = $region48
    $region47: #{encode_block_forward.9} parent=5 // pred_region
      %s1886 = ssub.s32 %s11, 2
      // Predicated region
      $region49: #{encode_block_forward.9} parent=47 // pred_check
        %p1887 = pneg %p155
      $region50: #{encode_block_forward.9} parent=47 // pred_check_branch
        %1889 = sbr.rel (%p1887) target = $region52
      $region51: #{encode_block_forward.9} parent=47 // pred_region
        %p1890 = scmp.lt.s32.totalorder %s17, 1
        %s1891 = scalar_select %p1890, %s17, 1
        %s1892 = smul.addr %s1891, 14
        %s1893 = smul.addr %s1892, 4
        %s1894 = scalar_lea.vmem %s5, %s1893
      $region52: #{encode_block_forward.9} parent=47 // pred_fallthru
        _
    $region48: #{encode_block_forward.9} parent=5 // pred_fallthru
      _
  $region6: #{encode_block_forward.9} parent=0 // loop_footer
    %s15 = sadd.s32 1, %s11
  $region7: #{encode_block_forward.9} parent=0 // loop_footer_branch
    %10 = sbr.rel target = $region3
  $region8: #{encode_block_forward.9} parent=0 // loop_exit
    _

// kernel: encode_block_forward.6
$region0: #{encode_block_forward.6}
  #allocation0 [shape = 'u32[]', space=smem, size = 0x4, offset = 0x4, fixed_abs, tag = 'smem constant byte address 0x4 - core index']
  #allocation1 [shape = 'u32[72,128]{1,0:T(1,128)}', space=vmem, size = 0x9000, scoped, tag = 'internal scratch']
  %s0 = inlined_call_operand.vmem [shape: bf16[2,112,128], index: 0, kind: input, shape index: {}]
  %s1 = inlined_call_operand.vmem [shape: bf16[9,128,128], index: 1, kind: input, shape index: {}]
  %s2 = inlined_call_operand.vmem [shape: f32[1,128], index: 2, kind: input, shape index: {}]
  %s3 = inlined_call_operand.vmem [shape: f32[80,1], index: 3, kind: input, shape index: {}]
  %s4 = inlined_call_operand.vmem [shape: bf16[2,112,128], index: 4, kind: output, shape index: {}]
  %s5 = sld [smem:[#allocation0]]
  $region49: #{encode_block_forward.6} parent=0
    _
  %s7 = ssub.s32 1, %s5
  %s8 = scalar_select 0, %s7, %s5
  loop: start=0, step=1, limit=4
  $region2: #{encode_block_forward.6} parent=0 // loop_pre_header
    _
  $region3: #{encode_block_forward.6} parent=0 // loop_header
    %s10 = sphi 0, %s14
    %p11 = scmp.ge.s32.totalorder %s10, 4
    %s20 = sphi 0, %s22
    %s23 = sphi 0, %s20
    %s24 = sphi 0, %s23
    %s40 = sphi 0, %s24
    %s44 = sphi 0, %s44
    %s46 = sphi 0, %s44
    %s47 = sphi 0, %s46
    %s61 = sphi 0, %s47
    %s65 = sphi 0, %s65
    %s67 = sphi 0, %s65
    %s68 = sphi 0, %s67
    %s82 = sphi 0, %s68
    %s86 = sphi 0, %s86
    %s88 = sphi 0, %s86
    %s89 = sphi 0, %s88
    %s103 = sphi 0, %s89
    %s109 = sphi 0, %s111
    %s112 = sphi 0, %s109
    %s113 = sphi 0, %s112
    %s129 = sphi 0, %s113
  $region4: #{encode_block_forward.6} parent=0 // loop_header_branch
    %13 = sbr.rel (%p11) target = $region8
  $region5: #{encode_block_forward.6} parent=0 // loop_body
    %s15 = ssub.s32 %s10, 1
    %s16 = ssub.s32 %s10, 2
    %s17 = sadd.s32 %s10, 1
    %s18 = ssub.s32 %s10, %s17
    %p19 = scmp.eq.s32.totalorder %s18, 0
    %s21 = sadd.s32 %s20, 1
    %s22 = scalar_select %p19, %s20, %s21
    %p25 = pneg %p19
    %p26 = scmp.eq.s32.totalorder %s10, 1
    %p27 = por %p25, %p26
    %p28 = scmp.ne.s32.totalorder %s20, %s23
    %p29 = scmp.eq.s32.totalorder %s10, 0
    %p30 = por %p28, %p29
    %p31 = scmp.ne.s32.totalorder %s20, %s23
    %p32 = scmp.eq.s32.totalorder %s15, 1
    %p33 = por %p31, %p32
    %p34 = scmp.ne.s32.totalorder %s23, %s24
    %p35 = scmp.eq.s32.totalorder %s15, 0
    %p36 = por %p34, %p35
    %p37 = scmp.ne.s32.totalorder %s23, %s24
    %p38 = scmp.eq.s32.totalorder %s16, 1
    %p39 = por %p37, %p38
    %p41 = scmp.ne.s32.totalorder %s24, %s40
    %p42 = scmp.eq.s32.totalorder %s16, 0
    %p43 = por %p41, %p42
    %s45 = sadd.s32 %s44, 1
    %p48 = scmp.eq.s32.totalorder %s10, 1
    %p49 = scmp.ne.s32.totalorder %s44, %s46
    %p50 = scmp.eq.s32.totalorder %s10, 0
    %p51 = por %p49, %p50
    %p52 = scmp.ne.s32.totalorder %s44, %s46
    %p53 = scmp.eq.s32.totalorder %s15, 1
    %p54 = por %p52, %p53
    %p55 = scmp.ne.s32.totalorder %s46, %s47
    %p56 = scmp.eq.s32.totalorder %s15, 0
    %p57 = por %p55, %p56
    %p58 = scmp.ne.s32.totalorder %s46, %s47
    %p59 = scmp.eq.s32.totalorder %s16, 1
    %p60 = por %p58, %p59
    %p62 = scmp.ne.s32.totalorder %s47, %s61
    %p63 = scmp.eq.s32.totalorder %s16, 0
    %p64 = por %p62, %p63
    %s66 = sadd.s32 %s65, 1
    %p69 = scmp.eq.s32.totalorder %s10, 1
    %p70 = scmp.ne.s32.totalorder %s65, %s67
    %p71 = scmp.eq.s32.totalorder %s10, 0
    %p72 = por %p70, %p71
    %p73 = scmp.ne.s32.totalorder %s65, %s67
    %p74 = scmp.eq.s32.totalorder %s15, 1
    %p75 = por %p73, %p74
    %p76 = scmp.ne.s32.totalorder %s67, %s68
    %p77 = scmp.eq.s32.totalorder %s15, 0
    %p78 = por %p76, %p77
    %p79 = scmp.ne.s32.totalorder %s67, %s68
    %p80 = scmp.eq.s32.totalorder %s16, 1
    %p81 = por %p79, %p80
    %p83 = scmp.ne.s32.totalorder %s68, %s82
    %p84 = scmp.eq.s32.totalorder %s16, 0
    %p85 = por %p83, %p84
    %s87 = sadd.s32 %s86, 1
    %p90 = scmp.eq.s32.totalorder %s10, 1
    %p91 = scmp.ne.s32.totalorder %s86, %s88
    %p92 = scmp.eq.s32.totalorder %s10, 0
    %p93 = por %p91, %p92
    %p94 = scmp.ne.s32.totalorder %s86, %s88
    %p95 = scmp.eq.s32.totalorder %s15, 1
    %p96 = por %p94, %p95
    %p97 = scmp.ne.s32.totalorder %s88, %s89
    %p98 = scmp.eq.s32.totalorder %s15, 0
    %p99 = por %p97, %p98
    %p100 = scmp.ne.s32.totalorder %s88, %s89
    %p101 = scmp.eq.s32.totalorder %s16, 1
    %p102 = por %p100, %p101
    %p104 = scmp.ne.s32.totalorder %s89, %s103
    %p105 = scmp.eq.s32.totalorder %s16, 0
    %p106 = por %p104, %p105
    %s107 = ssub.s32 %s10, %s17
    %p108 = scmp.eq.s32.totalorder %s107, 0
    %s110 = sadd.s32 %s109, 1
    %s111 = scalar_select %p108, %s109, %s110
    %p114 = pneg %p108
    %p115 = scmp.eq.s32.totalorder %s10, 1
    %p116 = por %p114, %p115
    %p117 = scmp.ne.s32.totalorder %s109, %s112
    %p118 = scmp.eq.s32.totalorder %s10, 0
    %p119 = por %p117, %p118
    %p120 = scmp.ne.s32.totalorder %s109, %s112
    %p121 = scmp.eq.s32.totalorder %s15, 1
    %p122 = por %p120, %p121
    %p123 = scmp.ne.s32.totalorder %s112, %s113
    %p124 = scmp.eq.s32.totalorder %s15, 0
    %p125 = por %p123, %p124
    %p126 = scmp.ne.s32.totalorder %s112, %s113
    %p127 = scmp.eq.s32.totalorder %s16, 1
    %p128 = por %p126, %p127
    %p130 = scmp.ne.s32.totalorder %s113, %s129
    %p131 = scmp.eq.s32.totalorder %s16, 0
    %p132 = por %p130, %p131
    %p133 = scmp.le.s32.totalorder 1, %s10
    %p134 = scmp.lt.s32.totalorder %s10, 3
    %p135 = pnand %p133, %p134
    %p136 = pneg %p135
    // Predicated region
    $region9: #{encode_block_forward.6} parent=5 // pred_check
      _
    $region10: #{encode_block_forward.6} parent=5 // pred_check_branch
      %138 = sbr.rel (%p135) target = $region12
    $region11: #{encode_block_forward.6} parent=5 // pred_region
      %s139 = ssub.s32 %s10, 1
      // Predicated region
      $region13: #{encode_block_forward.6} parent=11 // pred_check
        %p140 = pneg %p57
      $region14: #{encode_block_forward.6} parent=11 // pred_check_branch
        %142 = sbr.rel (%p140) target = $region16
      $region15: #{encode_block_forward.6} parent=11 // pred_region
        _
      $region16: #{encode_block_forward.6} parent=11 // pred_fallthru
        _
      // Predicated region
      $region17: #{encode_block_forward.6} parent=11 // pred_check
        %p143 = pneg %p78
      $region18: #{encode_block_forward.6} parent=11 // pred_check_branch
        %145 = sbr.rel (%p143) target = $region20
      $region19: #{encode_block_forward.6} parent=11 // pred_region
        _
      $region20: #{encode_block_forward.6} parent=11 // pred_fallthru
        _
      // Predicated region
      $region21: #{encode_block_forward.6} parent=11 // pred_check
        %p146 = pneg %p99
      $region22: #{encode_block_forward.6} parent=11 // pred_check_branch
        %148 = sbr.rel (%p146) target = $region24
      $region23: #{encode_block_forward.6} parent=11 // pred_region
        _
      $region24: #{encode_block_forward.6} parent=11 // pred_fallthru
        _
    $region12: #{encode_block_forward.6} parent=5 // pred_fallthru
      _
    %p149 = scmp.lt.s32.totalorder %s10, 2
    // Predicated region
    $region25: #{encode_block_forward.6} parent=5 // pred_check
      %p150 = pneg %p149
    $region26: #{encode_block_forward.6} parent=5 // pred_check_branch
      %152 = sbr.rel (%p150) target = $region28
    $region27: #{encode_block_forward.6} parent=5 // pred_region
      // Predicated region
      $region29: #{encode_block_forward.6} parent=27 // pred_check
        %p153 = pneg %p30
      $region30: #{encode_block_forward.6} parent=27 // pred_check_branch
        %155 = sbr.rel (%p153) target = $region32
      $region31: #{encode_block_forward.6} parent=27 // pred_region
        %p156 = scmp.lt.s32.totalorder %s10, 1
        %s157 = scalar_select %p156, %s10, 1
        %s158 = smul.addr %s157, 14
        %s159 = smul.addr %s158, 4
        %s160 = scalar_lea.vmem %s0, %s159
      $region32: #{encode_block_forward.6} parent=27 // pred_fallthru
        _
    $region28: #{encode_block_forward.6} parent=5 // pred_fallthru
      _
    %p161 = scmp.le.s32.totalorder 1, %s10
    %p162 = scmp.lt.s32.totalorder %s10, 3
    %p163 = pnand %p161, %p162
    %p164 = pneg %p163
    // Predicated region
    $region33: #{encode_block_forward.6} parent=5 // pred_check
      _
    $region34: #{encode_block_forward.6} parent=5 // pred_check_branch
      %166 = sbr.rel (%p163) target = $region36
    $region35: #{encode_block_forward.6} parent=5 // pred_region
      %s167 = ssub.s32 %s10, 1
      %p168 = scmp.lt.s32.totalorder %s15, 1
      %s169 = scalar_select %p168, %s15, 1
      %s170 = smul.addr %s169, 14
      %s171 = smul.addr %s170, 4
      %s172 = scalar_lea.vmem %s0, %s171
      %p173 = pneg %p36
      %p174 = pneg %p33
      %p175 = pneg %p57
      %p176 = pneg %p54
      %p177 = pneg %p78
      %p178 = pneg %p75
      %p179 = pneg %p99
      %p180 = pneg %p96
      %p181 = pneg %p125
      %p182 = pneg %p122
      %p183 = scmp.lt.s32.totalorder %s15, 1
      %s184 = scalar_select %p183, %s15, 1
      %s185 = smul.addr %s184, 14
      %s186 = smul.addr %s185, 4
      %s187 = scalar_lea.vmem %s4, %s186
      %p188 = scmp.lt.s32.totalorder %s15, 1
      %s189 = scalar_select %p188, %s15, 1
      %s190 = smul.addr %s189, 14
      %s191 = smul.addr %s190, 4
      %s192 = scalar_lea.vmem %s0, %s191
      %p193 = scmp.lt.s32.totalorder %s15, 1
      %s194 = scalar_select %p193, %s15, 1
      %s195 = smul.addr %s194, 14
      %s196 = smul.addr %s195, 4
      %s197 = scalar_lea.vmem %s4, %s196
      %v199 = vld [vmem:[%s192] sm:$0xc]
      %v200 = vld [vmem:[%s192 + $0x4] sm:$0xf]
      %v201 = vld [vmem:[%s192 + $0x8] sm:$0xf]
      %v202 = vld [vmem:[%s192 + $0xc] sm:$0xf]
      %v203 = vld [vmem:[%s192 + $0x10] sm:$0xf]
      %v204 = vld [vmem:[%s192 + $0x14] sm:$0xf]
      %v205 = vld [vmem:[%s192 + $0x18] sm:$0xf]
      %v206 = vld [vmem:[%s192 + $0x1c] sm:$0xf]
      %v207 = vld [vmem:[%s192 + $0x20] sm:$0xf]
      %v208 = vld [vmem:[%s192 + $0x24] sm:$0xf]
      %v209 = vld [vmem:[%s192 + $0x28] sm:$0x7]
      %v210 = vld [vmem:[%s1] sm:$0xf]
      %v211 = vld [vmem:[%s1 + $0x4] sm:$0xf]
      %v212 = vld [vmem:[%s1 + $0x8] sm:$0xf]
      %v213 = vld [vmem:[%s1 + $0xc] sm:$0xf]
      %v214 = vld [vmem:[%s1 + $0x10] sm:$0xf]
      %v215 = vld [vmem:[%s1 + $0x14] sm:$0xf]
      %v216 = vld [vmem:[%s1 + $0x18] sm:$0xf]
      %v217 = vld [vmem:[%s1 + $0x1c] sm:$0xf]
      %v218 = vld [vmem:[%s1 + $0x20] sm:$0xf]
      %v219 = vld [vmem:[%s1 + $0x24] sm:$0xf]
      %v220 = vld [vmem:[%s1 + $0x28] sm:$0xf]
      %v221 = vld [vmem:[%s1 + $0x2c] sm:$0xf]
      %v222 = vld [vmem:[%s1 + $0x30] sm:$0xf]
      %v223 = vld [vmem:[%s1 + $0x34] sm:$0xf]
      %v224 = vld [vmem:[%s1 + $0x38] sm:$0xf]
      %v225 = vld [vmem:[%s1 + $0x3c] sm:$0xf]
      %v226 = vld [vmem:[%s192] sm:$0x8]
      %s227 = scalar_lea.vmem %s1, 64
      %v228 = vld [vmem:[%s227] sm:$0xf]
      %v229 = vld [vmem:[%s227 + $0x4] sm:$0xf]
      %v230 = vld [vmem:[%s227 + $0x8] sm:$0xf]
      %v231 = vld [vmem:[%s227 + $0xc] sm:$0xf]
      %v232 = vld [vmem:[%s227 + $0x10] sm:$0xf]
      %v233 = vld [vmem:[%s227 + $0x14] sm:$0xf]
      %v234 = vld [vmem:[%s227 + $0x18] sm:$0xf]
      %v235 = vld [vmem:[%s227 + $0x1c] sm:$0xf]
      %v236 = vld [vmem:[%s227 + $0x20] sm:$0xf]
      %v237 = vld [vmem:[%s227 + $0x24] sm:$0xf]
      %v238 = vld [vmem:[%s227 + $0x28] sm:$0xf]
      %v239 = vld [vmem:[%s227 + $0x2c] sm:$0xf]
      %v240 = vld [vmem:[%s227 + $0x30] sm:$0xf]
      %v241 = vld [vmem:[%s227 + $0x34] sm:$0xf]
      %v242 = vld [vmem:[%s227 + $0x38] sm:$0xf]
      %v243 = vld [vmem:[%s227 + $0x3c] sm:$0xf]
      %v255 = vunpack.c.l.b16 %v226
      %v256 = vunpack.c.l.b16 %v200
      %v257 = vunpack.c.l.b16 %v201
      %v258 = vunpack.c.l.b16 %v202
      %v259 = vunpack.c.l.b16 %v203
      %v260 = vunpack.c.l.b16 %v204
      %v261 = vunpack.c.l.b16 %v205
      %v262 = vunpack.c.l.b16 %v206
      %v263 = vunpack.c.l.b16 %v207
      %v264 = vunpack.c.l.b16 %v208
      %v265 = vunpack.c.l.b16 %v209
      %v266 = vpack.c.b16 %v256, %v255
      %v267 = vpack.c.b16 %v258, %v257
      %v268 = vpack.c.b16 %v260, %v259
      %v269 = vpack.c.b16 %v262, %v261
      %v270 = vpack.c.b16 %v264, %v263
      %v271 = vpack.c.b16 %v265, %v265
      %vm272 = vcmask 1044480
      %v273 = vrot.slane %v266, 3
      %v274 = vrot.slane %v267, 3
      %v275 = vsel %vm272, %v273, %v274
      %v276 = vrot.slane %v268, 3
      %v277 = vsel %vm272, %v274, %v276
      %v278 = vrot.slane %v269, 3
      %v279 = vsel %vm272, %v276, %v278
      %v280 = vrot.slane %v270, 3
      %v281 = vsel %vm272, %v278, %v280
      %v282 = vrot.slane %v271, 3
      %v283 = vsel %vm272, %v280, %v282
      %v305 = vunpack.c.l.b16 %v228
      %v306 = vunpack.c.l.b16 %v229
      %v307 = vunpack.c.l.b16 %v230
      %v308 = vunpack.c.l.b16 %v231
      %v309 = vunpack.c.l.b16 %v232
      %v310 = vunpack.c.l.b16 %v233
      %v311 = vunpack.c.l.b16 %v234
      %v312 = vunpack.c.l.b16 %v235
      %v313 = vunpack.c.l.b16 %v236
      %v314 = vunpack.c.l.b16 %v237
      %v315 = vunpack.c.l.b16 %v238
      %v316 = vunpack.c.l.b16 %v239
      %v317 = vunpack.c.l.b16 %v240
      %v318 = vunpack.c.l.b16 %v241
      %v319 = vunpack.c.l.b16 %v242
      %v320 = vunpack.c.l.b16 %v243
      %v321 = vpack.c.b16 %v306, %v305
      %v322 = vpack.c.b16 %v308, %v307
      %v323 = vpack.c.b16 %v310, %v309
      %v324 = vpack.c.b16 %v312, %v311
      %v325 = vpack.c.b16 %v314, %v313
      %v326 = vpack.c.b16 %v316, %v315
      %v327 = vpack.c.b16 %v318, %v317
      %v328 = vpack.c.b16 %v320, %v319
      %337 = vmatpush.bf16.msra.mxu0 %v328
      %338 = vmatpush.bf16.msra.mxu0 %v327
      %339 = vmatpush.bf16.msra.mxu0 %v326
      %340 = vmatpush.bf16.msra.mxu0 %v325
      %341 = vmatpush.bf16.msra.mxu0 %v324
      %342 = vmatpush.bf16.msra.mxu0 %v323
      %343 = vmatpush.bf16.msra.mxu0 %v322
      %344 = vmatpush.bf16.msra.mxu0 %v321
      %345 = vmatmul.bf16.gmra.mxu0 %v275
      %v346 = vpop.f32.mrf.mxu0
      %v347 = vadd.f32 0.0, %v346
      %v348 = vpop.f32.mrf.mxu0
      %v349 = vadd.f32 0.0, %v348
      %350 = vmatmul.bf16.gmra.mxu0 %v277
      %v351 = vpop.f32.mrf.mxu0
      %v352 = vadd.f32 0.0, %v351
      %v353 = vpop.f32.mrf.mxu0
      %v354 = vadd.f32 0.0, %v353
      %355 = vmatmul.bf16.gmra.mxu0 %v279
      %v356 = vpop.f32.mrf.mxu0
      %v357 = vadd.f32 0.0, %v356
      %v358 = vpop.f32.mrf.mxu0
      %v359 = vadd.f32 0.0, %v358
      %360 = vmatmul.bf16.gmra.mxu0 %v281
      %v361 = vpop.f32.mrf.mxu0
      %v362 = vadd.f32 0.0, %v361
      %v363 = vpop.f32.mrf.mxu0
      %v364 = vadd.f32 0.0, %v363
      %365 = vmatmul.bf16.gmra.mxu0 %v283
      %v366 = vpop.f32.mrf.mxu0
      %v367 = vadd.f32 0.0, %v366
      %v368 = vpop.f32.mrf.mxu0
      %v369 = vadd.f32 0.0, %v368
      %370 = vdwg.mxu0
      %v372 = vunpack.c.l.b16 %v199
      %v373 = vpack.c.b16 %v256, %v372
      %vm374 = vsmask.f32 5376
      %v376 = vshrl.u32 %v373, 16
      %v378 = vrot.slane %v376, 2
      %v379 = vshll.u32 %v373, 16
      %v381 = vrot.slane %v379, 3
      %v382 = vor.u32 %v378, %v381
      %v384 = vshrl.u32 %v267, 16
      %v386 = vrot.slane %v384, 2
      %v387 = vshll.u32 %v267, 16
      %v389 = vrot.slane %v387, 3
      %v390 = vor.u32 %v386, %v389
      %v391 = vsel %vm374, %v382, %v390
      %v393 = vshrl.u32 %v268, 16
      %v395 = vrot.slane %v393, 2
      %v396 = vshll.u32 %v268, 16
      %v398 = vrot.slane %v396, 3
      %v399 = vor.u32 %v395, %v398
      %v400 = vsel %vm374, %v390, %v399
      %v402 = vshrl.u32 %v269, 16
      %v404 = vrot.slane %v402, 2
      %v405 = vshll.u32 %v269, 16
      %v407 = vrot.slane %v405, 3
      %v408 = vor.u32 %v404, %v407
      %v409 = vsel %vm374, %v399, %v408
      %v411 = vshrl.u32 %v270, 16
      %v413 = vrot.slane %v411, 2
      %v414 = vshll.u32 %v270, 16
      %v416 = vrot.slane %v414, 3
      %v417 = vor.u32 %v413, %v416
      %v418 = vsel %vm374, %v408, %v417
      %v420 = vshrl.u32 %v271, 16
      %v422 = vrot.slane %v420, 2
      %v423 = vshll.u32 %v271, 16
      %v425 = vrot.slane %v423, 3
      %v426 = vor.u32 %v422, %v425
      %v427 = vsel %vm374, %v417, %v426
      %v449 = vunpack.c.l.b16 %v210
      %v450 = vunpack.c.l.b16 %v211
      %v451 = vunpack.c.l.b16 %v212
      %v452 = vunpack.c.l.b16 %v213
      %v453 = vunpack.c.l.b16 %v214
      %v454 = vunpack.c.l.b16 %v215
      %v455 = vunpack.c.l.b16 %v216
      %v456 = vunpack.c.l.b16 %v217
      %v457 = vunpack.c.l.b16 %v218
      %v458 = vunpack.c.l.b16 %v219
      %v459 = vunpack.c.l.b16 %v220
      %v460 = vunpack.c.l.b16 %v221
      %v461 = vunpack.c.l.b16 %v222
      %v462 = vunpack.c.l.b16 %v223
      %v463 = vunpack.c.l.b16 %v224
      %v464 = vunpack.c.l.b16 %v225
      %v465 = vpack.c.b16 %v450, %v449
      %v466 = vpack.c.b16 %v452, %v451
      %v467 = vpack.c.b16 %v454, %v453
      %v468 = vpack.c.b16 %v456, %v455
      %v469 = vpack.c.b16 %v458, %v457
      %v470 = vpack.c.b16 %v460, %v459
      %v471 = vpack.c.b16 %v462, %v461
      %v472 = vpack.c.b16 %v464, %v463
      %481 = vmatpush.bf16.msra.mxu0 %v472
      %482 = vmatpush.bf16.msra.mxu0 %v471
      %483 = vmatpush.bf16.msra.mxu0 %v470
      %484 = vmatpush.bf16.msra.mxu0 %v469
      %485 = vmatpush.bf16.msra.mxu0 %v468
      %486 = vmatpush.bf16.msra.mxu0 %v467
      %487 = vmatpush.bf16.msra.mxu0 %v466
      %488 = vmatpush.bf16.msra.mxu0 %v465
      %489 = vmatmul.bf16.gmra.mxu0 %v391
      %v490 = vpop.f32.mrf.mxu0
      %v491 = vadd.f32 %v347, %v490
      %v492 = vpop.f32.mrf.mxu0
      %v493 = vadd.f32 %v349, %v492
      %494 = vmatmul.bf16.gmra.mxu0 %v400
      %v495 = vpop.f32.mrf.mxu0
      %v496 = vadd.f32 %v352, %v495
      %v497 = vpop.f32.mrf.mxu0
      %v498 = vadd.f32 %v354, %v497
      %499 = vmatmul.bf16.gmra.mxu0 %v409
      %v500 = vpop.f32.mrf.mxu0
      %v501 = vadd.f32 %v357, %v500
      %v502 = vpop.f32.mrf.mxu0
      %v503 = vadd.f32 %v359, %v502
      %504 = vmatmul.bf16.gmra.mxu0 %v418
      %v505 = vpop.f32.mrf.mxu0
      %v506 = vadd.f32 %v362, %v505
      %v507 = vpop.f32.mrf.mxu0
      %v508 = vadd.f32 %v364, %v507
      %509 = vmatmul.bf16.gmra.mxu0 %v427
      %v510 = vpop.f32.mrf.mxu0
      %v511 = vadd.f32 %v367, %v510
      %v512 = vpop.f32.mrf.mxu0
      %v513 = vadd.f32 %v369, %v512
      %514 = vdwg.mxu0
      %v515 = vld [vmem:[%s192 + $0x28] sm:$0xf]
      %s516 = scalar_lea.vmem %s1, 128
      %v517 = vld [vmem:[%s516] sm:$0xf]
      %v518 = vld [vmem:[%s516 + $0x4] sm:$0xf]
      %v519 = vld [vmem:[%s516 + $0x8] sm:$0xf]
      %v520 = vld [vmem:[%s516 + $0xc] sm:$0xf]
      %v521 = vld [vmem:[%s516 + $0x10] sm:$0xf]
      %v522 = vld [vmem:[%s516 + $0x14] sm:$0xf]
      %v523 = vld [vmem:[%s516 + $0x18] sm:$0xf]
      %v524 = vld [vmem:[%s516 + $0x1c] sm:$0xf]
      %v525 = vld [vmem:[%s516 + $0x20] sm:$0xf]
      %v526 = vld [vmem:[%s516 + $0x24] sm:$0xf]
      %v527 = vld [vmem:[%s516 + $0x28] sm:$0xf]
      %v528 = vld [vmem:[%s516 + $0x2c] sm:$0xf]
      %v529 = vld [vmem:[%s516 + $0x30] sm:$0xf]
      %v530 = vld [vmem:[%s516 + $0x34] sm:$0xf]
      %v531 = vld [vmem:[%s516 + $0x38] sm:$0xf]
      %v532 = vld [vmem:[%s516 + $0x3c] sm:$0xf]
      %v534 = vunpack.c.l.b16 %v515
      %v535 = vpack.c.b16 %v534, %v534
      %vm536 = vsmask.f32 4352
      %v538 = vshrl.u32 %v266, 16
      %v540 = vrot.slane %v538, 3
      %v541 = vshll.u32 %v266, 16
      %v543 = vrot.slane %v541, 4
      %v544 = vor.u32 %v540, %v543
      %v545 = vrot.slane %v384, 3
      %v546 = vrot.slane %v387, 4
      %v547 = vor.u32 %v545, %v546
      %v548 = vsel %vm536, %v544, %v547
      %v549 = vrot.slane %v393, 3
      %v550 = vrot.slane %v396, 4
      %v551 = vor.u32 %v549, %v550
      %v552 = vsel %vm536, %v547, %v551
      %v553 = vrot.slane %v402, 3
      %v554 = vrot.slane %v405, 4
      %v555 = vor.u32 %v553, %v554
      %v556 = vsel %vm536, %v551, %v555
      %v557 = vrot.slane %v411, 3
      %v558 = vrot.slane %v414, 4
      %v559 = vor.u32 %v557, %v558
      %v560 = vsel %vm536, %v555, %v559
      %v562 = vshrl.u32 %v535, 16
      %v564 = vrot.slane %v562, 3
      %v565 = vshll.u32 %v535, 16
      %v567 = vrot.slane %v565, 4
      %v568 = vor.u32 %v564, %v567
      %v569 = vsel %vm536, %v559, %v568
      %v591 = vunpack.c.l.b16 %v517
      %v592 = vunpack.c.l.b16 %v518
      %v593 = vunpack.c.l.b16 %v519
      %v594 = vunpack.c.l.b16 %v520
      %v595 = vunpack.c.l.b16 %v521
      %v596 = vunpack.c.l.b16 %v522
      %v597 = vunpack.c.l.b16 %v523
      %v598 = vunpack.c.l.b16 %v524
      %v599 = vunpack.c.l.b16 %v525
      %v600 = vunpack.c.l.b16 %v526
      %v601 = vunpack.c.l.b16 %v527
      %v602 = vunpack.c.l.b16 %v528
      %v603 = vunpack.c.l.b16 %v529
      %v604 = vunpack.c.l.b16 %v530
      %v605 = vunpack.c.l.b16 %v531
      %v606 = vunpack.c.l.b16 %v532
      %v607 = vpack.c.b16 %v592, %v591
      %v608 = vpack.c.b16 %v594, %v593
      %v609 = vpack.c.b16 %v596, %v595
      %v610 = vpack.c.b16 %v598, %v597
      %v611 = vpack.c.b16 %v600, %v599
      %v612 = vpack.c.b16 %v602, %v601
      %v613 = vpack.c.b16 %v604, %v603
      %v614 = vpack.c.b16 %v606, %v605
      %623 = vmatpush.bf16.msra.mxu0 %v614
      %624 = vmatpush.bf16.msra.mxu0 %v613
      %625 = vmatpush.bf16.msra.mxu0 %v612
      %626 = vmatpush.bf16.msra.mxu0 %v611
      %627 = vmatpush.bf16.msra.mxu0 %v610
      %628 = vmatpush.bf16.msra.mxu0 %v609
      %629 = vmatpush.bf16.msra.mxu0 %v608
      %630 = vmatpush.bf16.msra.mxu0 %v607
      %631 = vmatmul.bf16.gmra.mxu0 %v548
      %v632 = vpop.f32.mrf.mxu0
      %v633 = vadd.f32 0.0, %v632
      %v634 = vpop.f32.mrf.mxu0
      %v635 = vadd.f32 0.0, %v634
      %636 = vmatmul.bf16.gmra.mxu0 %v552
      %v637 = vpop.f32.mrf.mxu0
      %v638 = vadd.f32 0.0, %v637
      %v639 = vpop.f32.mrf.mxu0
      %v640 = vadd.f32 0.0, %v639
      %641 = vmatmul.bf16.gmra.mxu0 %v556
      %v642 = vpop.f32.mrf.mxu0
      %v643 = vadd.f32 0.0, %v642
      %v644 = vpop.f32.mrf.mxu0
      %v645 = vadd.f32 0.0, %v644
      %646 = vmatmul.bf16.gmra.mxu0 %v560
      %v647 = vpop.f32.mrf.mxu0
      %v648 = vadd.f32 0.0, %v647
      %v649 = vpop.f32.mrf.mxu0
      %v650 = vadd.f32 0.0, %v649
      %651 = vmatmul.bf16.gmra.mxu0 %v569
      %v652 = vpop.f32.mrf.mxu0
      %v653 = vadd.f32 0.0, %v652
      %v654 = vpop.f32.mrf.mxu0
      %v655 = vadd.f32 0.0, %v654
      %656 = vdwg.mxu0
      %v657 = vadd.f32 %v491, %v633
      %v658 = vadd.f32 %v493, %v635
      %v659 = vadd.f32 %v496, %v638
      %v660 = vadd.f32 %v498, %v640
      %v661 = vadd.f32 %v501, %v643
      %v662 = vadd.f32 %v503, %v645
      %v663 = vadd.f32 %v506, %v648
      %v664 = vadd.f32 %v508, %v650
      %v665 = vadd.f32 %v511, %v653
      %v666 = vadd.f32 %v513, %v655
      %v667 = vld [vmem:[%s192 + $0x4] sm:$0x8]
      %v668 = vld [vmem:[%s192 + $0x8] sm:$0xf]
      %v669 = vld [vmem:[%s192 + $0xc] sm:$0xf]
      %v670 = vld [vmem:[%s192 + $0x10] sm:$0xf]
      %v671 = vld [vmem:[%s192 + $0x14] sm:$0xf]
      %v672 = vld [vmem:[%s192 + $0x18] sm:$0xf]
      %v673 = vld [vmem:[%s192 + $0x1c] sm:$0xf]
      %v674 = vld [vmem:[%s192 + $0x20] sm:$0xf]
      %v675 = vld [vmem:[%s192 + $0x24] sm:$0xf]
      %v676 = vld [vmem:[%s192 + $0x28] sm:$0xf]
      %v677 = vld [vmem:[%s192 + $0x2c] sm:$0xf]
      %s678 = scalar_lea.vmem %s1, 192
      %v679 = vld [vmem:[%s678] sm:$0xf]
      %v680 = vld [vmem:[%s678 + $0x4] sm:$0xf]
      %v681 = vld [vmem:[%s678 + $0x8] sm:$0xf]
      %v682 = vld [vmem:[%s678 + $0xc] sm:$0xf]
      %v683 = vld [vmem:[%s678 + $0x10] sm:$0xf]
      %v684 = vld [vmem:[%s678 + $0x14] sm:$0xf]
      %v685 = vld [vmem:[%s678 + $0x18] sm:$0xf]
      %v686 = vld [vmem:[%s678 + $0x1c] sm:$0xf]
      %v687 = vld [vmem:[%s678 + $0x20] sm:$0xf]
      %v688 = vld [vmem:[%s678 + $0x24] sm:$0xf]
      %v689 = vld [vmem:[%s678 + $0x28] sm:$0xf]
      %v690 = vld [vmem:[%s678 + $0x2c] sm:$0xf]
      %v691 = vld [vmem:[%s678 + $0x30] sm:$0xf]
      %v692 = vld [vmem:[%s678 + $0x34] sm:$0xf]
      %v693 = vld [vmem:[%s678 + $0x38] sm:$0xf]
      %v694 = vld [vmem:[%s678 + $0x3c] sm:$0xf]
      %v706 = vunpack.c.l.b16 %v667
      %v707 = vunpack.c.l.b16 %v668
      %v708 = vunpack.c.l.b16 %v669
      %v709 = vunpack.c.l.b16 %v670
      %v710 = vunpack.c.l.b16 %v671
      %v711 = vunpack.c.l.b16 %v672
      %v712 = vunpack.c.l.b16 %v673
      %v713 = vunpack.c.l.b16 %v674
      %v714 = vunpack.c.l.b16 %v675
      %v715 = vunpack.c.l.b16 %v676
      %v716 = vunpack.c.l.b16 %v677
      %v717 = vpack.c.b16 %v707, %v706
      %v718 = vpack.c.b16 %v709, %v708
      %v719 = vpack.c.b16 %v711, %v710
      %v720 = vpack.c.b16 %v713, %v712
      %v721 = vpack.c.b16 %v715, %v714
      %v722 = vpack.c.b16 %v716, %v716
      %v724 = vshrl.u32 %v717, 16
      %v726 = vrot.slane %v724, 3
      %v727 = vshll.u32 %v717, 16
      %v729 = vrot.slane %v727, 4
      %v730 = vor.u32 %v726, %v729
      %v732 = vshrl.u32 %v718, 16
      %v734 = vrot.slane %v732, 3
      %v735 = vshll.u32 %v718, 16
      %v737 = vrot.slane %v735, 4
      %v738 = vor.u32 %v734, %v737
      %v739 = vsel %vm536, %v730, %v738
      %v741 = vshrl.u32 %v719, 16
      %v743 = vrot.slane %v741, 3
      %v744 = vshll.u32 %v719, 16
      %v746 = vrot.slane %v744, 4
      %v747 = vor.u32 %v743, %v746
      %v748 = vsel %vm536, %v738, %v747
      %v750 = vshrl.u32 %v720, 16
      %v752 = vrot.slane %v750, 3
      %v753 = vshll.u32 %v720, 16
      %v755 = vrot.slane %v753, 4
      %v756 = vor.u32 %v752, %v755
      %v757 = vsel %vm536, %v747, %v756
      %v759 = vshrl.u32 %v721, 16
      %v761 = vrot.slane %v759, 3
      %v762 = vshll.u32 %v721, 16
      %v764 = vrot.slane %v762, 4
      %v765 = vor.u32 %v761, %v764
      %v766 = vsel %vm536, %v756, %v765
      %v768 = vshrl.u32 %v722, 16
      %v770 = vrot.slane %v768, 3
      %v771 = vshll.u32 %v722, 16
      %v773 = vrot.slane %v771, 4
      %v774 = vor.u32 %v770, %v773
      %v775 = vsel %vm536, %v765, %v774
      %v797 = vunpack.c.l.b16 %v679
      %v798 = vunpack.c.l.b16 %v680
      %v799 = vunpack.c.l.b16 %v681
      %v800 = vunpack.c.l.b16 %v682
      %v801 = vunpack.c.l.b16 %v683
      %v802 = vunpack.c.l.b16 %v684
      %v803 = vunpack.c.l.b16 %v685
      %v804 = vunpack.c.l.b16 %v686
      %v805 = vunpack.c.l.b16 %v687
      %v806 = vunpack.c.l.b16 %v688
      %v807 = vunpack.c.l.b16 %v689
      %v808 = vunpack.c.l.b16 %v690
      %v809 = vunpack.c.l.b16 %v691
      %v810 = vunpack.c.l.b16 %v692
      %v811 = vunpack.c.l.b16 %v693
      %v812 = vunpack.c.l.b16 %v694
      %v813 = vpack.c.b16 %v798, %v797
      %v814 = vpack.c.b16 %v800, %v799
      %v815 = vpack.c.b16 %v802, %v801
      %v816 = vpack.c.b16 %v804, %v803
      %v817 = vpack.c.b16 %v806, %v805
      %v818 = vpack.c.b16 %v808, %v807
      %v819 = vpack.c.b16 %v810, %v809
      %v820 = vpack.c.b16 %v812, %v811
      %829 = vmatpush.bf16.msra.mxu0 %v820
      %830 = vmatpush.bf16.msra.mxu0 %v819
      %831 = vmatpush.bf16.msra.mxu0 %v818
      %832 = vmatpush.bf16.msra.mxu0 %v817
      %833 = vmatpush.bf16.msra.mxu0 %v816
      %834 = vmatpush.bf16.msra.mxu0 %v815
      %835 = vmatpush.bf16.msra.mxu0 %v814
      %836 = vmatpush.bf16.msra.mxu0 %v813
      %837 = vmatmul.bf16.gmra.mxu0 %v739
      %v838 = vpop.f32.mrf.mxu0
      %v839 = vadd.f32 0.0, %v838
      %v840 = vpop.f32.mrf.mxu0
      %v841 = vadd.f32 0.0, %v840
      %842 = vmatmul.bf16.gmra.mxu0 %v748
      %v843 = vpop.f32.mrf.mxu0
      %v844 = vadd.f32 0.0, %v843
      %v845 = vpop.f32.mrf.mxu0
      %v846 = vadd.f32 0.0, %v845
      %847 = vmatmul.bf16.gmra.mxu0 %v757
      %v848 = vpop.f32.mrf.mxu0
      %v849 = vadd.f32 0.0, %v848
      %v850 = vpop.f32.mrf.mxu0
      %v851 = vadd.f32 0.0, %v850
      %852 = vmatmul.bf16.gmra.mxu0 %v766
      %v853 = vpop.f32.mrf.mxu0
      %v854 = vadd.f32 0.0, %v853
      %v855 = vpop.f32.mrf.mxu0
      %v856 = vadd.f32 0.0, %v855
      %857 = vmatmul.bf16.gmra.mxu0 %v775
      %v858 = vpop.f32.mrf.mxu0
      %v859 = vadd.f32 0.0, %v858
      %v860 = vpop.f32.mrf.mxu0
      %v861 = vadd.f32 0.0, %v860
      %862 = vdwg.mxu0
      %v863 = vadd.f32 %v657, %v839
      %v864 = vadd.f32 %v658, %v841
      %v865 = vadd.f32 %v659, %v844
      %v866 = vadd.f32 %v660, %v846
      %v867 = vadd.f32 %v661, %v849
      %v868 = vadd.f32 %v662, %v851
      %v869 = vadd.f32 %v663, %v854
      %v870 = vadd.f32 %v664, %v856
      %v871 = vadd.f32 %v665, %v859
      %v872 = vadd.f32 %v666, %v861
      %s873 = scalar_lea.vmem %s1, 256
      %v874 = vld [vmem:[%s873] sm:$0xf]
      %v875 = vld [vmem:[%s873 + $0x4] sm:$0xf]
      %v876 = vld [vmem:[%s873 + $0x8] sm:$0xf]
      %v877 = vld [vmem:[%s873 + $0xc] sm:$0xf]
      %v878 = vld [vmem:[%s873 + $0x10] sm:$0xf]
      %v879 = vld [vmem:[%s873 + $0x14] sm:$0xf]
      %v880 = vld [vmem:[%s873 + $0x18] sm:$0xf]
      %v881 = vld [vmem:[%s873 + $0x1c] sm:$0xf]
      %v882 = vld [vmem:[%s873 + $0x20] sm:$0xf]
      %v883 = vld [vmem:[%s873 + $0x24] sm:$0xf]
      %v884 = vld [vmem:[%s873 + $0x28] sm:$0xf]
      %v885 = vld [vmem:[%s873 + $0x2c] sm:$0xf]
      %v886 = vld [vmem:[%s873 + $0x30] sm:$0xf]
      %v887 = vld [vmem:[%s873 + $0x34] sm:$0xf]
      %v888 = vld [vmem:[%s873 + $0x38] sm:$0xf]
      %v889 = vld [vmem:[%s873 + $0x3c] sm:$0xf]
      %v890 = vpack.c.b16 %v708, %v707
      %v891 = vpack.c.b16 %v710, %v709
      %v892 = vpack.c.b16 %v712, %v711
      %v893 = vpack.c.b16 %v714, %v713
      %v894 = vpack.c.b16 %v716, %v715
      %v916 = vunpack.c.l.b16 %v874
      %v917 = vunpack.c.l.b16 %v875
      %v918 = vunpack.c.l.b16 %v876
      %v919 = vunpack.c.l.b16 %v877
      %v920 = vunpack.c.l.b16 %v878
      %v921 = vunpack.c.l.b16 %v879
      %v922 = vunpack.c.l.b16 %v880
      %v923 = vunpack.c.l.b16 %v881
      %v924 = vunpack.c.l.b16 %v882
      %v925 = vunpack.c.l.b16 %v883
      %v926 = vunpack.c.l.b16 %v884
      %v927 = vunpack.c.l.b16 %v885
      %v928 = vunpack.c.l.b16 %v886
      %v929 = vunpack.c.l.b16 %v887
      %v930 = vunpack.c.l.b16 %v888
      %v931 = vunpack.c.l.b16 %v889
      %v932 = vpack.c.b16 %v917, %v916
      %v933 = vpack.c.b16 %v919, %v918
      %v934 = vpack.c.b16 %v921, %v920
      %v935 = vpack.c.b16 %v923, %v922
      %v936 = vpack.c.b16 %v925, %v924
      %v937 = vpack.c.b16 %v927, %v926
      %v938 = vpack.c.b16 %v929, %v928
      %v939 = vpack.c.b16 %v931, %v930
      %948 = vmatpush.bf16.msra.mxu0 %v939
      %949 = vmatpush.bf16.msra.mxu0 %v938
      %950 = vmatpush.bf16.msra.mxu0 %v937
      %951 = vmatpush.bf16.msra.mxu0 %v936
      %952 = vmatpush.bf16.msra.mxu0 %v935
      %953 = vmatpush.bf16.msra.mxu0 %v934
      %954 = vmatpush.bf16.msra.mxu0 %v933
      %955 = vmatpush.bf16.msra.mxu0 %v932
      %956 = vmatmul.bf16.gmra.mxu0 %v890
      %v957 = vpop.f32.mrf.mxu0
      %v958 = vadd.f32 0.0, %v957
      %v959 = vpop.f32.mrf.mxu0
      %v960 = vadd.f32 0.0, %v959
      %961 = vmatmul.bf16.gmra.mxu0 %v891
      %v962 = vpop.f32.mrf.mxu0
      %v963 = vadd.f32 0.0, %v962
      %v964 = vpop.f32.mrf.mxu0
      %v965 = vadd.f32 0.0, %v964
      %966 = vmatmul.bf16.gmra.mxu0 %v892
      %v967 = vpop.f32.mrf.mxu0
      %v968 = vadd.f32 0.0, %v967
      %v969 = vpop.f32.mrf.mxu0
      %v970 = vadd.f32 0.0, %v969
      %971 = vmatmul.bf16.gmra.mxu0 %v893
      %v972 = vpop.f32.mrf.mxu0
      %v973 = vadd.f32 0.0, %v972
      %v974 = vpop.f32.mrf.mxu0
      %v975 = vadd.f32 0.0, %v974
      %976 = vmatmul.bf16.gmra.mxu0 %v894
      %v977 = vpop.f32.mrf.mxu0
      %v978 = vadd.f32 0.0, %v977
      %v979 = vpop.f32.mrf.mxu0
      %v980 = vadd.f32 0.0, %v979
      %981 = vdwg.mxu0
      %v982 = vadd.f32 %v863, %v958
      %v983 = vadd.f32 %v864, %v960
      %v984 = vadd.f32 %v865, %v963
      %v985 = vadd.f32 %v866, %v965
      %v986 = vadd.f32 %v867, %v968
      %v987 = vadd.f32 %v868, %v970
      %v988 = vadd.f32 %v869, %v973
      %v989 = vadd.f32 %v870, %v975
      %v990 = vadd.f32 %v871, %v978
      %v991 = vadd.f32 %v872, %v980
      %v992 = vld [vmem:[%s192 + $0x8] sm:$0xf]
      %v993 = vld [vmem:[%s192 + $0xc] sm:$0xf]
      %v994 = vld [vmem:[%s192 + $0x10] sm:$0xf]
      %v995 = vld [vmem:[%s192 + $0x14] sm:$0xf]
      %v996 = vld [vmem:[%s192 + $0x18] sm:$0xf]
      %v997 = vld [vmem:[%s192 + $0x1c] sm:$0xf]
      %v998 = vld [vmem:[%s192 + $0x20] sm:$0xf]
      %v999 = vld [vmem:[%s192 + $0x24] sm:$0xf]
      %v1000 = vld [vmem:[%s192 + $0x28] sm:$0xf]
      %v1001 = vld [vmem:[%s192 + $0x2c] sm:$0xf]
      %v1002 = vld [vmem:[%s192 + $0x30] sm:$0x1]
      %s1003 = scalar_lea.vmem %s1, 320
      %v1004 = vld [vmem:[%s1003] sm:$0xf]
      %v1005 = vld [vmem:[%s1003 + $0x4] sm:$0xf]
      %v1006 = vld [vmem:[%s1003 + $0x8] sm:$0xf]
      %v1007 = vld [vmem:[%s1003 + $0xc] sm:$0xf]
      %v1008 = vld [vmem:[%s1003 + $0x10] sm:$0xf]
      %v1009 = vld [vmem:[%s1003 + $0x14] sm:$0xf]
      %v1010 = vld [vmem:[%s1003 + $0x18] sm:$0xf]
      %v1011 = vld [vmem:[%s1003 + $0x1c] sm:$0xf]
      %v1012 = vld [vmem:[%s1003 + $0x20] sm:$0xf]
      %v1013 = vld [vmem:[%s1003 + $0x24] sm:$0xf]
      %v1014 = vld [vmem:[%s1003 + $0x28] sm:$0xf]
      %v1015 = vld [vmem:[%s1003 + $0x2c] sm:$0xf]
      %v1016 = vld [vmem:[%s1003 + $0x30] sm:$0xf]
      %v1017 = vld [vmem:[%s1003 + $0x34] sm:$0xf]
      %v1018 = vld [vmem:[%s1003 + $0x38] sm:$0xf]
      %v1019 = vld [vmem:[%s1003 + $0x3c] sm:$0xf]
      %v1031 = vunpack.c.l.b16 %v992
      %v1032 = vunpack.c.l.b16 %v993
      %v1033 = vunpack.c.l.b16 %v994
      %v1034 = vunpack.c.l.b16 %v995
      %v1035 = vunpack.c.l.b16 %v996
      %v1036 = vunpack.c.l.b16 %v997
      %v1037 = vunpack.c.l.b16 %v998
      %v1038 = vunpack.c.l.b16 %v999
      %v1039 = vunpack.c.l.b16 %v1000
      %v1040 = vunpack.c.l.b16 %v1001
      %v1041 = vunpack.c.l.b16 %v1002
      %v1042 = vpack.c.b16 %v1032, %v1031
      %v1043 = vpack.c.b16 %v1034, %v1033
      %v1044 = vpack.c.b16 %v1036, %v1035
      %v1045 = vpack.c.b16 %v1038, %v1037
      %v1046 = vpack.c.b16 %v1040, %v1039
      %v1047 = vpack.c.b16 %v1041, %v1041
      %vm1048 = vsmask.f32 7424
      %v1050 = vshrl.u32 %v1042, 16
      %v1052 = vshll.u32 %v1042, 16
      %v1054 = vrot.slane %v1052, 1
      %v1055 = vor.u32 %v1050, %v1054
      %v1057 = vshll.u32 %v1043, 16
      %v1059 = vrot.slane %v1057, 1
      %v1060 = vsel %vm1048, %v1055, %v1059
      %v1061 = vshrl.u32 %v1043, 16
      %v1063 = vor.u32 %v1061, %v1059
      %v1065 = vshll.u32 %v1044, 16
      %v1067 = vrot.slane %v1065, 1
      %v1068 = vsel %vm1048, %v1063, %v1067
      %v1069 = vshrl.u32 %v1044, 16
      %v1071 = vor.u32 %v1069, %v1067
      %v1073 = vshll.u32 %v1045, 16
      %v1075 = vrot.slane %v1073, 1
      %v1076 = vsel %vm1048, %v1071, %v1075
      %v1077 = vshrl.u32 %v1045, 16
      %v1079 = vor.u32 %v1077, %v1075
      %v1081 = vshll.u32 %v1046, 16
      %v1083 = vrot.slane %v1081, 1
      %v1084 = vsel %vm1048, %v1079, %v1083
      %v1085 = vshrl.u32 %v1046, 16
      %v1087 = vor.u32 %v1085, %v1083
      %v1089 = vshll.u32 %v1047, 16
      %v1091 = vrot.slane %v1089, 1
      %v1092 = vsel %vm1048, %v1087, %v1091
      %v1114 = vunpack.c.l.b16 %v1004
      %v1115 = vunpack.c.l.b16 %v1005
      %v1116 = vunpack.c.l.b16 %v1006
      %v1117 = vunpack.c.l.b16 %v1007
      %v1118 = vunpack.c.l.b16 %v1008
      %v1119 = vunpack.c.l.b16 %v1009
      %v1120 = vunpack.c.l.b16 %v1010
      %v1121 = vunpack.c.l.b16 %v1011
      %v1122 = vunpack.c.l.b16 %v1012
      %v1123 = vunpack.c.l.b16 %v1013
      %v1124 = vunpack.c.l.b16 %v1014
      %v1125 = vunpack.c.l.b16 %v1015
      %v1126 = vunpack.c.l.b16 %v1016
      %v1127 = vunpack.c.l.b16 %v1017
      %v1128 = vunpack.c.l.b16 %v1018
      %v1129 = vunpack.c.l.b16 %v1019
      %v1130 = vpack.c.b16 %v1115, %v1114
      %v1131 = vpack.c.b16 %v1117, %v1116
      %v1132 = vpack.c.b16 %v1119, %v1118
      %v1133 = vpack.c.b16 %v1121, %v1120
      %v1134 = vpack.c.b16 %v1123, %v1122
      %v1135 = vpack.c.b16 %v1125, %v1124
      %v1136 = vpack.c.b16 %v1127, %v1126
      %v1137 = vpack.c.b16 %v1129, %v1128
      %1146 = vmatpush.bf16.msra.mxu0 %v1137
      %1147 = vmatpush.bf16.msra.mxu0 %v1136
      %1148 = vmatpush.bf16.msra.mxu0 %v1135
      %1149 = vmatpush.bf16.msra.mxu0 %v1134
      %1150 = vmatpush.bf16.msra.mxu0 %v1133
      %1151 = vmatpush.bf16.msra.mxu0 %v1132
      %1152 = vmatpush.bf16.msra.mxu0 %v1131
      %1153 = vmatpush.bf16.msra.mxu0 %v1130
      %1154 = vmatmul.bf16.gmra.mxu0 %v1060
      %v1155 = vpop.f32.mrf.mxu0
      %v1156 = vadd.f32 0.0, %v1155
      %v1157 = vpop.f32.mrf.mxu0
      %v1158 = vadd.f32 0.0, %v1157
      %1159 = vmatmul.bf16.gmra.mxu0 %v1068
      %v1160 = vpop.f32.mrf.mxu0
      %v1161 = vadd.f32 0.0, %v1160
      %v1162 = vpop.f32.mrf.mxu0
      %v1163 = vadd.f32 0.0, %v1162
      %1164 = vmatmul.bf16.gmra.mxu0 %v1076
      %v1165 = vpop.f32.mrf.mxu0
      %v1166 = vadd.f32 0.0, %v1165
      %v1167 = vpop.f32.mrf.mxu0
      %v1168 = vadd.f32 0.0, %v1167
      %1169 = vmatmul.bf16.gmra.mxu0 %v1084
      %v1170 = vpop.f32.mrf.mxu0
      %v1171 = vadd.f32 0.0, %v1170
      %v1172 = vpop.f32.mrf.mxu0
      %v1173 = vadd.f32 0.0, %v1172
      %1174 = vmatmul.bf16.gmra.mxu0 %v1092
      %v1175 = vpop.f32.mrf.mxu0
      %v1176 = vadd.f32 0.0, %v1175
      %v1177 = vpop.f32.mrf.mxu0
      %v1178 = vadd.f32 0.0, %v1177
      %1179 = vdwg.mxu0
      %v1180 = vadd.f32 %v982, %v1156
      %v1181 = vadd.f32 %v983, %v1158
      %v1182 = vadd.f32 %v984, %v1161
      %v1183 = vadd.f32 %v985, %v1163
      %v1184 = vadd.f32 %v986, %v1166
      %v1185 = vadd.f32 %v987, %v1168
      %v1186 = vadd.f32 %v988, %v1171
      %v1187 = vadd.f32 %v989, %v1173
      %v1188 = vadd.f32 %v990, %v1176
      %v1189 = vadd.f32 %v991, %v1178
      %v1190 = vld [vmem:[%s192 + $0xc] sm:$0xf]
      %v1191 = vld [vmem:[%s192 + $0x10] sm:$0xf]
      %v1192 = vld [vmem:[%s192 + $0x14] sm:$0xf]
      %v1193 = vld [vmem:[%s192 + $0x18] sm:$0xf]
      %v1194 = vld [vmem:[%s192 + $0x1c] sm:$0xf]
      %v1195 = vld [vmem:[%s192 + $0x20] sm:$0xf]
      %v1196 = vld [vmem:[%s192 + $0x24] sm:$0xf]
      %v1197 = vld [vmem:[%s192 + $0x28] sm:$0xf]
      %v1198 = vld [vmem:[%s192 + $0x2c] sm:$0xf]
      %v1199 = vld [vmem:[%s192 + $0x30] sm:$0xf]
      %v1200 = vld [vmem:[%s192 + $0x34] sm:$0x1]
      %s1201 = scalar_lea.vmem %s1, 384
      %v1202 = vld [vmem:[%s1201] sm:$0xf]
      %v1203 = vld [vmem:[%s1201 + $0x4] sm:$0xf]
      %v1204 = vld [vmem:[%s1201 + $0x8] sm:$0xf]
      %v1205 = vld [vmem:[%s1201 + $0xc] sm:$0xf]
      %v1206 = vld [vmem:[%s1201 + $0x10] sm:$0xf]
      %v1207 = vld [vmem:[%s1201 + $0x14] sm:$0xf]
      %v1208 = vld [vmem:[%s1201 + $0x18] sm:$0xf]
      %v1209 = vld [vmem:[%s1201 + $0x1c] sm:$0xf]
      %v1210 = vld [vmem:[%s1201 + $0x20] sm:$0xf]
      %v1211 = vld [vmem:[%s1201 + $0x24] sm:$0xf]
      %v1212 = vld [vmem:[%s1201 + $0x28] sm:$0xf]
      %v1213 = vld [vmem:[%s1201 + $0x2c] sm:$0xf]
      %v1214 = vld [vmem:[%s1201 + $0x30] sm:$0xf]
      %v1215 = vld [vmem:[%s1201 + $0x34] sm:$0xf]
      %v1216 = vld [vmem:[%s1201 + $0x38] sm:$0xf]
      %v1217 = vld [vmem:[%s1201 + $0x3c] sm:$0xf]
      %v1229 = vunpack.c.l.b16 %v1190
      %v1230 = vunpack.c.l.b16 %v1191
      %v1231 = vunpack.c.l.b16 %v1192
      %v1232 = vunpack.c.l.b16 %v1193
      %v1233 = vunpack.c.l.b16 %v1194
      %v1234 = vunpack.c.l.b16 %v1195
      %v1235 = vunpack.c.l.b16 %v1196
      %v1236 = vunpack.c.l.b16 %v1197
      %v1237 = vunpack.c.l.b16 %v1198
      %v1238 = vunpack.c.l.b16 %v1199
      %v1239 = vunpack.c.l.b16 %v1200
      %v1240 = vpack.c.b16 %v1230, %v1229
      %v1241 = vpack.c.b16 %v1232, %v1231
      %v1242 = vpack.c.b16 %v1234, %v1233
      %v1243 = vpack.c.b16 %v1236, %v1235
      %v1244 = vpack.c.b16 %v1238, %v1237
      %v1245 = vpack.c.b16 %v1239, %v1239
      %v1247 = vshrl.u32 %v1240, 16
      %v1249 = vshll.u32 %v1240, 16
      %v1251 = vrot.slane %v1249, 1
      %v1252 = vor.u32 %v1247, %v1251
      %v1254 = vshll.u32 %v1241, 16
      %v1256 = vrot.slane %v1254, 1
      %v1257 = vsel %vm1048, %v1252, %v1256
      %v1258 = vshrl.u32 %v1241, 16
      %v1260 = vor.u32 %v1258, %v1256
      %v1262 = vshll.u32 %v1242, 16
      %v1264 = vrot.slane %v1262, 1
      %v1265 = vsel %vm1048, %v1260, %v1264
      %v1266 = vshrl.u32 %v1242, 16
      %v1268 = vor.u32 %v1266, %v1264
      %v1270 = vshll.u32 %v1243, 16
      %v1272 = vrot.slane %v1270, 1
      %v1273 = vsel %vm1048, %v1268, %v1272
      %v1274 = vshrl.u32 %v1243, 16
      %v1276 = vor.u32 %v1274, %v1272
      %v1278 = vshll.u32 %v1244, 16
      %v1280 = vrot.slane %v1278, 1
      %v1281 = vsel %vm1048, %v1276, %v1280
      %v1282 = vshrl.u32 %v1244, 16
      %v1284 = vor.u32 %v1282, %v1280
      %v1286 = vshll.u32 %v1245, 16
      %v1288 = vrot.slane %v1286, 1
      %v1289 = vsel %vm1048, %v1284, %v1288
      %v1311 = vunpack.c.l.b16 %v1202
      %v1312 = vunpack.c.l.b16 %v1203
      %v1313 = vunpack.c.l.b16 %v1204
      %v1314 = vunpack.c.l.b16 %v1205
      %v1315 = vunpack.c.l.b16 %v1206
      %v1316 = vunpack.c.l.b16 %v1207
      %v1317 = vunpack.c.l.b16 %v1208
      %v1318 = vunpack.c.l.b16 %v1209
      %v1319 = vunpack.c.l.b16 %v1210
      %v1320 = vunpack.c.l.b16 %v1211
      %v1321 = vunpack.c.l.b16 %v1212
      %v1322 = vunpack.c.l.b16 %v1213
      %v1323 = vunpack.c.l.b16 %v1214
      %v1324 = vunpack.c.l.b16 %v1215
      %v1325 = vunpack.c.l.b16 %v1216
      %v1326 = vunpack.c.l.b16 %v1217
      %v1327 = vpack.c.b16 %v1312, %v1311
      %v1328 = vpack.c.b16 %v1314, %v1313
      %v1329 = vpack.c.b16 %v1316, %v1315
      %v1330 = vpack.c.b16 %v1318, %v1317
      %v1331 = vpack.c.b16 %v1320, %v1319
      %v1332 = vpack.c.b16 %v1322, %v1321
      %v1333 = vpack.c.b16 %v1324, %v1323
      %v1334 = vpack.c.b16 %v1326, %v1325
      %1343 = vmatpush.bf16.msra.mxu0 %v1334
      %1344 = vmatpush.bf16.msra.mxu0 %v1333
      %1345 = vmatpush.bf16.msra.mxu0 %v1332
      %1346 = vmatpush.bf16.msra.mxu0 %v1331
      %1347 = vmatpush.bf16.msra.mxu0 %v1330
      %1348 = vmatpush.bf16.msra.mxu0 %v1329
      %1349 = vmatpush.bf16.msra.mxu0 %v1328
      %1350 = vmatpush.bf16.msra.mxu0 %v1327
      %1351 = vmatmul.bf16.gmra.mxu0 %v1257
      %v1352 = vpop.f32.mrf.mxu0
      %v1353 = vadd.f32 0.0, %v1352
      %v1354 = vpop.f32.mrf.mxu0
      %v1355 = vadd.f32 0.0, %v1354
      %1356 = vmatmul.bf16.gmra.mxu0 %v1265
      %v1357 = vpop.f32.mrf.mxu0
      %v1358 = vadd.f32 0.0, %v1357
      %v1359 = vpop.f32.mrf.mxu0
      %v1360 = vadd.f32 0.0, %v1359
      %1361 = vmatmul.bf16.gmra.mxu0 %v1273
      %v1362 = vpop.f32.mrf.mxu0
      %v1363 = vadd.f32 0.0, %v1362
      %v1364 = vpop.f32.mrf.mxu0
      %v1365 = vadd.f32 0.0, %v1364
      %1366 = vmatmul.bf16.gmra.mxu0 %v1281
      %v1367 = vpop.f32.mrf.mxu0
      %v1368 = vadd.f32 0.0, %v1367
      %v1369 = vpop.f32.mrf.mxu0
      %v1370 = vadd.f32 0.0, %v1369
      %1371 = vmatmul.bf16.gmra.mxu0 %v1289
      %v1372 = vpop.f32.mrf.mxu0
      %v1373 = vadd.f32 0.0, %v1372
      %v1374 = vpop.f32.mrf.mxu0
      %v1375 = vadd.f32 0.0, %v1374
      %1376 = vdwg.mxu0
      %v1377 = vadd.f32 %v1180, %v1353
      %v1378 = vadd.f32 %v1181, %v1355
      %v1379 = vadd.f32 %v1182, %v1358
      %v1380 = vadd.f32 %v1183, %v1360
      %v1381 = vadd.f32 %v1184, %v1363
      %v1382 = vadd.f32 %v1185, %v1365
      %v1383 = vadd.f32 %v1186, %v1368
      %v1384 = vadd.f32 %v1187, %v1370
      %v1385 = vadd.f32 %v1188, %v1373
      %v1386 = vadd.f32 %v1189, %v1375
      %v1387 = vld [vmem:[%s192 + $0xc] sm:$0xe]
      %s1388 = scalar_lea.vmem %s1, 448
      %v1389 = vld [vmem:[%s1388] sm:$0xf]
      %v1390 = vld [vmem:[%s1388 + $0x4] sm:$0xf]
      %v1391 = vld [vmem:[%s1388 + $0x8] sm:$0xf]
      %v1392 = vld [vmem:[%s1388 + $0xc] sm:$0xf]
      %v1393 = vld [vmem:[%s1388 + $0x10] sm:$0xf]
      %v1394 = vld [vmem:[%s1388 + $0x14] sm:$0xf]
      %v1395 = vld [vmem:[%s1388 + $0x18] sm:$0xf]
      %v1396 = vld [vmem:[%s1388 + $0x1c] sm:$0xf]
      %v1397 = vld [vmem:[%s1388 + $0x20] sm:$0xf]
      %v1398 = vld [vmem:[%s1388 + $0x24] sm:$0xf]
      %v1399 = vld [vmem:[%s1388 + $0x28] sm:$0xf]
      %v1400 = vld [vmem:[%s1388 + $0x2c] sm:$0xf]
      %v1401 = vld [vmem:[%s1388 + $0x30] sm:$0xf]
      %v1402 = vld [vmem:[%s1388 + $0x34] sm:$0xf]
      %v1403 = vld [vmem:[%s1388 + $0x38] sm:$0xf]
      %v1404 = vld [vmem:[%s1388 + $0x3c] sm:$0xf]
      %v1406 = vunpack.c.l.b16 %v1387
      %v1407 = vpack.c.b16 %v1230, %v1406
      %vm1408 = vcmask 1046528
      %v1409 = vrot.slane %v1407, 1
      %v1410 = vrot.slane %v1241, 1
      %v1411 = vsel %vm1408, %v1409, %v1410
      %v1412 = vrot.slane %v1242, 1
      %v1413 = vsel %vm1408, %v1410, %v1412
      %v1414 = vrot.slane %v1243, 1
      %v1415 = vsel %vm1408, %v1412, %v1414
      %v1416 = vrot.slane %v1244, 1
      %v1417 = vsel %vm1408, %v1414, %v1416
      %v1418 = vrot.slane %v1245, 1
      %v1419 = vsel %vm1408, %v1416, %v1418
      %v1441 = vunpack.c.l.b16 %v1389
      %v1442 = vunpack.c.l.b16 %v1390
      %v1443 = vunpack.c.l.b16 %v1391
      %v1444 = vunpack.c.l.b16 %v1392
      %v1445 = vunpack.c.l.b16 %v1393
      %v1446 = vunpack.c.l.b16 %v1394
      %v1447 = vunpack.c.l.b16 %v1395
      %v1448 = vunpack.c.l.b16 %v1396
      %v1449 = vunpack.c.l.b16 %v1397
      %v1450 = vunpack.c.l.b16 %v1398
      %v1451 = vunpack.c.l.b16 %v1399
      %v1452 = vunpack.c.l.b16 %v1400
      %v1453 = vunpack.c.l.b16 %v1401
      %v1454 = vunpack.c.l.b16 %v1402
      %v1455 = vunpack.c.l.b16 %v1403
      %v1456 = vunpack.c.l.b16 %v1404
      %v1457 = vpack.c.b16 %v1442, %v1441
      %v1458 = vpack.c.b16 %v1444, %v1443
      %v1459 = vpack.c.b16 %v1446, %v1445
      %v1460 = vpack.c.b16 %v1448, %v1447
      %v1461 = vpack.c.b16 %v1450, %v1449
      %v1462 = vpack.c.b16 %v1452, %v1451
      %v1463 = vpack.c.b16 %v1454, %v1453
      %v1464 = vpack.c.b16 %v1456, %v1455
      %1473 = vmatpush.bf16.msra.mxu0 %v1464
      %1474 = vmatpush.bf16.msra.mxu0 %v1463
      %1475 = vmatpush.bf16.msra.mxu0 %v1462
      %1476 = vmatpush.bf16.msra.mxu0 %v1461
      %1477 = vmatpush.bf16.msra.mxu0 %v1460
      %1478 = vmatpush.bf16.msra.mxu0 %v1459
      %1479 = vmatpush.bf16.msra.mxu0 %v1458
      %1480 = vmatpush.bf16.msra.mxu0 %v1457
      %1481 = vmatmul.bf16.gmra.mxu0 %v1411
      %v1482 = vpop.f32.mrf.mxu0
      %v1483 = vadd.f32 0.0, %v1482
      %v1484 = vpop.f32.mrf.mxu0
      %v1485 = vadd.f32 0.0, %v1484
      %1486 = vmatmul.bf16.gmra.mxu0 %v1413
      %v1487 = vpop.f32.mrf.mxu0
      %v1488 = vadd.f32 0.0, %v1487
      %v1489 = vpop.f32.mrf.mxu0
      %v1490 = vadd.f32 0.0, %v1489
      %1491 = vmatmul.bf16.gmra.mxu0 %v1415
      %v1492 = vpop.f32.mrf.mxu0
      %v1493 = vadd.f32 0.0, %v1492
      %v1494 = vpop.f32.mrf.mxu0
      %v1495 = vadd.f32 0.0, %v1494
      %1496 = vmatmul.bf16.gmra.mxu0 %v1417
      %v1497 = vpop.f32.mrf.mxu0
      %v1498 = vadd.f32 0.0, %v1497
      %v1499 = vpop.f32.mrf.mxu0
      %v1500 = vadd.f32 0.0, %v1499
      %1501 = vmatmul.bf16.gmra.mxu0 %v1419
      %v1502 = vpop.f32.mrf.mxu0
      %v1503 = vadd.f32 0.0, %v1502
      %v1504 = vpop.f32.mrf.mxu0
      %v1505 = vadd.f32 0.0, %v1504
      %1506 = vdwg.mxu0
      %v1507 = vadd.f32 %v1377, %v1483
      %v1508 = vadd.f32 %v1378, %v1485
      %v1509 = vadd.f32 %v1379, %v1488
      %v1510 = vadd.f32 %v1380, %v1490
      %v1511 = vadd.f32 %v1381, %v1493
      %v1512 = vadd.f32 %v1382, %v1495
      %v1513 = vadd.f32 %v1383, %v1498
      %v1514 = vadd.f32 %v1384, %v1500
      %v1515 = vadd.f32 %v1385, %v1503
      %v1516 = vadd.f32 %v1386, %v1505
      %v1517 = vld [vmem:[%s192 + $0x34] sm:$0x3]
      %s1518 = scalar_lea.vmem %s1, 512
      %v1519 = vld [vmem:[%s1518] sm:$0xf]
      %v1520 = vld [vmem:[%s1518 + $0x4] sm:$0xf]
      %v1521 = vld [vmem:[%s1518 + $0x8] sm:$0xf]
      %v1522 = vld [vmem:[%s1518 + $0xc] sm:$0xf]
      %v1523 = vld [vmem:[%s1518 + $0x10] sm:$0xf]
      %v1524 = vld [vmem:[%s1518 + $0x14] sm:$0xf]
      %v1525 = vld [vmem:[%s1518 + $0x18] sm:$0xf]
      %v1526 = vld [vmem:[%s1518 + $0x1c] sm:$0xf]
      %v1527 = vld [vmem:[%s1518 + $0x20] sm:$0xf]
      %v1528 = vld [vmem:[%s1518 + $0x24] sm:$0xf]
      %v1529 = vld [vmem:[%s1518 + $0x28] sm:$0xf]
      %v1530 = vld [vmem:[%s1518 + $0x2c] sm:$0xf]
      %v1531 = vld [vmem:[%s1518 + $0x30] sm:$0xf]
      %v1532 = vld [vmem:[%s1518 + $0x34] sm:$0xf]
      %v1533 = vld [vmem:[%s1518 + $0x38] sm:$0xf]
      %v1534 = vld [vmem:[%s1518 + $0x3c] sm:$0xf]
      %v1536 = vunpack.c.l.b16 %v1517
      %v1537 = vpack.c.b16 %v1536, %v1536
      %vm1538 = vsmask.f32 6400
      %v1540 = vshrl.u32 %v1407, 16
      %v1542 = vrot.slane %v1540, 1
      %v1543 = vshll.u32 %v1407, 16
      %v1545 = vrot.slane %v1543, 2
      %v1546 = vor.u32 %v1542, %v1545
      %v1547 = vrot.slane %v1258, 1
      %v1548 = vrot.slane %v1254, 2
      %v1549 = vor.u32 %v1547, %v1548
      %v1550 = vsel %vm1538, %v1546, %v1549
      %v1551 = vrot.slane %v1266, 1
      %v1552 = vrot.slane %v1262, 2
      %v1553 = vor.u32 %v1551, %v1552
      %v1554 = vsel %vm1538, %v1549, %v1553
      %v1555 = vrot.slane %v1274, 1
      %v1556 = vrot.slane %v1270, 2
      %v1557 = vor.u32 %v1555, %v1556
      %v1558 = vsel %vm1538, %v1553, %v1557
      %v1559 = vrot.slane %v1282, 1
      %v1560 = vrot.slane %v1278, 2
      %v1561 = vor.u32 %v1559, %v1560
      %v1562 = vsel %vm1538, %v1557, %v1561
      %v1564 = vshrl.u32 %v1537, 16
      %v1566 = vrot.slane %v1564, 1
      %v1567 = vshll.u32 %v1537, 16
      %v1569 = vrot.slane %v1567, 2
      %v1570 = vor.u32 %v1566, %v1569
      %v1571 = vsel %vm1538, %v1561, %v1570
      %v1593 = vunpack.c.l.b16 %v1519
      %v1594 = vunpack.c.l.b16 %v1520
      %v1595 = vunpack.c.l.b16 %v1521
      %v1596 = vunpack.c.l.b16 %v1522
      %v1597 = vunpack.c.l.b16 %v1523
      %v1598 = vunpack.c.l.b16 %v1524
      %v1599 = vunpack.c.l.b16 %v1525
      %v1600 = vunpack.c.l.b16 %v1526
      %v1601 = vunpack.c.l.b16 %v1527
      %v1602 = vunpack.c.l.b16 %v1528
      %v1603 = vunpack.c.l.b16 %v1529
      %v1604 = vunpack.c.l.b16 %v1530
      %v1605 = vunpack.c.l.b16 %v1531
      %v1606 = vunpack.c.l.b16 %v1532
      %v1607 = vunpack.c.l.b16 %v1533
      %v1608 = vunpack.c.l.b16 %v1534
      %v1609 = vpack.c.b16 %v1594, %v1593
      %v1610 = vpack.c.b16 %v1596, %v1595
      %v1611 = vpack.c.b16 %v1598, %v1597
      %v1612 = vpack.c.b16 %v1600, %v1599
      %v1613 = vpack.c.b16 %v1602, %v1601
      %v1614 = vpack.c.b16 %v1604, %v1603
      %v1615 = vpack.c.b16 %v1606, %v1605
      %v1616 = vpack.c.b16 %v1608, %v1607
      %1625 = vmatpush.bf16.msra.mxu0 %v1616
      %1626 = vmatpush.bf16.msra.mxu0 %v1615
      %1627 = vmatpush.bf16.msra.mxu0 %v1614
      %1628 = vmatpush.bf16.msra.mxu0 %v1613
      %1629 = vmatpush.bf16.msra.mxu0 %v1612
      %1630 = vmatpush.bf16.msra.mxu0 %v1611
      %1631 = vmatpush.bf16.msra.mxu0 %v1610
      %1632 = vmatpush.bf16.msra.mxu0 %v1609
      %1633 = vmatmul.bf16.gmra.mxu0 %v1550
      %v1634 = vpop.f32.mrf.mxu0
      %v1635 = vadd.f32 0.0, %v1634
      %v1636 = vpop.f32.mrf.mxu0
      %v1637 = vadd.f32 0.0, %v1636
      %1638 = vmatmul.bf16.gmra.mxu0 %v1554
      %v1639 = vpop.f32.mrf.mxu0
      %v1640 = vadd.f32 0.0, %v1639
      %v1641 = vpop.f32.mrf.mxu0
      %v1642 = vadd.f32 0.0, %v1641
      %1643 = vmatmul.bf16.gmra.mxu0 %v1558
      %v1644 = vpop.f32.mrf.mxu0
      %v1645 = vadd.f32 0.0, %v1644
      %v1646 = vpop.f32.mrf.mxu0
      %v1647 = vadd.f32 0.0, %v1646
      %1648 = vmatmul.bf16.gmra.mxu0 %v1562
      %v1649 = vpop.f32.mrf.mxu0
      %v1650 = vadd.f32 0.0, %v1649
      %v1651 = vpop.f32.mrf.mxu0
      %v1652 = vadd.f32 0.0, %v1651
      %1653 = vmatmul.bf16.gmra.mxu0 %v1571
      %v1654 = vpop.f32.mrf.mxu0
      %v1655 = vadd.f32 0.0, %v1654
      %v1656 = vpop.f32.mrf.mxu0
      %v1657 = vadd.f32 0.0, %v1656
      %1658 = vdwg.mxu0
      %v1659 = vadd.f32 %v1507, %v1635
      %v1660 = vadd.f32 %v1508, %v1637
      %v1661 = vadd.f32 %v1509, %v1640
      %v1662 = vadd.f32 %v1510, %v1642
      %v1663 = vadd.f32 %v1511, %v1645
      %v1664 = vadd.f32 %v1512, %v1647
      %v1665 = vadd.f32 %v1513, %v1650
      %v1666 = vadd.f32 %v1514, %v1652
      %v1667 = vadd.f32 %v1515, %v1655
      %v1668 = vadd.f32 %v1516, %v1657
      %v1669 = vld [vmem:[%s2] sm:$0x1]
      %v1671 = vperm.slane %v1669, 0
      %v1673 = vadd.f32 %v1659, %v1671
      %v1674 = vadd.f32 %v1660, %v1671
      %v1675 = vadd.f32 %v1661, %v1671
      %v1676 = vadd.f32 %v1662, %v1671
      %v1677 = vadd.f32 %v1663, %v1671
      %v1678 = vadd.f32 %v1664, %v1671
      %v1679 = vadd.f32 %v1665, %v1671
      %v1680 = vadd.f32 %v1666, %v1671
      %v1681 = vadd.f32 %v1667, %v1671
      %v1682 = vadd.f32 %v1668, %v1671
      %v1683 = vmax.f32 %v1673, 0.0
      %v1684 = vmax.f32 %v1674, 0.0
      %v1685 = vmax.f32 %v1675, 0.0
      %v1686 = vmax.f32 %v1676, 0.0
      %v1687 = vmax.f32 %v1677, 0.0
      %v1688 = vmax.f32 %v1678, 0.0
      %v1689 = vmax.f32 %v1679, 0.0
      %v1690 = vmax.f32 %v1680, 0.0
      %v1691 = vmax.f32 %v1681, 0.0
      %v1692 = vmax.f32 %v1682, 0.0
      %v1693 = vld [vmem:[%s3] sm:$0xff]
      %v1694 = vld [vmem:[%s3 + $0x8] sm:$0xff]
      %v1695 = vld [vmem:[%s3 + $0x10] sm:$0xff]
      %v1696 = vld [vmem:[%s3 + $0x18] sm:$0xff]
      %v1697 = vld [vmem:[%s3 + $0x20] sm:$0xff]
      %v1698 = vld [vmem:[%s3 + $0x28] sm:$0xff]
      %v1699 = vld [vmem:[%s3 + $0x30] sm:$0xff]
      %v1700 = vld [vmem:[%s3 + $0x38] sm:$0xff]
      %v1701 = vld [vmem:[%s3 + $0x40] sm:$0xff]
      %v1702 = vld [vmem:[%s3 + $0x48] sm:$0xff]
      %1704 = vset.pattern.permute.xlu0 0
      %1705 = vperm.xlu0 %1704, %v1693
      %v1706 = vpop.permute.xlu0 %1705
      %1709 = vset.pattern.permute.xlu0 0
      %1710 = vperm.xlu0 %1709, %v1694
      %v1711 = vpop.permute.xlu0 %1710
      %1714 = vset.pattern.permute.xlu0 0
      %1715 = vperm.xlu0 %1714, %v1695
      %v1716 = vpop.permute.xlu0 %1715
      %1719 = vset.pattern.permute.xlu0 0
      %1720 = vperm.xlu0 %1719, %v1696
      %v1721 = vpop.permute.xlu0 %1720
      %1724 = vset.pattern.permute.xlu0 0
      %1725 = vperm.xlu0 %1724, %v1697
      %v1726 = vpop.permute.xlu0 %1725
      %1729 = vset.pattern.permute.xlu0 0
      %1730 = vperm.xlu0 %1729, %v1698
      %v1731 = vpop.permute.xlu0 %1730
      %1734 = vset.pattern.permute.xlu0 0
      %1735 = vperm.xlu0 %1734, %v1699
      %v1736 = vpop.permute.xlu0 %1735
      %1739 = vset.pattern.permute.xlu0 0
      %1740 = vperm.xlu0 %1739, %v1700
      %v1741 = vpop.permute.xlu0 %1740
      %1744 = vset.pattern.permute.xlu0 0
      %1745 = vperm.xlu0 %1744, %v1701
      %v1746 = vpop.permute.xlu0 %1745
      %1749 = vset.pattern.permute.xlu0 0
      %1750 = vperm.xlu0 %1749, %v1702
      %v1751 = vpop.permute.xlu0 %1750
      %v1753 = vmul.f32 %v1683, %v1706
      %v1754 = vmul.f32 %v1684, %v1711
      %v1755 = vmul.f32 %v1685, %v1716
      %v1756 = vmul.f32 %v1686, %v1721
      %v1757 = vmul.f32 %v1687, %v1726
      %v1758 = vmul.f32 %v1688, %v1731
      %v1759 = vmul.f32 %v1689, %v1736
      %v1760 = vmul.f32 %v1690, %v1741
      %v1761 = vmul.f32 %v1691, %v1746
      %v1762 = vmul.f32 %v1692, %v1751
      %1763 = vst [vmem:[%s197] sm:$0xf] 0
      %1764 = vst [vmem:[%s197 + $0x4] sm:$0xf] 0
      %1765 = vst [vmem:[%s197 + $0x8] sm:$0xf] 0
      %1766 = vst [vmem:[%s197 + $0xc] sm:$0xf] 0
      %1767 = vst [vmem:[%s197 + $0x10] sm:$0xf] 0
      %1768 = vst [vmem:[%s197 + $0x14] sm:$0xf] 0
      %1769 = vst [vmem:[%s197 + $0x18] sm:$0xf] 0
      %1770 = vst [vmem:[%s197 + $0x1c] sm:$0xf] 0
      %1771 = vst [vmem:[%s197 + $0x20] sm:$0xf] 0
      %1772 = vst [vmem:[%s197 + $0x24] sm:$0xf] 0
      %1773 = vst [vmem:[%s197 + $0x28] sm:$0xf] 0
      %1774 = vst [vmem:[%s197 + $0x2c] sm:$0xf] 0
      %1775 = vst [vmem:[%s197 + $0x30] sm:$0xf] 0
      %1776 = vst [vmem:[%s197 + $0x34] sm:$0xf] 0
      %v1777 = vpack.c.bf16 %v1753, %v1753
      %v1778 = vpack.c.bf16 %v1754, %v1754
      %v1779 = vpack.c.bf16 %v1755, %v1755
      %v1780 = vpack.c.bf16 %v1756, %v1756
      %v1781 = vpack.c.bf16 %v1757, %v1757
      %v1782 = vpack.c.bf16 %v1758, %v1758
      %v1783 = vpack.c.bf16 %v1759, %v1759
      %v1784 = vpack.c.bf16 %v1760, %v1760
      %v1785 = vpack.c.bf16 %v1761, %v1761
      %v1786 = vpack.c.bf16 %v1762, %v1762
      %1787 = vst [vmem:[%s197 + $0x8] sm:$0xf] %v1777
      %1788 = vst [vmem:[%s197 + $0xc] sm:$0xf] %v1778
      %1789 = vst [vmem:[%s197 + $0x10] sm:$0xf] %v1779
      %1790 = vst [vmem:[%s197 + $0x14] sm:$0xf] %v1780
      %1791 = vst [vmem:[%s197 + $0x18] sm:$0xf] %v1781
      %1792 = vst [vmem:[%s197 + $0x1c] sm:$0xf] %v1782
      %1793 = vst [vmem:[%s197 + $0x20] sm:$0xf] %v1783
      %1794 = vst [vmem:[%s197 + $0x24] sm:$0xf] %v1784
      %1795 = vst [vmem:[%s197 + $0x28] sm:$0xf] %v1785
      %1796 = vst [vmem:[%s197 + $0x2c] sm:$0xf] %v1786
      %p1797 = scmp.lt.s32.totalorder %s15, 1
      %s1798 = scalar_select %p1797, %s15, 1
      %s1799 = smul.addr %s1798, 14
      %s1800 = smul.addr %s1799, 4
      %s1801 = scalar_lea.vmem %s4, %s1800
      // Predicated region
      $region37: #{encode_block_forward.6} parent=35 // pred_check
        %p1802 = pneg %p122
      $region38: #{encode_block_forward.6} parent=35 // pred_check_branch
        %1804 = sbr.rel (%p1802) target = $region40
      $region39: #{encode_block_forward.6} parent=35 // pred_region
        _
      $region40: #{encode_block_forward.6} parent=35 // pred_fallthru
        _
    $region36: #{encode_block_forward.6} parent=5 // pred_fallthru
      _
    %p1805 = scmp.le.s32.totalorder 2, %s10
    // Predicated region
    $region41: #{encode_block_forward.6} parent=5 // pred_check
      %p1806 = pneg %p1805
    $region42: #{encode_block_forward.6} parent=5 // pred_check_branch
      %1808 = sbr.rel (%p1806) target = $region44
    $region43: #{encode_block_forward.6} parent=5 // pred_region
      %s1809 = ssub.s32 %s10, 2
      // Predicated region
      $region45: #{encode_block_forward.6} parent=43 // pred_check
        %p1810 = pneg %p128
      $region46: #{encode_block_forward.6} parent=43 // pred_check_branch
        %1812 = sbr.rel (%p1810) target = $region48
      $region47: #{encode_block_forward.6} parent=43 // pred_region
        %p1813 = scmp.lt.s32.totalorder %s16, 1
        %s1814 = scalar_select %p1813, %s16, 1
        %s1815 = smul.addr %s1814, 14
        %s1816 = smul.addr %s1815, 4
        %s1817 = scalar_lea.vmem %s4, %s1816
      $region48: #{encode_block_forward.6} parent=43 // pred_fallthru
        _
    $region44: #{encode_block_forward.6} parent=5 // pred_fallthru
      _
  $region6: #{encode_block_forward.6} parent=0 // loop_footer
    %s14 = sadd.s32 1, %s10
  $region7: #{encode_block_forward.6} parent=0 // loop_footer_branch
    %9 = sbr.rel target = $region3
  $region8: #{encode_block_forward.6} parent=0 // loop_exit
    _

// kernel: encode_block_forward.8
$region0: #{encode_block_forward.8}
  #allocation0 [shape = 'u32[]', space=smem, size = 0x4, offset = 0x4, fixed_abs, tag = 'smem constant byte address 0x4 - core index']
  #allocation1 [shape = 'u32[72,128]{1,0:T(1,128)}', space=vmem, size = 0x9000, scoped, tag = 'internal scratch']
  %s0 = inlined_call_operand.vmem [shape: bf16[2,112,128], index: 0, kind: input, shape index: {}]
  %s1 = inlined_call_operand.vmem [shape: bf16[2,112,128], index: 1, kind: input, shape index: {}]
  %s2 = inlined_call_operand.vmem [shape: bf16[9,128,128], index: 2, kind: input, shape index: {}]
  %s3 = inlined_call_operand.vmem [shape: f32[1,128], index: 3, kind: input, shape index: {}]
  %s4 = inlined_call_operand.vmem [shape: f32[80,1], index: 4, kind: input, shape index: {}]
  %s5 = inlined_call_operand.vmem [shape: bf16[2,112,128], index: 5, kind: output, shape index: {}]
  %s6 = sld [smem:[#allocation0]]
  $region53: #{encode_block_forward.8} parent=0
    _
  %s8 = ssub.s32 1, %s6
  %s9 = scalar_select 0, %s8, %s6
  loop: start=0, step=1, limit=4
  $region2: #{encode_block_forward.8} parent=0 // loop_pre_header
    _
  $region3: #{encode_block_forward.8} parent=0 // loop_header
    %s11 = sphi 0, %s15
    %p12 = scmp.ge.s32.totalorder %s11, 4
    %s21 = sphi 0, %s23
    %s24 = sphi 0, %s21
    %s25 = sphi 0, %s24
    %s41 = sphi 0, %s25
    %s47 = sphi 0, %s49
    %s50 = sphi 0, %s47
    %s51 = sphi 0, %s50
    %s67 = sphi 0, %s51
    %s71 = sphi 0, %s71
    %s73 = sphi 0, %s71
    %s74 = sphi 0, %s73
    %s88 = sphi 0, %s74
    %s92 = sphi 0, %s92
    %s94 = sphi 0, %s92
    %s95 = sphi 0, %s94
    %s109 = sphi 0, %s95
    %s113 = sphi 0, %s113
    %s115 = sphi 0, %s113
    %s116 = sphi 0, %s115
    %s130 = sphi 0, %s116
    %s136 = sphi 0, %s138
    %s139 = sphi 0, %s136
    %s140 = sphi 0, %s139
    %s156 = sphi 0, %s140
  $region4: #{encode_block_forward.8} parent=0 // loop_header_branch
    %14 = sbr.rel (%p12) target = $region8
  $region5: #{encode_block_forward.8} parent=0 // loop_body
    %s16 = ssub.s32 %s11, 1
    %s17 = ssub.s32 %s11, 2
    %s18 = sadd.s32 %s11, 1
    %s19 = ssub.s32 %s11, %s18
    %p20 = scmp.eq.s32.totalorder %s19, 0
    %s22 = sadd.s32 %s21, 1
    %s23 = scalar_select %p20, %s21, %s22
    %p26 = pneg %p20
    %p27 = scmp.eq.s32.totalorder %s11, 1
    %p28 = por %p26, %p27
    %p29 = scmp.ne.s32.totalorder %s21, %s24
    %p30 = scmp.eq.s32.totalorder %s11, 0
    %p31 = por %p29, %p30
    %p32 = scmp.ne.s32.totalorder %s21, %s24
    %p33 = scmp.eq.s32.totalorder %s16, 1
    %p34 = por %p32, %p33
    %p35 = scmp.ne.s32.totalorder %s24, %s25
    %p36 = scmp.eq.s32.totalorder %s16, 0
    %p37 = por %p35, %p36
    %p38 = scmp.ne.s32.totalorder %s24, %s25
    %p39 = scmp.eq.s32.totalorder %s17, 1
    %p40 = por %p38, %p39
    %p42 = scmp.ne.s32.totalorder %s25, %s41
    %p43 = scmp.eq.s32.totalorder %s17, 0
    %p44 = por %p42, %p43
    %s45 = ssub.s32 %s11, %s18
    %p46 = scmp.eq.s32.totalorder %s45, 0
    %s48 = sadd.s32 %s47, 1
    %s49 = scalar_select %p46, %s47, %s48
    %p52 = pneg %p46
    %p53 = scmp.eq.s32.totalorder %s11, 1
    %p54 = por %p52, %p53
    %p55 = scmp.ne.s32.totalorder %s47, %s50
    %p56 = scmp.eq.s32.totalorder %s11, 0
    %p57 = por %p55, %p56
    %p58 = scmp.ne.s32.totalorder %s47, %s50
    %p59 = scmp.eq.s32.totalorder %s16, 1
    %p60 = por %p58, %p59
    %p61 = scmp.ne.s32.totalorder %s50, %s51
    %p62 = scmp.eq.s32.totalorder %s16, 0
    %p63 = por %p61, %p62
    %p64 = scmp.ne.s32.totalorder %s50, %s51
    %p65 = scmp.eq.s32.totalorder %s17, 1
    %p66 = por %p64, %p65
    %p68 = scmp.ne.s32.totalorder %s51, %s67
    %p69 = scmp.eq.s32.totalorder %s17, 0
    %p70 = por %p68, %p69
    %s72 = sadd.s32 %s71, 1
    %p75 = scmp.eq.s32.totalorder %s11, 1
    %p76 = scmp.ne.s32.totalorder %s71, %s73
    %p77 = scmp.eq.s32.totalorder %s11, 0
    %p78 = por %p76, %p77
    %p79 = scmp.ne.s32.totalorder %s71, %s73
    %p80 = scmp.eq.s32.totalorder %s16, 1
    %p81 = por %p79, %p80
    %p82 = scmp.ne.s32.totalorder %s73, %s74
    %p83 = scmp.eq.s32.totalorder %s16, 0
    %p84 = por %p82, %p83
    %p85 = scmp.ne.s32.totalorder %s73, %s74
    %p86 = scmp.eq.s32.totalorder %s17, 1
    %p87 = por %p85, %p86
    %p89 = scmp.ne.s32.totalorder %s74, %s88
    %p90 = scmp.eq.s32.totalorder %s17, 0
    %p91 = por %p89, %p90
    %s93 = sadd.s32 %s92, 1
    %p96 = scmp.eq.s32.totalorder %s11, 1
    %p97 = scmp.ne.s32.totalorder %s92, %s94
    %p98 = scmp.eq.s32.totalorder %s11, 0
    %p99 = por %p97, %p98
    %p100 = scmp.ne.s32.totalorder %s92, %s94
    %p101 = scmp.eq.s32.totalorder %s16, 1
    %p102 = por %p100, %p101
    %p103 = scmp.ne.s32.totalorder %s94, %s95
    %p104 = scmp.eq.s32.totalorder %s16, 0
    %p105 = por %p103, %p104
    %p106 = scmp.ne.s32.totalorder %s94, %s95
    %p107 = scmp.eq.s32.totalorder %s17, 1
    %p108 = por %p106, %p107
    %p110 = scmp.ne.s32.totalorder %s95, %s109
    %p111 = scmp.eq.s32.totalorder %s17, 0
    %p112 = por %p110, %p111
    %s114 = sadd.s32 %s113, 1
    %p117 = scmp.eq.s32.totalorder %s11, 1
    %p118 = scmp.ne.s32.totalorder %s113, %s115
    %p119 = scmp.eq.s32.totalorder %s11, 0
    %p120 = por %p118, %p119
    %p121 = scmp.ne.s32.totalorder %s113, %s115
    %p122 = scmp.eq.s32.totalorder %s16, 1
    %p123 = por %p121, %p122
    %p124 = scmp.ne.s32.totalorder %s115, %s116
    %p125 = scmp.eq.s32.totalorder %s16, 0
    %p126 = por %p124, %p125
    %p127 = scmp.ne.s32.totalorder %s115, %s116
    %p128 = scmp.eq.s32.totalorder %s17, 1
    %p129 = por %p127, %p128
    %p131 = scmp.ne.s32.totalorder %s116, %s130
    %p132 = scmp.eq.s32.totalorder %s17, 0
    %p133 = por %p131, %p132
    %s134 = ssub.s32 %s11, %s18
    %p135 = scmp.eq.s32.totalorder %s134, 0
    %s137 = sadd.s32 %s136, 1
    %s138 = scalar_select %p135, %s136, %s137
    %p141 = pneg %p135
    %p142 = scmp.eq.s32.totalorder %s11, 1
    %p143 = por %p141, %p142
    %p144 = scmp.ne.s32.totalorder %s136, %s139
    %p145 = scmp.eq.s32.totalorder %s11, 0
    %p146 = por %p144, %p145
    %p147 = scmp.ne.s32.totalorder %s136, %s139
    %p148 = scmp.eq.s32.totalorder %s16, 1
    %p149 = por %p147, %p148
    %p150 = scmp.ne.s32.totalorder %s139, %s140
    %p151 = scmp.eq.s32.totalorder %s16, 0
    %p152 = por %p150, %p151
    %p153 = scmp.ne.s32.totalorder %s139, %s140
    %p154 = scmp.eq.s32.totalorder %s17, 1
    %p155 = por %p153, %p154
    %p157 = scmp.ne.s32.totalorder %s140, %s156
    %p158 = scmp.eq.s32.totalorder %s17, 0
    %p159 = por %p157, %p158
    %p160 = scmp.le.s32.totalorder 1, %s11
    %p161 = scmp.lt.s32.totalorder %s11, 3
    %p162 = pnand %p160, %p161
    %p163 = pneg %p162
    // Predicated region
    $region9: #{encode_block_forward.8} parent=5 // pred_check
      _
    $region10: #{encode_block_forward.8} parent=5 // pred_check_branch
      %165 = sbr.rel (%p162) target = $region12
    $region11: #{encode_block_forward.8} parent=5 // pred_region
      %s166 = ssub.s32 %s11, 1
      // Predicated region
      $region13: #{encode_block_forward.8} parent=11 // pred_check
        %p167 = pneg %p84
      $region14: #{encode_block_forward.8} parent=11 // pred_check_branch
        %169 = sbr.rel (%p167) target = $region16
      $region15: #{encode_block_forward.8} parent=11 // pred_region
        _
      $region16: #{encode_block_forward.8} parent=11 // pred_fallthru
        _
      // Predicated region
      $region17: #{encode_block_forward.8} parent=11 // pred_check
        %p170 = pneg %p105
      $region18: #{encode_block_forward.8} parent=11 // pred_check_branch
        %172 = sbr.rel (%p170) target = $region20
      $region19: #{encode_block_forward.8} parent=11 // pred_region
        _
      $region20: #{encode_block_forward.8} parent=11 // pred_fallthru
        _
      // Predicated region
      $region21: #{encode_block_forward.8} parent=11 // pred_check
        %p173 = pneg %p126
      $region22: #{encode_block_forward.8} parent=11 // pred_check_branch
        %175 = sbr.rel (%p173) target = $region24
      $region23: #{encode_block_forward.8} parent=11 // pred_region
        _
      $region24: #{encode_block_forward.8} parent=11 // pred_fallthru
        _
    $region12: #{encode_block_forward.8} parent=5 // pred_fallthru
      _
    %p176 = scmp.lt.s32.totalorder %s11, 2
    // Predicated region
    $region25: #{encode_block_forward.8} parent=5 // pred_check
      %p177 = pneg %p176
    $region26: #{encode_block_forward.8} parent=5 // pred_check_branch
      %179 = sbr.rel (%p177) target = $region28
    $region27: #{encode_block_forward.8} parent=5 // pred_region
      // Predicated region
      $region29: #{encode_block_forward.8} parent=27 // pred_check
        %p180 = pneg %p31
      $region30: #{encode_block_forward.8} parent=27 // pred_check_branch
        %182 = sbr.rel (%p180) target = $region32
      $region31: #{encode_block_forward.8} parent=27 // pred_region
        %p183 = scmp.lt.s32.totalorder %s11, 1
        %s184 = scalar_select %p183, %s11, 1
        %s185 = smul.addr %s184, 14
        %s186 = smul.addr %s185, 4
        %s187 = scalar_lea.vmem %s0, %s186
      $region32: #{encode_block_forward.8} parent=27 // pred_fallthru
        _
      // Predicated region
      $region33: #{encode_block_forward.8} parent=27 // pred_check
        %p188 = pneg %p57
      $region34: #{encode_block_forward.8} parent=27 // pred_check_branch
        %190 = sbr.rel (%p188) target = $region36
      $region35: #{encode_block_forward.8} parent=27 // pred_region
        %p191 = scmp.lt.s32.totalorder %s11, 1
        %s192 = scalar_select %p191, %s11, 1
        %s193 = smul.addr %s192, 14
        %s194 = smul.addr %s193, 4
        %s195 = scalar_lea.vmem %s1, %s194
      $region36: #{encode_block_forward.8} parent=27 // pred_fallthru
        _
    $region28: #{encode_block_forward.8} parent=5 // pred_fallthru
      _
    %p196 = scmp.le.s32.totalorder 1, %s11
    %p197 = scmp.lt.s32.totalorder %s11, 3
    %p198 = pnand %p196, %p197
    %p199 = pneg %p198
    // Predicated region
    $region37: #{encode_block_forward.8} parent=5 // pred_check
      _
    $region38: #{encode_block_forward.8} parent=5 // pred_check_branch
      %201 = sbr.rel (%p198) target = $region40
    $region39: #{encode_block_forward.8} parent=5 // pred_region
      %s202 = ssub.s32 %s11, 1
      %p203 = scmp.lt.s32.totalorder %s16, 1
      %s204 = scalar_select %p203, %s16, 1
      %s205 = smul.addr %s204, 14
      %s206 = smul.addr %s205, 4
      %s207 = scalar_lea.vmem %s0, %s206
      %p208 = pneg %p37
      %p209 = pneg %p34
      %p210 = scmp.lt.s32.totalorder %s16, 1
      %s211 = scalar_select %p210, %s16, 1
      %s212 = smul.addr %s211, 14
      %s213 = smul.addr %s212, 4
      %s214 = scalar_lea.vmem %s1, %s213
      %p215 = pneg %p63
      %p216 = pneg %p60
      %p217 = pneg %p84
      %p218 = pneg %p81
      %p219 = pneg %p105
      %p220 = pneg %p102
      %p221 = pneg %p126
      %p222 = pneg %p123
      %p223 = pneg %p152
      %p224 = pneg %p149
      %p225 = scmp.lt.s32.totalorder %s16, 1
      %s226 = scalar_select %p225, %s16, 1
      %s227 = smul.addr %s226, 14
      %s228 = smul.addr %s227, 4
      %s229 = scalar_lea.vmem %s5, %s228
      %p230 = scmp.lt.s32.totalorder %s16, 1
      %s231 = scalar_select %p230, %s16, 1
      %s232 = smul.addr %s231, 14
      %s233 = smul.addr %s232, 4
      %s234 = scalar_lea.vmem %s0, %s233
      %p235 = scmp.lt.s32.totalorder %s16, 1
      %s236 = scalar_select %p235, %s16, 1
      %s237 = smul.addr %s236, 14
      %s238 = smul.addr %s237, 4
      %s239 = scalar_lea.vmem %s1, %s238
      %p240 = scmp.lt.s32.totalorder %s16, 1
      %s241 = scalar_select %p240, %s16, 1
      %s242 = smul.addr %s241, 14
      %s243 = smul.addr %s242, 4
      %s244 = scalar_lea.vmem %s5, %s243
      %v246 = vld [vmem:[%s234] sm:$0xc]
      %v247 = vld [vmem:[%s234 + $0x4] sm:$0xf]
      %v248 = vld [vmem:[%s234 + $0x8] sm:$0xf]
      %v249 = vld [vmem:[%s234 + $0xc] sm:$0xf]
      %v250 = vld [vmem:[%s234 + $0x10] sm:$0xf]
      %v251 = vld [vmem:[%s234 + $0x14] sm:$0xf]
      %v252 = vld [vmem:[%s234 + $0x18] sm:$0xf]
      %v253 = vld [vmem:[%s234 + $0x1c] sm:$0xf]
      %v254 = vld [vmem:[%s234 + $0x20] sm:$0xf]
      %v255 = vld [vmem:[%s234 + $0x24] sm:$0xf]
      %v256 = vld [vmem:[%s234 + $0x28] sm:$0x7]
      %v257 = vld [vmem:[%s239] sm:$0xc]
      %v258 = vld [vmem:[%s239 + $0x4] sm:$0xf]
      %v259 = vld [vmem:[%s239 + $0x8] sm:$0xf]
      %v260 = vld [vmem:[%s239 + $0xc] sm:$0xf]
      %v261 = vld [vmem:[%s239 + $0x10] sm:$0xf]
      %v262 = vld [vmem:[%s239 + $0x14] sm:$0xf]
      %v263 = vld [vmem:[%s239 + $0x18] sm:$0xf]
      %v264 = vld [vmem:[%s239 + $0x1c] sm:$0xf]
      %v265 = vld [vmem:[%s239 + $0x20] sm:$0xf]
      %v266 = vld [vmem:[%s239 + $0x24] sm:$0xf]
      %v267 = vld [vmem:[%s239 + $0x28] sm:$0x7]
      %v268 = vunpack.c.l.bf16 %v246
      %v269 = vunpack.c.l.bf16 %v247
      %v270 = vunpack.c.l.bf16 %v248
      %v271 = vunpack.c.l.bf16 %v249
      %v272 = vunpack.c.l.bf16 %v250
      %v273 = vunpack.c.l.bf16 %v251
      %v274 = vunpack.c.l.bf16 %v252
      %v275 = vunpack.c.l.bf16 %v253
      %v276 = vunpack.c.l.bf16 %v254
      %v277 = vunpack.c.l.bf16 %v255
      %v278 = vunpack.c.l.bf16 %v256
      %v279 = vunpack.c.l.bf16 %v257
      %v280 = vunpack.c.l.bf16 %v258
      %v281 = vunpack.c.l.bf16 %v259
      %v282 = vunpack.c.l.bf16 %v260
      %v283 = vunpack.c.l.bf16 %v261
      %v284 = vunpack.c.l.bf16 %v262
      %v285 = vunpack.c.l.bf16 %v263
      %v286 = vunpack.c.l.bf16 %v264
      %v287 = vunpack.c.l.bf16 %v265
      %v288 = vunpack.c.l.bf16 %v266
      %v289 = vunpack.c.l.bf16 %v267
      %v290 = vadd.f32 %v268, %v279
      %v291 = vadd.f32 %v269, %v280
      %v292 = vadd.f32 %v270, %v281
      %v293 = vadd.f32 %v271, %v282
      %v294 = vadd.f32 %v272, %v283
      %v295 = vadd.f32 %v273, %v284
      %v296 = vadd.f32 %v274, %v285
      %v297 = vadd.f32 %v275, %v286
      %v298 = vadd.f32 %v276, %v287
      %v299 = vadd.f32 %v277, %v288
      %v300 = vadd.f32 %v278, %v289
      %v301 = vpack.c.bf16 %v291, %v290
      %v302 = vpack.c.bf16 %v293, %v292
      %v303 = vpack.c.bf16 %v295, %v294
      %v304 = vpack.c.bf16 %v297, %v296
      %v305 = vpack.c.bf16 %v299, %v298
      %v306 = vpack.c.bf16 %v300, %v300
      %v307 = vld [vmem:[%s2] sm:$0xf]
      %v308 = vld [vmem:[%s2 + $0x4] sm:$0xf]
      %v309 = vld [vmem:[%s2 + $0x8] sm:$0xf]
      %v310 = vld [vmem:[%s2 + $0xc] sm:$0xf]
      %v311 = vld [vmem:[%s2 + $0x10] sm:$0xf]
      %v312 = vld [vmem:[%s2 + $0x14] sm:$0xf]
      %v313 = vld [vmem:[%s2 + $0x18] sm:$0xf]
      %v314 = vld [vmem:[%s2 + $0x1c] sm:$0xf]
      %v315 = vld [vmem:[%s2 + $0x20] sm:$0xf]
      %v316 = vld [vmem:[%s2 + $0x24] sm:$0xf]
      %v317 = vld [vmem:[%s2 + $0x28] sm:$0xf]
      %v318 = vld [vmem:[%s2 + $0x2c] sm:$0xf]
      %v319 = vld [vmem:[%s2 + $0x30] sm:$0xf]
      %v320 = vld [vmem:[%s2 + $0x34] sm:$0xf]
      %v321 = vld [vmem:[%s2 + $0x38] sm:$0xf]
      %v322 = vld [vmem:[%s2 + $0x3c] sm:$0xf]
      %v323 = vld [vmem:[%s234] sm:$0x8]
      %v324 = vld [vmem:[%s239] sm:$0x8]
      %v325 = vunpack.c.l.bf16 %v323
      %v326 = vunpack.c.l.bf16 %v324
      %v327 = vadd.f32 %v325, %v326
      %v328 = vpack.c.bf16 %v291, %v327
      %s329 = scalar_lea.vmem %s2, 64
      %v330 = vld [vmem:[%s329] sm:$0xf]
      %v331 = vld [vmem:[%s329 + $0x4] sm:$0xf]
      %v332 = vld [vmem:[%s329 + $0x8] sm:$0xf]
      %v333 = vld [vmem:[%s329 + $0xc] sm:$0xf]
      %v334 = vld [vmem:[%s329 + $0x10] sm:$0xf]
      %v335 = vld [vmem:[%s329 + $0x14] sm:$0xf]
      %v336 = vld [vmem:[%s329 + $0x18] sm:$0xf]
      %v337 = vld [vmem:[%s329 + $0x1c] sm:$0xf]
      %v338 = vld [vmem:[%s329 + $0x20] sm:$0xf]
      %v339 = vld [vmem:[%s329 + $0x24] sm:$0xf]
      %v340 = vld [vmem:[%s329 + $0x28] sm:$0xf]
      %v341 = vld [vmem:[%s329 + $0x2c] sm:$0xf]
      %v342 = vld [vmem:[%s329 + $0x30] sm:$0xf]
      %v343 = vld [vmem:[%s329 + $0x34] sm:$0xf]
      %v344 = vld [vmem:[%s329 + $0x38] sm:$0xf]
      %v345 = vld [vmem:[%s329 + $0x3c] sm:$0xf]
      %vm352 = vcmask 1044480
      %v353 = vrot.slane %v328, 3
      %v354 = vrot.slane %v302, 3
      %v355 = vsel %vm352, %v353, %v354
      %v356 = vrot.slane %v303, 3
      %v357 = vsel %vm352, %v354, %v356
      %v358 = vrot.slane %v304, 3
      %v359 = vsel %vm352, %v356, %v358
      %v360 = vrot.slane %v305, 3
      %v361 = vsel %vm352, %v358, %v360
      %v362 = vrot.slane %v306, 3
      %v363 = vsel %vm352, %v360, %v362
      %v385 = vunpack.c.l.b16 %v330
      %v386 = vunpack.c.l.b16 %v331
      %v387 = vunpack.c.l.b16 %v332
      %v388 = vunpack.c.l.b16 %v333
      %v389 = vunpack.c.l.b16 %v334
      %v390 = vunpack.c.l.b16 %v335
      %v391 = vunpack.c.l.b16 %v336
      %v392 = vunpack.c.l.b16 %v337
      %v393 = vunpack.c.l.b16 %v338
      %v394 = vunpack.c.l.b16 %v339
      %v395 = vunpack.c.l.b16 %v340
      %v396 = vunpack.c.l.b16 %v341
      %v397 = vunpack.c.l.b16 %v342
      %v398 = vunpack.c.l.b16 %v343
      %v399 = vunpack.c.l.b16 %v344
      %v400 = vunpack.c.l.b16 %v345
      %v401 = vpack.c.b16 %v386, %v385
      %v402 = vpack.c.b16 %v388, %v387
      %v403 = vpack.c.b16 %v390, %v389
      %v404 = vpack.c.b16 %v392, %v391
      %v405 = vpack.c.b16 %v394, %v393
      %v406 = vpack.c.b16 %v396, %v395
      %v407 = vpack.c.b16 %v398, %v397
      %v408 = vpack.c.b16 %v400, %v399
      %417 = vmatpush.bf16.msra.mxu0 %v408
      %418 = vmatpush.bf16.msra.mxu0 %v407
      %419 = vmatpush.bf16.msra.mxu0 %v406
      %420 = vmatpush.bf16.msra.mxu0 %v405
      %421 = vmatpush.bf16.msra.mxu0 %v404
      %422 = vmatpush.bf16.msra.mxu0 %v403
      %423 = vmatpush.bf16.msra.mxu0 %v402
      %424 = vmatpush.bf16.msra.mxu0 %v401
      %425 = vmatmul.bf16.gmra.mxu0 %v355
      %v426 = vpop.f32.mrf.mxu0
      %v427 = vadd.f32 0.0, %v426
      %v428 = vpop.f32.mrf.mxu0
      %v429 = vadd.f32 0.0, %v428
      %430 = vmatmul.bf16.gmra.mxu0 %v357
      %v431 = vpop.f32.mrf.mxu0
      %v432 = vadd.f32 0.0, %v431
      %v433 = vpop.f32.mrf.mxu0
      %v434 = vadd.f32 0.0, %v433
      %435 = vmatmul.bf16.gmra.mxu0 %v359
      %v436 = vpop.f32.mrf.mxu0
      %v437 = vadd.f32 0.0, %v436
      %v438 = vpop.f32.mrf.mxu0
      %v439 = vadd.f32 0.0, %v438
      %440 = vmatmul.bf16.gmra.mxu0 %v361
      %v441 = vpop.f32.mrf.mxu0
      %v442 = vadd.f32 0.0, %v441
      %v443 = vpop.f32.mrf.mxu0
      %v444 = vadd.f32 0.0, %v443
      %445 = vmatmul.bf16.gmra.mxu0 %v363
      %v446 = vpop.f32.mrf.mxu0
      %v447 = vadd.f32 0.0, %v446
      %v448 = vpop.f32.mrf.mxu0
      %v449 = vadd.f32 0.0, %v448
      %450 = vdwg.mxu0
      %vm451 = vsmask.f32 5376
      %v453 = vshrl.u32 %v301, 16
      %v455 = vrot.slane %v453, 2
      %v456 = vshll.u32 %v301, 16
      %v458 = vrot.slane %v456, 3
      %v459 = vor.u32 %v455, %v458
      %v461 = vshrl.u32 %v302, 16
      %v463 = vrot.slane %v461, 2
      %v464 = vshll.u32 %v302, 16
      %v466 = vrot.slane %v464, 3
      %v467 = vor.u32 %v463, %v466
      %v468 = vsel %vm451, %v459, %v467
      %v470 = vshrl.u32 %v303, 16
      %v472 = vrot.slane %v470, 2
      %v473 = vshll.u32 %v303, 16
      %v475 = vrot.slane %v473, 3
      %v476 = vor.u32 %v472, %v475
      %v477 = vsel %vm451, %v467, %v476
      %v479 = vshrl.u32 %v304, 16
      %v481 = vrot.slane %v479, 2
      %v482 = vshll.u32 %v304, 16
      %v484 = vrot.slane %v482, 3
      %v485 = vor.u32 %v481, %v484
      %v486 = vsel %vm451, %v476, %v485
      %v488 = vshrl.u32 %v305, 16
      %v490 = vrot.slane %v488, 2
      %v491 = vshll.u32 %v305, 16
      %v493 = vrot.slane %v491, 3
      %v494 = vor.u32 %v490, %v493
      %v495 = vsel %vm451, %v485, %v494
      %v497 = vshrl.u32 %v306, 16
      %v499 = vrot.slane %v497, 2
      %v500 = vshll.u32 %v306, 16
      %v502 = vrot.slane %v500, 3
      %v503 = vor.u32 %v499, %v502
      %v504 = vsel %vm451, %v494, %v503
      %v526 = vunpack.c.l.b16 %v307
      %v527 = vunpack.c.l.b16 %v308
      %v528 = vunpack.c.l.b16 %v309
      %v529 = vunpack.c.l.b16 %v310
      %v530 = vunpack.c.l.b16 %v311
      %v531 = vunpack.c.l.b16 %v312
      %v532 = vunpack.c.l.b16 %v313
      %v533 = vunpack.c.l.b16 %v314
      %v534 = vunpack.c.l.b16 %v315
      %v535 = vunpack.c.l.b16 %v316
      %v536 = vunpack.c.l.b16 %v317
      %v537 = vunpack.c.l.b16 %v318
      %v538 = vunpack.c.l.b16 %v319
      %v539 = vunpack.c.l.b16 %v320
      %v540 = vunpack.c.l.b16 %v321
      %v541 = vunpack.c.l.b16 %v322
      %v542 = vpack.c.b16 %v527, %v526
      %v543 = vpack.c.b16 %v529, %v528
      %v544 = vpack.c.b16 %v531, %v530
      %v545 = vpack.c.b16 %v533, %v532
      %v546 = vpack.c.b16 %v535, %v534
      %v547 = vpack.c.b16 %v537, %v536
      %v548 = vpack.c.b16 %v539, %v538
      %v549 = vpack.c.b16 %v541, %v540
      %558 = vmatpush.bf16.msra.mxu0 %v549
      %559 = vmatpush.bf16.msra.mxu0 %v548
      %560 = vmatpush.bf16.msra.mxu0 %v547
      %561 = vmatpush.bf16.msra.mxu0 %v546
      %562 = vmatpush.bf16.msra.mxu0 %v545
      %563 = vmatpush.bf16.msra.mxu0 %v544
      %564 = vmatpush.bf16.msra.mxu0 %v543
      %565 = vmatpush.bf16.msra.mxu0 %v542
      %566 = vmatmul.bf16.gmra.mxu0 %v468
      %v567 = vpop.f32.mrf.mxu0
      %v568 = vadd.f32 %v427, %v567
      %v569 = vpop.f32.mrf.mxu0
      %v570 = vadd.f32 %v429, %v569
      %571 = vmatmul.bf16.gmra.mxu0 %v477
      %v572 = vpop.f32.mrf.mxu0
      %v573 = vadd.f32 %v432, %v572
      %v574 = vpop.f32.mrf.mxu0
      %v575 = vadd.f32 %v434, %v574
      %576 = vmatmul.bf16.gmra.mxu0 %v486
      %v577 = vpop.f32.mrf.mxu0
      %v578 = vadd.f32 %v437, %v577
      %v579 = vpop.f32.mrf.mxu0
      %v580 = vadd.f32 %v439, %v579
      %581 = vmatmul.bf16.gmra.mxu0 %v495
      %v582 = vpop.f32.mrf.mxu0
      %v583 = vadd.f32 %v442, %v582
      %v584 = vpop.f32.mrf.mxu0
      %v585 = vadd.f32 %v444, %v584
      %586 = vmatmul.bf16.gmra.mxu0 %v504
      %v587 = vpop.f32.mrf.mxu0
      %v588 = vadd.f32 %v447, %v587
      %v589 = vpop.f32.mrf.mxu0
      %v590 = vadd.f32 %v449, %v589
      %591 = vdwg.mxu0
      %v592 = vld [vmem:[%s234 + $0x28] sm:$0xf]
      %v593 = vld [vmem:[%s239 + $0x28] sm:$0xf]
      %v594 = vunpack.c.l.bf16 %v592
      %v595 = vunpack.c.l.bf16 %v593
      %v596 = vadd.f32 %v594, %v595
      %v597 = vpack.c.bf16 %v596, %v596
      %s598 = scalar_lea.vmem %s2, 128
      %v599 = vld [vmem:[%s598] sm:$0xf]
      %v600 = vld [vmem:[%s598 + $0x4] sm:$0xf]
      %v601 = vld [vmem:[%s598 + $0x8] sm:$0xf]
      %v602 = vld [vmem:[%s598 + $0xc] sm:$0xf]
      %v603 = vld [vmem:[%s598 + $0x10] sm:$0xf]
      %v604 = vld [vmem:[%s598 + $0x14] sm:$0xf]
      %v605 = vld [vmem:[%s598 + $0x18] sm:$0xf]
      %v606 = vld [vmem:[%s598 + $0x1c] sm:$0xf]
      %v607 = vld [vmem:[%s598 + $0x20] sm:$0xf]
      %v608 = vld [vmem:[%s598 + $0x24] sm:$0xf]
      %v609 = vld [vmem:[%s598 + $0x28] sm:$0xf]
      %v610 = vld [vmem:[%s598 + $0x2c] sm:$0xf]
      %v611 = vld [vmem:[%s598 + $0x30] sm:$0xf]
      %v612 = vld [vmem:[%s598 + $0x34] sm:$0xf]
      %v613 = vld [vmem:[%s598 + $0x38] sm:$0xf]
      %v614 = vld [vmem:[%s598 + $0x3c] sm:$0xf]
      %vm615 = vsmask.f32 4352
      %v617 = vshrl.u32 %v328, 16
      %v619 = vrot.slane %v617, 3
      %v620 = vshll.u32 %v328, 16
      %v622 = vrot.slane %v620, 4
      %v623 = vor.u32 %v619, %v622
      %v624 = vrot.slane %v461, 3
      %v625 = vrot.slane %v464, 4
      %v626 = vor.u32 %v624, %v625
      %v627 = vsel %vm615, %v623, %v626
      %v628 = vrot.slane %v470, 3
      %v629 = vrot.slane %v473, 4
      %v630 = vor.u32 %v628, %v629
      %v631 = vsel %vm615, %v626, %v630
      %v632 = vrot.slane %v479, 3
      %v633 = vrot.slane %v482, 4
      %v634 = vor.u32 %v632, %v633
      %v635 = vsel %vm615, %v630, %v634
      %v636 = vrot.slane %v488, 3
      %v637 = vrot.slane %v491, 4
      %v638 = vor.u32 %v636, %v637
      %v639 = vsel %vm615, %v634, %v638
      %v641 = vshrl.u32 %v597, 16
      %v643 = vrot.slane %v641, 3
      %v644 = vshll.u32 %v597, 16
      %v646 = vrot.slane %v644, 4
      %v647 = vor.u32 %v643, %v646
      %v648 = vsel %vm615, %v638, %v647
      %v670 = vunpack.c.l.b16 %v599
      %v671 = vunpack.c.l.b16 %v600
      %v672 = vunpack.c.l.b16 %v601
      %v673 = vunpack.c.l.b16 %v602
      %v674 = vunpack.c.l.b16 %v603
      %v675 = vunpack.c.l.b16 %v604
      %v676 = vunpack.c.l.b16 %v605
      %v677 = vunpack.c.l.b16 %v606
      %v678 = vunpack.c.l.b16 %v607
      %v679 = vunpack.c.l.b16 %v608
      %v680 = vunpack.c.l.b16 %v609
      %v681 = vunpack.c.l.b16 %v610
      %v682 = vunpack.c.l.b16 %v611
      %v683 = vunpack.c.l.b16 %v612
      %v684 = vunpack.c.l.b16 %v613
      %v685 = vunpack.c.l.b16 %v614
      %v686 = vpack.c.b16 %v671, %v670
      %v687 = vpack.c.b16 %v673, %v672
      %v688 = vpack.c.b16 %v675, %v674
      %v689 = vpack.c.b16 %v677, %v676
      %v690 = vpack.c.b16 %v679, %v678
      %v691 = vpack.c.b16 %v681, %v680
      %v692 = vpack.c.b16 %v683, %v682
      %v693 = vpack.c.b16 %v685, %v684
      %702 = vmatpush.bf16.msra.mxu0 %v693
      %703 = vmatpush.bf16.msra.mxu0 %v692
      %704 = vmatpush.bf16.msra.mxu0 %v691
      %705 = vmatpush.bf16.msra.mxu0 %v690
      %706 = vmatpush.bf16.msra.mxu0 %v689
      %707 = vmatpush.bf16.msra.mxu0 %v688
      %708 = vmatpush.bf16.msra.mxu0 %v687
      %709 = vmatpush.bf16.msra.mxu0 %v686
      %710 = vmatmul.bf16.gmra.mxu0 %v627
      %v711 = vpop.f32.mrf.mxu0
      %v712 = vadd.f32 0.0, %v711
      %v713 = vpop.f32.mrf.mxu0
      %v714 = vadd.f32 0.0, %v713
      %715 = vmatmul.bf16.gmra.mxu0 %v631
      %v716 = vpop.f32.mrf.mxu0
      %v717 = vadd.f32 0.0, %v716
      %v718 = vpop.f32.mrf.mxu0
      %v719 = vadd.f32 0.0, %v718
      %720 = vmatmul.bf16.gmra.mxu0 %v635
      %v721 = vpop.f32.mrf.mxu0
      %v722 = vadd.f32 0.0, %v721
      %v723 = vpop.f32.mrf.mxu0
      %v724 = vadd.f32 0.0, %v723
      %725 = vmatmul.bf16.gmra.mxu0 %v639
      %v726 = vpop.f32.mrf.mxu0
      %v727 = vadd.f32 0.0, %v726
      %v728 = vpop.f32.mrf.mxu0
      %v729 = vadd.f32 0.0, %v728
      %730 = vmatmul.bf16.gmra.mxu0 %v648
      %v731 = vpop.f32.mrf.mxu0
      %v732 = vadd.f32 0.0, %v731
      %v733 = vpop.f32.mrf.mxu0
      %v734 = vadd.f32 0.0, %v733
      %735 = vdwg.mxu0
      %v736 = vadd.f32 %v568, %v712
      %v737 = vadd.f32 %v570, %v714
      %v738 = vadd.f32 %v573, %v717
      %v739 = vadd.f32 %v575, %v719
      %v740 = vadd.f32 %v578, %v722
      %v741 = vadd.f32 %v580, %v724
      %v742 = vadd.f32 %v583, %v727
      %v743 = vadd.f32 %v585, %v729
      %v744 = vadd.f32 %v588, %v732
      %v745 = vadd.f32 %v590, %v734
      %v746 = vld [vmem:[%s234 + $0x4] sm:$0x8]
      %v747 = vld [vmem:[%s234 + $0x8] sm:$0xf]
      %v748 = vld [vmem:[%s234 + $0xc] sm:$0xf]
      %v749 = vld [vmem:[%s234 + $0x10] sm:$0xf]
      %v750 = vld [vmem:[%s234 + $0x14] sm:$0xf]
      %v751 = vld [vmem:[%s234 + $0x18] sm:$0xf]
      %v752 = vld [vmem:[%s234 + $0x1c] sm:$0xf]
      %v753 = vld [vmem:[%s234 + $0x20] sm:$0xf]
      %v754 = vld [vmem:[%s234 + $0x24] sm:$0xf]
      %v755 = vld [vmem:[%s234 + $0x28] sm:$0xf]
      %v756 = vld [vmem:[%s234 + $0x2c] sm:$0xf]
      %v757 = vld [vmem:[%s239 + $0x4] sm:$0x8]
      %v758 = vld [vmem:[%s239 + $0x8] sm:$0xf]
      %v759 = vld [vmem:[%s239 + $0xc] sm:$0xf]
      %v760 = vld [vmem:[%s239 + $0x10] sm:$0xf]
      %v761 = vld [vmem:[%s239 + $0x14] sm:$0xf]
      %v762 = vld [vmem:[%s239 + $0x18] sm:$0xf]
      %v763 = vld [vmem:[%s239 + $0x1c] sm:$0xf]
      %v764 = vld [vmem:[%s239 + $0x20] sm:$0xf]
      %v765 = vld [vmem:[%s239 + $0x24] sm:$0xf]
      %v766 = vld [vmem:[%s239 + $0x28] sm:$0xf]
      %v767 = vld [vmem:[%s239 + $0x2c] sm:$0xf]
      %v768 = vunpack.c.l.bf16 %v746
      %v769 = vunpack.c.l.bf16 %v747
      %v770 = vunpack.c.l.bf16 %v748
      %v771 = vunpack.c.l.bf16 %v749
      %v772 = vunpack.c.l.bf16 %v750
      %v773 = vunpack.c.l.bf16 %v751
      %v774 = vunpack.c.l.bf16 %v752
      %v775 = vunpack.c.l.bf16 %v753
      %v776 = vunpack.c.l.bf16 %v754
      %v777 = vunpack.c.l.bf16 %v755
      %v778 = vunpack.c.l.bf16 %v756
      %v779 = vunpack.c.l.bf16 %v757
      %v780 = vunpack.c.l.bf16 %v758
      %v781 = vunpack.c.l.bf16 %v759
      %v782 = vunpack.c.l.bf16 %v760
      %v783 = vunpack.c.l.bf16 %v761
      %v784 = vunpack.c.l.bf16 %v762
      %v785 = vunpack.c.l.bf16 %v763
      %v786 = vunpack.c.l.bf16 %v764
      %v787 = vunpack.c.l.bf16 %v765
      %v788 = vunpack.c.l.bf16 %v766
      %v789 = vunpack.c.l.bf16 %v767
      %v790 = vadd.f32 %v768, %v779
      %v791 = vadd.f32 %v769, %v780
      %v792 = vadd.f32 %v770, %v781
      %v793 = vadd.f32 %v771, %v782
      %v794 = vadd.f32 %v772, %v783
      %v795 = vadd.f32 %v773, %v784
      %v796 = vadd.f32 %v774, %v785
      %v797 = vadd.f32 %v775, %v786
      %v798 = vadd.f32 %v776, %v787
      %v799 = vadd.f32 %v777, %v788
      %v800 = vadd.f32 %v778, %v789
      %v801 = vpack.c.bf16 %v791, %v790
      %v802 = vpack.c.bf16 %v793, %v792
      %v803 = vpack.c.bf16 %v795, %v794
      %v804 = vpack.c.bf16 %v797, %v796
      %v805 = vpack.c.bf16 %v799, %v798
      %v806 = vpack.c.bf16 %v800, %v800
      %s807 = scalar_lea.vmem %s2, 192
      %v808 = vld [vmem:[%s807] sm:$0xf]
      %v809 = vld [vmem:[%s807 + $0x4] sm:$0xf]
      %v810 = vld [vmem:[%s807 + $0x8] sm:$0xf]
      %v811 = vld [vmem:[%s807 + $0xc] sm:$0xf]
      %v812 = vld [vmem:[%s807 + $0x10] sm:$0xf]
      %v813 = vld [vmem:[%s807 + $0x14] sm:$0xf]
      %v814 = vld [vmem:[%s807 + $0x18] sm:$0xf]
      %v815 = vld [vmem:[%s807 + $0x1c] sm:$0xf]
      %v816 = vld [vmem:[%s807 + $0x20] sm:$0xf]
      %v817 = vld [vmem:[%s807 + $0x24] sm:$0xf]
      %v818 = vld [vmem:[%s807 + $0x28] sm:$0xf]
      %v819 = vld [vmem:[%s807 + $0x2c] sm:$0xf]
      %v820 = vld [vmem:[%s807 + $0x30] sm:$0xf]
      %v821 = vld [vmem:[%s807 + $0x34] sm:$0xf]
      %v822 = vld [vmem:[%s807 + $0x38] sm:$0xf]
      %v823 = vld [vmem:[%s807 + $0x3c] sm:$0xf]
      %v825 = vshrl.u32 %v801, 16
      %v827 = vrot.slane %v825, 3
      %v828 = vshll.u32 %v801, 16
      %v830 = vrot.slane %v828, 4
      %v831 = vor.u32 %v827, %v830
      %v833 = vshrl.u32 %v802, 16
      %v835 = vrot.slane %v833, 3
      %v836 = vshll.u32 %v802, 16
      %v838 = vrot.slane %v836, 4
      %v839 = vor.u32 %v835, %v838
      %v840 = vsel %vm615, %v831, %v839
      %v842 = vshrl.u32 %v803, 16
      %v844 = vrot.slane %v842, 3
      %v845 = vshll.u32 %v803, 16
      %v847 = vrot.slane %v845, 4
      %v848 = vor.u32 %v844, %v847
      %v849 = vsel %vm615, %v839, %v848
      %v851 = vshrl.u32 %v804, 16
      %v853 = vrot.slane %v851, 3
      %v854 = vshll.u32 %v804, 16
      %v856 = vrot.slane %v854, 4
      %v857 = vor.u32 %v853, %v856
      %v858 = vsel %vm615, %v848, %v857
      %v860 = vshrl.u32 %v805, 16
      %v862 = vrot.slane %v860, 3
      %v863 = vshll.u32 %v805, 16
      %v865 = vrot.slane %v863, 4
      %v866 = vor.u32 %v862, %v865
      %v867 = vsel %vm615, %v857, %v866
      %v869 = vshrl.u32 %v806, 16
      %v871 = vrot.slane %v869, 3
      %v872 = vshll.u32 %v806, 16
      %v874 = vrot.slane %v872, 4
      %v875 = vor.u32 %v871, %v874
      %v876 = vsel %vm615, %v866, %v875
      %v898 = vunpack.c.l.b16 %v808
      %v899 = vunpack.c.l.b16 %v809
      %v900 = vunpack.c.l.b16 %v810
      %v901 = vunpack.c.l.b16 %v811
      %v902 = vunpack.c.l.b16 %v812
      %v903 = vunpack.c.l.b16 %v813
      %v904 = vunpack.c.l.b16 %v814
      %v905 = vunpack.c.l.b16 %v815
      %v906 = vunpack.c.l.b16 %v816
      %v907 = vunpack.c.l.b16 %v817
      %v908 = vunpack.c.l.b16 %v818
      %v909 = vunpack.c.l.b16 %v819
      %v910 = vunpack.c.l.b16 %v820
      %v911 = vunpack.c.l.b16 %v821
      %v912 = vunpack.c.l.b16 %v822
      %v913 = vunpack.c.l.b16 %v823
      %v914 = vpack.c.b16 %v899, %v898
      %v915 = vpack.c.b16 %v901, %v900
      %v916 = vpack.c.b16 %v903, %v902
      %v917 = vpack.c.b16 %v905, %v904
      %v918 = vpack.c.b16 %v907, %v906
      %v919 = vpack.c.b16 %v909, %v908
      %v920 = vpack.c.b16 %v911, %v910
      %v921 = vpack.c.b16 %v913, %v912
      %930 = vmatpush.bf16.msra.mxu0 %v921
      %931 = vmatpush.bf16.msra.mxu0 %v920
      %932 = vmatpush.bf16.msra.mxu0 %v919
      %933 = vmatpush.bf16.msra.mxu0 %v918
      %934 = vmatpush.bf16.msra.mxu0 %v917
      %935 = vmatpush.bf16.msra.mxu0 %v916
      %936 = vmatpush.bf16.msra.mxu0 %v915
      %937 = vmatpush.bf16.msra.mxu0 %v914
      %938 = vmatmul.bf16.gmra.mxu0 %v840
      %v939 = vpop.f32.mrf.mxu0
      %v940 = vadd.f32 0.0, %v939
      %v941 = vpop.f32.mrf.mxu0
      %v942 = vadd.f32 0.0, %v941
      %943 = vmatmul.bf16.gmra.mxu0 %v849
      %v944 = vpop.f32.mrf.mxu0
      %v945 = vadd.f32 0.0, %v944
      %v946 = vpop.f32.mrf.mxu0
      %v947 = vadd.f32 0.0, %v946
      %948 = vmatmul.bf16.gmra.mxu0 %v858
      %v949 = vpop.f32.mrf.mxu0
      %v950 = vadd.f32 0.0, %v949
      %v951 = vpop.f32.mrf.mxu0
      %v952 = vadd.f32 0.0, %v951
      %953 = vmatmul.bf16.gmra.mxu0 %v867
      %v954 = vpop.f32.mrf.mxu0
      %v955 = vadd.f32 0.0, %v954
      %v956 = vpop.f32.mrf.mxu0
      %v957 = vadd.f32 0.0, %v956
      %958 = vmatmul.bf16.gmra.mxu0 %v876
      %v959 = vpop.f32.mrf.mxu0
      %v960 = vadd.f32 0.0, %v959
      %v961 = vpop.f32.mrf.mxu0
      %v962 = vadd.f32 0.0, %v961
      %963 = vdwg.mxu0
      %v964 = vadd.f32 %v736, %v940
      %v965 = vadd.f32 %v737, %v942
      %v966 = vadd.f32 %v738, %v945
      %v967 = vadd.f32 %v739, %v947
      %v968 = vadd.f32 %v740, %v950
      %v969 = vadd.f32 %v741, %v952
      %v970 = vadd.f32 %v742, %v955
      %v971 = vadd.f32 %v743, %v957
      %v972 = vadd.f32 %v744, %v960
      %v973 = vadd.f32 %v745, %v962
      %v974 = vpack.c.bf16 %v792, %v791
      %v975 = vpack.c.bf16 %v794, %v793
      %v976 = vpack.c.bf16 %v796, %v795
      %v977 = vpack.c.bf16 %v798, %v797
      %v978 = vpack.c.bf16 %v800, %v799
      %s979 = scalar_lea.vmem %s2, 256
      %v980 = vld [vmem:[%s979] sm:$0xf]
      %v981 = vld [vmem:[%s979 + $0x4] sm:$0xf]
      %v982 = vld [vmem:[%s979 + $0x8] sm:$0xf]
      %v983 = vld [vmem:[%s979 + $0xc] sm:$0xf]
      %v984 = vld [vmem:[%s979 + $0x10] sm:$0xf]
      %v985 = vld [vmem:[%s979 + $0x14] sm:$0xf]
      %v986 = vld [vmem:[%s979 + $0x18] sm:$0xf]
      %v987 = vld [vmem:[%s979 + $0x1c] sm:$0xf]
      %v988 = vld [vmem:[%s979 + $0x20] sm:$0xf]
      %v989 = vld [vmem:[%s979 + $0x24] sm:$0xf]
      %v990 = vld [vmem:[%s979 + $0x28] sm:$0xf]
      %v991 = vld [vmem:[%s979 + $0x2c] sm:$0xf]
      %v992 = vld [vmem:[%s979 + $0x30] sm:$0xf]
      %v993 = vld [vmem:[%s979 + $0x34] sm:$0xf]
      %v994 = vld [vmem:[%s979 + $0x38] sm:$0xf]
      %v995 = vld [vmem:[%s979 + $0x3c] sm:$0xf]
      %v1012 = vunpack.c.l.b16 %v980
      %v1013 = vunpack.c.l.b16 %v981
      %v1014 = vunpack.c.l.b16 %v982
      %v1015 = vunpack.c.l.b16 %v983
      %v1016 = vunpack.c.l.b16 %v984
      %v1017 = vunpack.c.l.b16 %v985
      %v1018 = vunpack.c.l.b16 %v986
      %v1019 = vunpack.c.l.b16 %v987
      %v1020 = vunpack.c.l.b16 %v988
      %v1021 = vunpack.c.l.b16 %v989
      %v1022 = vunpack.c.l.b16 %v990
      %v1023 = vunpack.c.l.b16 %v991
      %v1024 = vunpack.c.l.b16 %v992
      %v1025 = vunpack.c.l.b16 %v993
      %v1026 = vunpack.c.l.b16 %v994
      %v1027 = vunpack.c.l.b16 %v995
      %v1028 = vpack.c.b16 %v1013, %v1012
      %v1029 = vpack.c.b16 %v1015, %v1014
      %v1030 = vpack.c.b16 %v1017, %v1016
      %v1031 = vpack.c.b16 %v1019, %v1018
      %v1032 = vpack.c.b16 %v1021, %v1020
      %v1033 = vpack.c.b16 %v1023, %v1022
      %v1034 = vpack.c.b16 %v1025, %v1024
      %v1035 = vpack.c.b16 %v1027, %v1026
      %1044 = vmatpush.bf16.msra.mxu0 %v1035
      %1045 = vmatpush.bf16.msra.mxu0 %v1034
      %1046 = vmatpush.bf16.msra.mxu0 %v1033
      %1047 = vmatpush.bf16.msra.mxu0 %v1032
      %1048 = vmatpush.bf16.msra.mxu0 %v1031
      %1049 = vmatpush.bf16.msra.mxu0 %v1030
      %1050 = vmatpush.bf16.msra.mxu0 %v1029
      %1051 = vmatpush.bf16.msra.mxu0 %v1028
      %1052 = vmatmul.bf16.gmra.mxu0 %v974
      %v1053 = vpop.f32.mrf.mxu0
      %v1054 = vadd.f32 0.0, %v1053
      %v1055 = vpop.f32.mrf.mxu0
      %v1056 = vadd.f32 0.0, %v1055
      %1057 = vmatmul.bf16.gmra.mxu0 %v975
      %v1058 = vpop.f32.mrf.mxu0
      %v1059 = vadd.f32 0.0, %v1058
      %v1060 = vpop.f32.mrf.mxu0
      %v1061 = vadd.f32 0.0, %v1060
      %1062 = vmatmul.bf16.gmra.mxu0 %v976
      %v1063 = vpop.f32.mrf.mxu0
      %v1064 = vadd.f32 0.0, %v1063
      %v1065 = vpop.f32.mrf.mxu0
      %v1066 = vadd.f32 0.0, %v1065
      %1067 = vmatmul.bf16.gmra.mxu0 %v977
      %v1068 = vpop.f32.mrf.mxu0
      %v1069 = vadd.f32 0.0, %v1068
      %v1070 = vpop.f32.mrf.mxu0
      %v1071 = vadd.f32 0.0, %v1070
      %1072 = vmatmul.bf16.gmra.mxu0 %v978
      %v1073 = vpop.f32.mrf.mxu0
      %v1074 = vadd.f32 0.0, %v1073
      %v1075 = vpop.f32.mrf.mxu0
      %v1076 = vadd.f32 0.0, %v1075
      %1077 = vdwg.mxu0
      %v1078 = vadd.f32 %v964, %v1054
      %v1079 = vadd.f32 %v965, %v1056
      %v1080 = vadd.f32 %v966, %v1059
      %v1081 = vadd.f32 %v967, %v1061
      %v1082 = vadd.f32 %v968, %v1064
      %v1083 = vadd.f32 %v969, %v1066
      %v1084 = vadd.f32 %v970, %v1069
      %v1085 = vadd.f32 %v971, %v1071
      %v1086 = vadd.f32 %v972, %v1074
      %v1087 = vadd.f32 %v973, %v1076
      %v1088 = vld [vmem:[%s234 + $0x8] sm:$0xf]
      %v1089 = vld [vmem:[%s234 + $0xc] sm:$0xf]
      %v1090 = vld [vmem:[%s234 + $0x10] sm:$0xf]
      %v1091 = vld [vmem:[%s234 + $0x14] sm:$0xf]
      %v1092 = vld [vmem:[%s234 + $0x18] sm:$0xf]
      %v1093 = vld [vmem:[%s234 + $0x1c] sm:$0xf]
      %v1094 = vld [vmem:[%s234 + $0x20] sm:$0xf]
      %v1095 = vld [vmem:[%s234 + $0x24] sm:$0xf]
      %v1096 = vld [vmem:[%s234 + $0x28] sm:$0xf]
      %v1097 = vld [vmem:[%s234 + $0x2c] sm:$0xf]
      %v1098 = vld [vmem:[%s234 + $0x30] sm:$0x1]
      %v1099 = vld [vmem:[%s239 + $0x8] sm:$0xf]
      %v1100 = vld [vmem:[%s239 + $0xc] sm:$0xf]
      %v1101 = vld [vmem:[%s239 + $0x10] sm:$0xf]
      %v1102 = vld [vmem:[%s239 + $0x14] sm:$0xf]
      %v1103 = vld [vmem:[%s239 + $0x18] sm:$0xf]
      %v1104 = vld [vmem:[%s239 + $0x1c] sm:$0xf]
      %v1105 = vld [vmem:[%s239 + $0x20] sm:$0xf]
      %v1106 = vld [vmem:[%s239 + $0x24] sm:$0xf]
      %v1107 = vld [vmem:[%s239 + $0x28] sm:$0xf]
      %v1108 = vld [vmem:[%s239 + $0x2c] sm:$0xf]
      %v1109 = vld [vmem:[%s239 + $0x30] sm:$0x1]
      %v1110 = vunpack.c.l.bf16 %v1088
      %v1111 = vunpack.c.l.bf16 %v1089
      %v1112 = vunpack.c.l.bf16 %v1090
      %v1113 = vunpack.c.l.bf16 %v1091
      %v1114 = vunpack.c.l.bf16 %v1092
      %v1115 = vunpack.c.l.bf16 %v1093
      %v1116 = vunpack.c.l.bf16 %v1094
      %v1117 = vunpack.c.l.bf16 %v1095
      %v1118 = vunpack.c.l.bf16 %v1096
      %v1119 = vunpack.c.l.bf16 %v1097
      %v1120 = vunpack.c.l.bf16 %v1098
      %v1121 = vunpack.c.l.bf16 %v1099
      %v1122 = vunpack.c.l.bf16 %v1100
      %v1123 = vunpack.c.l.bf16 %v1101
      %v1124 = vunpack.c.l.bf16 %v1102
      %v1125 = vunpack.c.l.bf16 %v1103
      %v1126 = vunpack.c.l.bf16 %v1104
      %v1127 = vunpack.c.l.bf16 %v1105
      %v1128 = vunpack.c.l.bf16 %v1106
      %v1129 = vunpack.c.l.bf16 %v1107
      %v1130 = vunpack.c.l.bf16 %v1108
      %v1131 = vunpack.c.l.bf16 %v1109
      %v1132 = vadd.f32 %v1110, %v1121
      %v1133 = vadd.f32 %v1111, %v1122
      %v1134 = vadd.f32 %v1112, %v1123
      %v1135 = vadd.f32 %v1113, %v1124
      %v1136 = vadd.f32 %v1114, %v1125
      %v1137 = vadd.f32 %v1115, %v1126
      %v1138 = vadd.f32 %v1116, %v1127
      %v1139 = vadd.f32 %v1117, %v1128
      %v1140 = vadd.f32 %v1118, %v1129
      %v1141 = vadd.f32 %v1119, %v1130
      %v1142 = vadd.f32 %v1120, %v1131
      %v1143 = vpack.c.bf16 %v1133, %v1132
      %v1144 = vpack.c.bf16 %v1135, %v1134
      %v1145 = vpack.c.bf16 %v1137, %v1136
      %v1146 = vpack.c.bf16 %v1139, %v1138
      %v1147 = vpack.c.bf16 %v1141, %v1140
      %v1148 = vpack.c.bf16 %v1142, %v1142
      %s1149 = scalar_lea.vmem %s2, 320
      %v1150 = vld [vmem:[%s1149] sm:$0xf]
      %v1151 = vld [vmem:[%s1149 + $0x4] sm:$0xf]
      %v1152 = vld [vmem:[%s1149 + $0x8] sm:$0xf]
      %v1153 = vld [vmem:[%s1149 + $0xc] sm:$0xf]
      %v1154 = vld [vmem:[%s1149 + $0x10] sm:$0xf]
      %v1155 = vld [vmem:[%s1149 + $0x14] sm:$0xf]
      %v1156 = vld [vmem:[%s1149 + $0x18] sm:$0xf]
      %v1157 = vld [vmem:[%s1149 + $0x1c] sm:$0xf]
      %v1158 = vld [vmem:[%s1149 + $0x20] sm:$0xf]
      %v1159 = vld [vmem:[%s1149 + $0x24] sm:$0xf]
      %v1160 = vld [vmem:[%s1149 + $0x28] sm:$0xf]
      %v1161 = vld [vmem:[%s1149 + $0x2c] sm:$0xf]
      %v1162 = vld [vmem:[%s1149 + $0x30] sm:$0xf]
      %v1163 = vld [vmem:[%s1149 + $0x34] sm:$0xf]
      %v1164 = vld [vmem:[%s1149 + $0x38] sm:$0xf]
      %v1165 = vld [vmem:[%s1149 + $0x3c] sm:$0xf]
      %vm1166 = vsmask.f32 7424
      %v1168 = vshrl.u32 %v1143, 16
      %v1170 = vshll.u32 %v1143, 16
      %v1172 = vrot.slane %v1170, 1
      %v1173 = vor.u32 %v1168, %v1172
      %v1175 = vshll.u32 %v1144, 16
      %v1177 = vrot.slane %v1175, 1
      %v1178 = vsel %vm1166, %v1173, %v1177
      %v1179 = vshrl.u32 %v1144, 16
      %v1181 = vor.u32 %v1179, %v1177
      %v1183 = vshll.u32 %v1145, 16
      %v1185 = vrot.slane %v1183, 1
      %v1186 = vsel %vm1166, %v1181, %v1185
      %v1187 = vshrl.u32 %v1145, 16
      %v1189 = vor.u32 %v1187, %v1185
      %v1191 = vshll.u32 %v1146, 16
      %v1193 = vrot.slane %v1191, 1
      %v1194 = vsel %vm1166, %v1189, %v1193
      %v1195 = vshrl.u32 %v1146, 16
      %v1197 = vor.u32 %v1195, %v1193
      %v1199 = vshll.u32 %v1147, 16
      %v1201 = vrot.slane %v1199, 1
      %v1202 = vsel %vm1166, %v1197, %v1201
      %v1203 = vshrl.u32 %v1147, 16
      %v1205 = vor.u32 %v1203, %v1201
      %v1207 = vshll.u32 %v1148, 16
      %v1209 = vrot.slane %v1207, 1
      %v1210 = vsel %vm1166, %v1205, %v1209
      %v1232 = vunpack.c.l.b16 %v1150
      %v1233 = vunpack.c.l.b16 %v1151
      %v1234 = vunpack.c.l.b16 %v1152
      %v1235 = vunpack.c.l.b16 %v1153
      %v1236 = vunpack.c.l.b16 %v1154
      %v1237 = vunpack.c.l.b16 %v1155
      %v1238 = vunpack.c.l.b16 %v1156
      %v1239 = vunpack.c.l.b16 %v1157
      %v1240 = vunpack.c.l.b16 %v1158
      %v1241 = vunpack.c.l.b16 %v1159
      %v1242 = vunpack.c.l.b16 %v1160
      %v1243 = vunpack.c.l.b16 %v1161
      %v1244 = vunpack.c.l.b16 %v1162
      %v1245 = vunpack.c.l.b16 %v1163
      %v1246 = vunpack.c.l.b16 %v1164
      %v1247 = vunpack.c.l.b16 %v1165
      %v1248 = vpack.c.b16 %v1233, %v1232
      %v1249 = vpack.c.b16 %v1235, %v1234
      %v1250 = vpack.c.b16 %v1237, %v1236
      %v1251 = vpack.c.b16 %v1239, %v1238
      %v1252 = vpack.c.b16 %v1241, %v1240
      %v1253 = vpack.c.b16 %v1243, %v1242
      %v1254 = vpack.c.b16 %v1245, %v1244
      %v1255 = vpack.c.b16 %v1247, %v1246
      %1264 = vmatpush.bf16.msra.mxu0 %v1255
      %1265 = vmatpush.bf16.msra.mxu0 %v1254
      %1266 = vmatpush.bf16.msra.mxu0 %v1253
      %1267 = vmatpush.bf16.msra.mxu0 %v1252
      %1268 = vmatpush.bf16.msra.mxu0 %v1251
      %1269 = vmatpush.bf16.msra.mxu0 %v1250
      %1270 = vmatpush.bf16.msra.mxu0 %v1249
      %1271 = vmatpush.bf16.msra.mxu0 %v1248
      %1272 = vmatmul.bf16.gmra.mxu0 %v1178
      %v1273 = vpop.f32.mrf.mxu0
      %v1274 = vadd.f32 0.0, %v1273
      %v1275 = vpop.f32.mrf.mxu0
      %v1276 = vadd.f32 0.0, %v1275
      %1277 = vmatmul.bf16.gmra.mxu0 %v1186
      %v1278 = vpop.f32.mrf.mxu0
      %v1279 = vadd.f32 0.0, %v1278
      %v1280 = vpop.f32.mrf.mxu0
      %v1281 = vadd.f32 0.0, %v1280
      %1282 = vmatmul.bf16.gmra.mxu0 %v1194
      %v1283 = vpop.f32.mrf.mxu0
      %v1284 = vadd.f32 0.0, %v1283
      %v1285 = vpop.f32.mrf.mxu0
      %v1286 = vadd.f32 0.0, %v1285
      %1287 = vmatmul.bf16.gmra.mxu0 %v1202
      %v1288 = vpop.f32.mrf.mxu0
      %v1289 = vadd.f32 0.0, %v1288
      %v1290 = vpop.f32.mrf.mxu0
      %v1291 = vadd.f32 0.0, %v1290
      %1292 = vmatmul.bf16.gmra.mxu0 %v1210
      %v1293 = vpop.f32.mrf.mxu0
      %v1294 = vadd.f32 0.0, %v1293
      %v1295 = vpop.f32.mrf.mxu0
      %v1296 = vadd.f32 0.0, %v1295
      %1297 = vdwg.mxu0
      %v1298 = vadd.f32 %v1078, %v1274
      %v1299 = vadd.f32 %v1079, %v1276
      %v1300 = vadd.f32 %v1080, %v1279
      %v1301 = vadd.f32 %v1081, %v1281
      %v1302 = vadd.f32 %v1082, %v1284
      %v1303 = vadd.f32 %v1083, %v1286
      %v1304 = vadd.f32 %v1084, %v1289
      %v1305 = vadd.f32 %v1085, %v1291
      %v1306 = vadd.f32 %v1086, %v1294
      %v1307 = vadd.f32 %v1087, %v1296
      %v1308 = vld [vmem:[%s234 + $0xc] sm:$0xf]
      %v1309 = vld [vmem:[%s234 + $0x10] sm:$0xf]
      %v1310 = vld [vmem:[%s234 + $0x14] sm:$0xf]
      %v1311 = vld [vmem:[%s234 + $0x18] sm:$0xf]
      %v1312 = vld [vmem:[%s234 + $0x1c] sm:$0xf]
      %v1313 = vld [vmem:[%s234 + $0x20] sm:$0xf]
      %v1314 = vld [vmem:[%s234 + $0x24] sm:$0xf]
      %v1315 = vld [vmem:[%s234 + $0x28] sm:$0xf]
      %v1316 = vld [vmem:[%s234 + $0x2c] sm:$0xf]
      %v1317 = vld [vmem:[%s234 + $0x30] sm:$0xf]
      %v1318 = vld [vmem:[%s234 + $0x34] sm:$0x1]
      %v1319 = vld [vmem:[%s239 + $0xc] sm:$0xf]
      %v1320 = vld [vmem:[%s239 + $0x10] sm:$0xf]
      %v1321 = vld [vmem:[%s239 + $0x14] sm:$0xf]
      %v1322 = vld [vmem:[%s239 + $0x18] sm:$0xf]
      %v1323 = vld [vmem:[%s239 + $0x1c] sm:$0xf]
      %v1324 = vld [vmem:[%s239 + $0x20] sm:$0xf]
      %v1325 = vld [vmem:[%s239 + $0x24] sm:$0xf]
      %v1326 = vld [vmem:[%s239 + $0x28] sm:$0xf]
      %v1327 = vld [vmem:[%s239 + $0x2c] sm:$0xf]
      %v1328 = vld [vmem:[%s239 + $0x30] sm:$0xf]
      %v1329 = vld [vmem:[%s239 + $0x34] sm:$0x1]
      %v1330 = vunpack.c.l.bf16 %v1308
      %v1331 = vunpack.c.l.bf16 %v1309
      %v1332 = vunpack.c.l.bf16 %v1310
      %v1333 = vunpack.c.l.bf16 %v1311
      %v1334 = vunpack.c.l.bf16 %v1312
      %v1335 = vunpack.c.l.bf16 %v1313
      %v1336 = vunpack.c.l.bf16 %v1314
      %v1337 = vunpack.c.l.bf16 %v1315
      %v1338 = vunpack.c.l.bf16 %v1316
      %v1339 = vunpack.c.l.bf16 %v1317
      %v1340 = vunpack.c.l.bf16 %v1318
      %v1341 = vunpack.c.l.bf16 %v1319
      %v1342 = vunpack.c.l.bf16 %v1320
      %v1343 = vunpack.c.l.bf16 %v1321
      %v1344 = vunpack.c.l.bf16 %v1322
      %v1345 = vunpack.c.l.bf16 %v1323
      %v1346 = vunpack.c.l.bf16 %v1324
      %v1347 = vunpack.c.l.bf16 %v1325
      %v1348 = vunpack.c.l.bf16 %v1326
      %v1349 = vunpack.c.l.bf16 %v1327
      %v1350 = vunpack.c.l.bf16 %v1328
      %v1351 = vunpack.c.l.bf16 %v1329
      %v1352 = vadd.f32 %v1330, %v1341
      %v1353 = vadd.f32 %v1331, %v1342
      %v1354 = vadd.f32 %v1332, %v1343
      %v1355 = vadd.f32 %v1333, %v1344
      %v1356 = vadd.f32 %v1334, %v1345
      %v1357 = vadd.f32 %v1335, %v1346
      %v1358 = vadd.f32 %v1336, %v1347
      %v1359 = vadd.f32 %v1337, %v1348
      %v1360 = vadd.f32 %v1338, %v1349
      %v1361 = vadd.f32 %v1339, %v1350
      %v1362 = vadd.f32 %v1340, %v1351
      %v1363 = vpack.c.bf16 %v1353, %v1352
      %v1364 = vpack.c.bf16 %v1355, %v1354
      %v1365 = vpack.c.bf16 %v1357, %v1356
      %v1366 = vpack.c.bf16 %v1359, %v1358
      %v1367 = vpack.c.bf16 %v1361, %v1360
      %v1368 = vpack.c.bf16 %v1362, %v1362
      %s1369 = scalar_lea.vmem %s2, 384
      %v1370 = vld [vmem:[%s1369] sm:$0xf]
      %v1371 = vld [vmem:[%s1369 + $0x4] sm:$0xf]
      %v1372 = vld [vmem:[%s1369 + $0x8] sm:$0xf]
      %v1373 = vld [vmem:[%s1369 + $0xc] sm:$0xf]
      %v1374 = vld [vmem:[%s1369 + $0x10] sm:$0xf]
      %v1375 = vld [vmem:[%s1369 + $0x14] sm:$0xf]
      %v1376 = vld [vmem:[%s1369 + $0x18] sm:$0xf]
      %v1377 = vld [vmem:[%s1369 + $0x1c] sm:$0xf]
      %v1378 = vld [vmem:[%s1369 + $0x20] sm:$0xf]
      %v1379 = vld [vmem:[%s1369 + $0x24] sm:$0xf]
      %v1380 = vld [vmem:[%s1369 + $0x28] sm:$0xf]
      %v1381 = vld [vmem:[%s1369 + $0x2c] sm:$0xf]
      %v1382 = vld [vmem:[%s1369 + $0x30] sm:$0xf]
      %v1383 = vld [vmem:[%s1369 + $0x34] sm:$0xf]
      %v1384 = vld [vmem:[%s1369 + $0x38] sm:$0xf]
      %v1385 = vld [vmem:[%s1369 + $0x3c] sm:$0xf]
      %v1387 = vshrl.u32 %v1363, 16
      %v1389 = vshll.u32 %v1363, 16
      %v1391 = vrot.slane %v1389, 1
      %v1392 = vor.u32 %v1387, %v1391
      %v1394 = vshll.u32 %v1364, 16
      %v1396 = vrot.slane %v1394, 1
      %v1397 = vsel %vm1166, %v1392, %v1396
      %v1398 = vshrl.u32 %v1364, 16
      %v1400 = vor.u32 %v1398, %v1396
      %v1402 = vshll.u32 %v1365, 16
      %v1404 = vrot.slane %v1402, 1
      %v1405 = vsel %vm1166, %v1400, %v1404
      %v1406 = vshrl.u32 %v1365, 16
      %v1408 = vor.u32 %v1406, %v1404
      %v1410 = vshll.u32 %v1366, 16
      %v1412 = vrot.slane %v1410, 1
      %v1413 = vsel %vm1166, %v1408, %v1412
      %v1414 = vshrl.u32 %v1366, 16
      %v1416 = vor.u32 %v1414, %v1412
      %v1418 = vshll.u32 %v1367, 16
      %v1420 = vrot.slane %v1418, 1
      %v1421 = vsel %vm1166, %v1416, %v1420
      %v1422 = vshrl.u32 %v1367, 16
      %v1424 = vor.u32 %v1422, %v1420
      %v1426 = vshll.u32 %v1368, 16
      %v1428 = vrot.slane %v1426, 1
      %v1429 = vsel %vm1166, %v1424, %v1428
      %v1451 = vunpack.c.l.b16 %v1370
      %v1452 = vunpack.c.l.b16 %v1371
      %v1453 = vunpack.c.l.b16 %v1372
      %v1454 = vunpack.c.l.b16 %v1373
      %v1455 = vunpack.c.l.b16 %v1374
      %v1456 = vunpack.c.l.b16 %v1375
      %v1457 = vunpack.c.l.b16 %v1376
      %v1458 = vunpack.c.l.b16 %v1377
      %v1459 = vunpack.c.l.b16 %v1378
      %v1460 = vunpack.c.l.b16 %v1379
      %v1461 = vunpack.c.l.b16 %v1380
      %v1462 = vunpack.c.l.b16 %v1381
      %v1463 = vunpack.c.l.b16 %v1382
      %v1464 = vunpack.c.l.b16 %v1383
      %v1465 = vunpack.c.l.b16 %v1384
      %v1466 = vunpack.c.l.b16 %v1385
      %v1467 = vpack.c.b16 %v1452, %v1451
      %v1468 = vpack.c.b16 %v1454, %v1453
      %v1469 = vpack.c.b16 %v1456, %v1455
      %v1470 = vpack.c.b16 %v1458, %v1457
      %v1471 = vpack.c.b16 %v1460, %v1459
      %v1472 = vpack.c.b16 %v1462, %v1461
      %v1473 = vpack.c.b16 %v1464, %v1463
      %v1474 = vpack.c.b16 %v1466, %v1465
      %1483 = vmatpush.bf16.msra.mxu0 %v1474
      %1484 = vmatpush.bf16.msra.mxu0 %v1473
      %1485 = vmatpush.bf16.msra.mxu0 %v1472
      %1486 = vmatpush.bf16.msra.mxu0 %v1471
      %1487 = vmatpush.bf16.msra.mxu0 %v1470
      %1488 = vmatpush.bf16.msra.mxu0 %v1469
      %1489 = vmatpush.bf16.msra.mxu0 %v1468
      %1490 = vmatpush.bf16.msra.mxu0 %v1467
      %1491 = vmatmul.bf16.gmra.mxu0 %v1397
      %v1492 = vpop.f32.mrf.mxu0
      %v1493 = vadd.f32 0.0, %v1492
      %v1494 = vpop.f32.mrf.mxu0
      %v1495 = vadd.f32 0.0, %v1494
      %1496 = vmatmul.bf16.gmra.mxu0 %v1405
      %v1497 = vpop.f32.mrf.mxu0
      %v1498 = vadd.f32 0.0, %v1497
      %v1499 = vpop.f32.mrf.mxu0
      %v1500 = vadd.f32 0.0, %v1499
      %1501 = vmatmul.bf16.gmra.mxu0 %v1413
      %v1502 = vpop.f32.mrf.mxu0
      %v1503 = vadd.f32 0.0, %v1502
      %v1504 = vpop.f32.mrf.mxu0
      %v1505 = vadd.f32 0.0, %v1504
      %1506 = vmatmul.bf16.gmra.mxu0 %v1421
      %v1507 = vpop.f32.mrf.mxu0
      %v1508 = vadd.f32 0.0, %v1507
      %v1509 = vpop.f32.mrf.mxu0
      %v1510 = vadd.f32 0.0, %v1509
      %1511 = vmatmul.bf16.gmra.mxu0 %v1429
      %v1512 = vpop.f32.mrf.mxu0
      %v1513 = vadd.f32 0.0, %v1512
      %v1514 = vpop.f32.mrf.mxu0
      %v1515 = vadd.f32 0.0, %v1514
      %1516 = vdwg.mxu0
      %v1517 = vadd.f32 %v1298, %v1493
      %v1518 = vadd.f32 %v1299, %v1495
      %v1519 = vadd.f32 %v1300, %v1498
      %v1520 = vadd.f32 %v1301, %v1500
      %v1521 = vadd.f32 %v1302, %v1503
      %v1522 = vadd.f32 %v1303, %v1505
      %v1523 = vadd.f32 %v1304, %v1508
      %v1524 = vadd.f32 %v1305, %v1510
      %v1525 = vadd.f32 %v1306, %v1513
      %v1526 = vadd.f32 %v1307, %v1515
      %v1527 = vld [vmem:[%s234 + $0xc] sm:$0xe]
      %v1528 = vld [vmem:[%s239 + $0xc] sm:$0xe]
      %v1529 = vunpack.c.l.bf16 %v1527
      %v1530 = vunpack.c.l.bf16 %v1528
      %v1531 = vadd.f32 %v1529, %v1530
      %v1532 = vpack.c.bf16 %v1353, %v1531
      %s1533 = scalar_lea.vmem %s2, 448
      %v1534 = vld [vmem:[%s1533] sm:$0xf]
      %v1535 = vld [vmem:[%s1533 + $0x4] sm:$0xf]
      %v1536 = vld [vmem:[%s1533 + $0x8] sm:$0xf]
      %v1537 = vld [vmem:[%s1533 + $0xc] sm:$0xf]
      %v1538 = vld [vmem:[%s1533 + $0x10] sm:$0xf]
      %v1539 = vld [vmem:[%s1533 + $0x14] sm:$0xf]
      %v1540 = vld [vmem:[%s1533 + $0x18] sm:$0xf]
      %v1541 = vld [vmem:[%s1533 + $0x1c] sm:$0xf]
      %v1542 = vld [vmem:[%s1533 + $0x20] sm:$0xf]
      %v1543 = vld [vmem:[%s1533 + $0x24] sm:$0xf]
      %v1544 = vld [vmem:[%s1533 + $0x28] sm:$0xf]
      %v1545 = vld [vmem:[%s1533 + $0x2c] sm:$0xf]
      %v1546 = vld [vmem:[%s1533 + $0x30] sm:$0xf]
      %v1547 = vld [vmem:[%s1533 + $0x34] sm:$0xf]
      %v1548 = vld [vmem:[%s1533 + $0x38] sm:$0xf]
      %v1549 = vld [vmem:[%s1533 + $0x3c] sm:$0xf]
      %vm1556 = vcmask 1046528
      %v1557 = vrot.slane %v1532, 1
      %v1558 = vrot.slane %v1364, 1
      %v1559 = vsel %vm1556, %v1557, %v1558
      %v1560 = vrot.slane %v1365, 1
      %v1561 = vsel %vm1556, %v1558, %v1560
      %v1562 = vrot.slane %v1366, 1
      %v1563 = vsel %vm1556, %v1560, %v1562
      %v1564 = vrot.slane %v1367, 1
      %v1565 = vsel %vm1556, %v1562, %v1564
      %v1566 = vrot.slane %v1368, 1
      %v1567 = vsel %vm1556, %v1564, %v1566
      %v1589 = vunpack.c.l.b16 %v1534
      %v1590 = vunpack.c.l.b16 %v1535
      %v1591 = vunpack.c.l.b16 %v1536
      %v1592 = vunpack.c.l.b16 %v1537
      %v1593 = vunpack.c.l.b16 %v1538
      %v1594 = vunpack.c.l.b16 %v1539
      %v1595 = vunpack.c.l.b16 %v1540
      %v1596 = vunpack.c.l.b16 %v1541
      %v1597 = vunpack.c.l.b16 %v1542
      %v1598 = vunpack.c.l.b16 %v1543
      %v1599 = vunpack.c.l.b16 %v1544
      %v1600 = vunpack.c.l.b16 %v1545
      %v1601 = vunpack.c.l.b16 %v1546
      %v1602 = vunpack.c.l.b16 %v1547
      %v1603 = vunpack.c.l.b16 %v1548
      %v1604 = vunpack.c.l.b16 %v1549
      %v1605 = vpack.c.b16 %v1590, %v1589
      %v1606 = vpack.c.b16 %v1592, %v1591
      %v1607 = vpack.c.b16 %v1594, %v1593
      %v1608 = vpack.c.b16 %v1596, %v1595
      %v1609 = vpack.c.b16 %v1598, %v1597
      %v1610 = vpack.c.b16 %v1600, %v1599
      %v1611 = vpack.c.b16 %v1602, %v1601
      %v1612 = vpack.c.b16 %v1604, %v1603
      %1621 = vmatpush.bf16.msra.mxu0 %v1612
      %1622 = vmatpush.bf16.msra.mxu0 %v1611
      %1623 = vmatpush.bf16.msra.mxu0 %v1610
      %1624 = vmatpush.bf16.msra.mxu0 %v1609
      %1625 = vmatpush.bf16.msra.mxu0 %v1608
      %1626 = vmatpush.bf16.msra.mxu0 %v1607
      %1627 = vmatpush.bf16.msra.mxu0 %v1606
      %1628 = vmatpush.bf16.msra.mxu0 %v1605
      %1629 = vmatmul.bf16.gmra.mxu0 %v1559
      %v1630 = vpop.f32.mrf.mxu0
      %v1631 = vadd.f32 0.0, %v1630
      %v1632 = vpop.f32.mrf.mxu0
      %v1633 = vadd.f32 0.0, %v1632
      %1634 = vmatmul.bf16.gmra.mxu0 %v1561
      %v1635 = vpop.f32.mrf.mxu0
      %v1636 = vadd.f32 0.0, %v1635
      %v1637 = vpop.f32.mrf.mxu0
      %v1638 = vadd.f32 0.0, %v1637
      %1639 = vmatmul.bf16.gmra.mxu0 %v1563
      %v1640 = vpop.f32.mrf.mxu0
      %v1641 = vadd.f32 0.0, %v1640
      %v1642 = vpop.f32.mrf.mxu0
      %v1643 = vadd.f32 0.0, %v1642
      %1644 = vmatmul.bf16.gmra.mxu0 %v1565
      %v1645 = vpop.f32.mrf.mxu0
      %v1646 = vadd.f32 0.0, %v1645
      %v1647 = vpop.f32.mrf.mxu0
      %v1648 = vadd.f32 0.0, %v1647
      %1649 = vmatmul.bf16.gmra.mxu0 %v1567
      %v1650 = vpop.f32.mrf.mxu0
      %v1651 = vadd.f32 0.0, %v1650
      %v1652 = vpop.f32.mrf.mxu0
      %v1653 = vadd.f32 0.0, %v1652
      %1654 = vdwg.mxu0
      %v1655 = vadd.f32 %v1517, %v1631
      %v1656 = vadd.f32 %v1518, %v1633
      %v1657 = vadd.f32 %v1519, %v1636
      %v1658 = vadd.f32 %v1520, %v1638
      %v1659 = vadd.f32 %v1521, %v1641
      %v1660 = vadd.f32 %v1522, %v1643
      %v1661 = vadd.f32 %v1523, %v1646
      %v1662 = vadd.f32 %v1524, %v1648
      %v1663 = vadd.f32 %v1525, %v1651
      %v1664 = vadd.f32 %v1526, %v1653
      %v1665 = vld [vmem:[%s234 + $0x34] sm:$0x3]
      %v1666 = vld [vmem:[%s239 + $0x34] sm:$0x3]
      %v1667 = vunpack.c.l.bf16 %v1665
      %v1668 = vunpack.c.l.bf16 %v1666
      %v1669 = vadd.f32 %v1667, %v1668
      %v1670 = vpack.c.bf16 %v1669, %v1669
      %s1671 = scalar_lea.vmem %s2, 512
      %v1672 = vld [vmem:[%s1671] sm:$0xf]
      %v1673 = vld [vmem:[%s1671 + $0x4] sm:$0xf]
      %v1674 = vld [vmem:[%s1671 + $0x8] sm:$0xf]
      %v1675 = vld [vmem:[%s1671 + $0xc] sm:$0xf]
      %v1676 = vld [vmem:[%s1671 + $0x10] sm:$0xf]
      %v1677 = vld [vmem:[%s1671 + $0x14] sm:$0xf]
      %v1678 = vld [vmem:[%s1671 + $0x18] sm:$0xf]
      %v1679 = vld [vmem:[%s1671 + $0x1c] sm:$0xf]
      %v1680 = vld [vmem:[%s1671 + $0x20] sm:$0xf]
      %v1681 = vld [vmem:[%s1671 + $0x24] sm:$0xf]
      %v1682 = vld [vmem:[%s1671 + $0x28] sm:$0xf]
      %v1683 = vld [vmem:[%s1671 + $0x2c] sm:$0xf]
      %v1684 = vld [vmem:[%s1671 + $0x30] sm:$0xf]
      %v1685 = vld [vmem:[%s1671 + $0x34] sm:$0xf]
      %v1686 = vld [vmem:[%s1671 + $0x38] sm:$0xf]
      %v1687 = vld [vmem:[%s1671 + $0x3c] sm:$0xf]
      %vm1688 = vsmask.f32 6400
      %v1690 = vshrl.u32 %v1532, 16
      %v1692 = vrot.slane %v1690, 1
      %v1693 = vshll.u32 %v1532, 16
      %v1695 = vrot.slane %v1693, 2
      %v1696 = vor.u32 %v1692, %v1695
      %v1697 = vrot.slane %v1398, 1
      %v1698 = vrot.slane %v1394, 2
      %v1699 = vor.u32 %v1697, %v1698
      %v1700 = vsel %vm1688, %v1696, %v1699
      %v1701 = vrot.slane %v1406, 1
      %v1702 = vrot.slane %v1402, 2
      %v1703 = vor.u32 %v1701, %v1702
      %v1704 = vsel %vm1688, %v1699, %v1703
      %v1705 = vrot.slane %v1414, 1
      %v1706 = vrot.slane %v1410, 2
      %v1707 = vor.u32 %v1705, %v1706
      %v1708 = vsel %vm1688, %v1703, %v1707
      %v1709 = vrot.slane %v1422, 1
      %v1710 = vrot.slane %v1418, 2
      %v1711 = vor.u32 %v1709, %v1710
      %v1712 = vsel %vm1688, %v1707, %v1711
      %v1714 = vshrl.u32 %v1670, 16
      %v1716 = vrot.slane %v1714, 1
      %v1717 = vshll.u32 %v1670, 16
      %v1719 = vrot.slane %v1717, 2
      %v1720 = vor.u32 %v1716, %v1719
      %v1721 = vsel %vm1688, %v1711, %v1720
      %v1743 = vunpack.c.l.b16 %v1672
      %v1744 = vunpack.c.l.b16 %v1673
      %v1745 = vunpack.c.l.b16 %v1674
      %v1746 = vunpack.c.l.b16 %v1675
      %v1747 = vunpack.c.l.b16 %v1676
      %v1748 = vunpack.c.l.b16 %v1677
      %v1749 = vunpack.c.l.b16 %v1678
      %v1750 = vunpack.c.l.b16 %v1679
      %v1751 = vunpack.c.l.b16 %v1680
      %v1752 = vunpack.c.l.b16 %v1681
      %v1753 = vunpack.c.l.b16 %v1682
      %v1754 = vunpack.c.l.b16 %v1683
      %v1755 = vunpack.c.l.b16 %v1684
      %v1756 = vunpack.c.l.b16 %v1685
      %v1757 = vunpack.c.l.b16 %v1686
      %v1758 = vunpack.c.l.b16 %v1687
      %v1759 = vpack.c.b16 %v1744, %v1743
      %v1760 = vpack.c.b16 %v1746, %v1745
      %v1761 = vpack.c.b16 %v1748, %v1747
      %v1762 = vpack.c.b16 %v1750, %v1749
      %v1763 = vpack.c.b16 %v1752, %v1751
      %v1764 = vpack.c.b16 %v1754, %v1753
      %v1765 = vpack.c.b16 %v1756, %v1755
      %v1766 = vpack.c.b16 %v1758, %v1757
      %1775 = vmatpush.bf16.msra.mxu0 %v1766
      %1776 = vmatpush.bf16.msra.mxu0 %v1765
      %1777 = vmatpush.bf16.msra.mxu0 %v1764
      %1778 = vmatpush.bf16.msra.mxu0 %v1763
      %1779 = vmatpush.bf16.msra.mxu0 %v1762
      %1780 = vmatpush.bf16.msra.mxu0 %v1761
      %1781 = vmatpush.bf16.msra.mxu0 %v1760
      %1782 = vmatpush.bf16.msra.mxu0 %v1759
      %1783 = vmatmul.bf16.gmra.mxu0 %v1700
      %v1784 = vpop.f32.mrf.mxu0
      %v1785 = vadd.f32 0.0, %v1784
      %v1786 = vpop.f32.mrf.mxu0
      %v1787 = vadd.f32 0.0, %v1786
      %1788 = vmatmul.bf16.gmra.mxu0 %v1704
      %v1789 = vpop.f32.mrf.mxu0
      %v1790 = vadd.f32 0.0, %v1789
      %v1791 = vpop.f32.mrf.mxu0
      %v1792 = vadd.f32 0.0, %v1791
      %1793 = vmatmul.bf16.gmra.mxu0 %v1708
      %v1794 = vpop.f32.mrf.mxu0
      %v1795 = vadd.f32 0.0, %v1794
      %v1796 = vpop.f32.mrf.mxu0
      %v1797 = vadd.f32 0.0, %v1796
      %1798 = vmatmul.bf16.gmra.mxu0 %v1712
      %v1799 = vpop.f32.mrf.mxu0
      %v1800 = vadd.f32 0.0, %v1799
      %v1801 = vpop.f32.mrf.mxu0
      %v1802 = vadd.f32 0.0, %v1801
      %1803 = vmatmul.bf16.gmra.mxu0 %v1721
      %v1804 = vpop.f32.mrf.mxu0
      %v1805 = vadd.f32 0.0, %v1804
      %v1806 = vpop.f32.mrf.mxu0
      %v1807 = vadd.f32 0.0, %v1806
      %1808 = vdwg.mxu0
      %v1809 = vadd.f32 %v1655, %v1785
      %v1810 = vadd.f32 %v1656, %v1787
      %v1811 = vadd.f32 %v1657, %v1790
      %v1812 = vadd.f32 %v1658, %v1792
      %v1813 = vadd.f32 %v1659, %v1795
      %v1814 = vadd.f32 %v1660, %v1797
      %v1815 = vadd.f32 %v1661, %v1800
      %v1816 = vadd.f32 %v1662, %v1802
      %v1817 = vadd.f32 %v1663, %v1805
      %v1818 = vadd.f32 %v1664, %v1807
      %v1819 = vld [vmem:[%s3] sm:$0x1]
      %v1821 = vperm.slane %v1819, 0
      %v1823 = vadd.f32 %v1809, %v1821
      %v1824 = vadd.f32 %v1810, %v1821
      %v1825 = vadd.f32 %v1811, %v1821
      %v1826 = vadd.f32 %v1812, %v1821
      %v1827 = vadd.f32 %v1813, %v1821
      %v1828 = vadd.f32 %v1814, %v1821
      %v1829 = vadd.f32 %v1815, %v1821
      %v1830 = vadd.f32 %v1816, %v1821
      %v1831 = vadd.f32 %v1817, %v1821
      %v1832 = vadd.f32 %v1818, %v1821
      %v1833 = vmax.f32 %v1823, 0.0
      %v1834 = vmax.f32 %v1824, 0.0
      %v1835 = vmax.f32 %v1825, 0.0
      %v1836 = vmax.f32 %v1826, 0.0
      %v1837 = vmax.f32 %v1827, 0.0
      %v1838 = vmax.f32 %v1828, 0.0
      %v1839 = vmax.f32 %v1829, 0.0
      %v1840 = vmax.f32 %v1830, 0.0
      %v1841 = vmax.f32 %v1831, 0.0
      %v1842 = vmax.f32 %v1832, 0.0
      %v1843 = vld [vmem:[%s4] sm:$0xff]
      %v1844 = vld [vmem:[%s4 + $0x8] sm:$0xff]
      %v1845 = vld [vmem:[%s4 + $0x10] sm:$0xff]
      %v1846 = vld [vmem:[%s4 + $0x18] sm:$0xff]
      %v1847 = vld [vmem:[%s4 + $0x20] sm:$0xff]
      %v1848 = vld [vmem:[%s4 + $0x28] sm:$0xff]
      %v1849 = vld [vmem:[%s4 + $0x30] sm:$0xff]
      %v1850 = vld [vmem:[%s4 + $0x38] sm:$0xff]
      %v1851 = vld [vmem:[%s4 + $0x40] sm:$0xff]
      %v1852 = vld [vmem:[%s4 + $0x48] sm:$0xff]
      %1854 = vset.pattern.permute.xlu0 0
      %1855 = vperm.xlu0 %1854, %v1843
      %v1856 = vpop.permute.xlu0 %1855
      %1859 = vset.pattern.permute.xlu0 0
      %1860 = vperm.xlu0 %1859, %v1844
      %v1861 = vpop.permute.xlu0 %1860
      %1864 = vset.pattern.permute.xlu0 0
      %1865 = vperm.xlu0 %1864, %v1845
      %v1866 = vpop.permute.xlu0 %1865
      %1869 = vset.pattern.permute.xlu0 0
      %1870 = vperm.xlu0 %1869, %v1846
      %v1871 = vpop.permute.xlu0 %1870
      %1874 = vset.pattern.permute.xlu0 0
      %1875 = vperm.xlu0 %1874, %v1847
      %v1876 = vpop.permute.xlu0 %1875
      %1879 = vset.pattern.permute.xlu0 0
      %1880 = vperm.xlu0 %1879, %v1848
      %v1881 = vpop.permute.xlu0 %1880
      %1884 = vset.pattern.permute.xlu0 0
      %1885 = vperm.xlu0 %1884, %v1849
      %v1886 = vpop.permute.xlu0 %1885
      %1889 = vset.pattern.permute.xlu0 0
      %1890 = vperm.xlu0 %1889, %v1850
      %v1891 = vpop.permute.xlu0 %1890
      %1894 = vset.pattern.permute.xlu0 0
      %1895 = vperm.xlu0 %1894, %v1851
      %v1896 = vpop.permute.xlu0 %1895
      %1899 = vset.pattern.permute.xlu0 0
      %1900 = vperm.xlu0 %1899, %v1852
      %v1901 = vpop.permute.xlu0 %1900
      %v1903 = vmul.f32 %v1833, %v1856
      %v1904 = vmul.f32 %v1834, %v1861
      %v1905 = vmul.f32 %v1835, %v1866
      %v1906 = vmul.f32 %v1836, %v1871
      %v1907 = vmul.f32 %v1837, %v1876
      %v1908 = vmul.f32 %v1838, %v1881
      %v1909 = vmul.f32 %v1839, %v1886
      %v1910 = vmul.f32 %v1840, %v1891
      %v1911 = vmul.f32 %v1841, %v1896
      %v1912 = vmul.f32 %v1842, %v1901
      %1913 = vst [vmem:[%s244] sm:$0xf] 0
      %1914 = vst [vmem:[%s244 + $0x4] sm:$0xf] 0
      %1915 = vst [vmem:[%s244 + $0x8] sm:$0xf] 0
      %1916 = vst [vmem:[%s244 + $0xc] sm:$0xf] 0
      %1917 = vst [vmem:[%s244 + $0x10] sm:$0xf] 0
      %1918 = vst [vmem:[%s244 + $0x14] sm:$0xf] 0
      %1919 = vst [vmem:[%s244 + $0x18] sm:$0xf] 0
      %1920 = vst [vmem:[%s244 + $0x1c] sm:$0xf] 0
      %1921 = vst [vmem:[%s244 + $0x20] sm:$0xf] 0
      %1922 = vst [vmem:[%s244 + $0x24] sm:$0xf] 0
      %1923 = vst [vmem:[%s244 + $0x28] sm:$0xf] 0
      %1924 = vst [vmem:[%s244 + $0x2c] sm:$0xf] 0
      %1925 = vst [vmem:[%s244 + $0x30] sm:$0xf] 0
      %1926 = vst [vmem:[%s244 + $0x34] sm:$0xf] 0
      %v1927 = vpack.c.bf16 %v1903, %v1903
      %v1928 = vpack.c.bf16 %v1904, %v1904
      %v1929 = vpack.c.bf16 %v1905, %v1905
      %v1930 = vpack.c.bf16 %v1906, %v1906
      %v1931 = vpack.c.bf16 %v1907, %v1907
      %v1932 = vpack.c.bf16 %v1908, %v1908
      %v1933 = vpack.c.bf16 %v1909, %v1909
      %v1934 = vpack.c.bf16 %v1910, %v1910
      %v1935 = vpack.c.bf16 %v1911, %v1911
      %v1936 = vpack.c.bf16 %v1912, %v1912
      %1937 = vst [vmem:[%s244 + $0x8] sm:$0xf] %v1927
      %1938 = vst [vmem:[%s244 + $0xc] sm:$0xf] %v1928
      %1939 = vst [vmem:[%s244 + $0x10] sm:$0xf] %v1929
      %1940 = vst [vmem:[%s244 + $0x14] sm:$0xf] %v1930
      %1941 = vst [vmem:[%s244 + $0x18] sm:$0xf] %v1931
      %1942 = vst [vmem:[%s244 + $0x1c] sm:$0xf] %v1932
      %1943 = vst [vmem:[%s244 + $0x20] sm:$0xf] %v1933
      %1944 = vst [vmem:[%s244 + $0x24] sm:$0xf] %v1934
      %1945 = vst [vmem:[%s244 + $0x28] sm:$0xf] %v1935
      %1946 = vst [vmem:[%s244 + $0x2c] sm:$0xf] %v1936
      %p1947 = scmp.lt.s32.totalorder %s16, 1
      %s1948 = scalar_select %p1947, %s16, 1
      %s1949 = smul.addr %s1948, 14
      %s1950 = smul.addr %s1949, 4
      %s1951 = scalar_lea.vmem %s5, %s1950
      // Predicated region
      $region41: #{encode_block_forward.8} parent=39 // pred_check
        %p1952 = pneg %p149
      $region42: #{encode_block_forward.8} parent=39 // pred_check_branch
        %1954 = sbr.rel (%p1952) target = $region44
      $region43: #{encode_block_forward.8} parent=39 // pred_region
        _
      $region44: #{encode_block_forward.8} parent=39 // pred_fallthru
        _
    $region40: #{encode_block_forward.8} parent=5 // pred_fallthru
      _
    %p1955 = scmp.le.s32.totalorder 2, %s11
    // Predicated region
    $region45: #{encode_block_forward.8} parent=5 // pred_check
      %p1956 = pneg %p1955
    $region46: #{encode_block_forward.8} parent=5 // pred_check_branch
      %1958 = sbr.rel (%p1956) target = $region48
    $region47: #{encode_block_forward.8} parent=5 // pred_region
      %s1959 = ssub.s32 %s11, 2
      // Predicated region
      $region49: #{encode_block_forward.8} parent=47 // pred_check
        %p1960 = pneg %p155
      $region50: #{encode_block_forward.8} parent=47 // pred_check_branch
        %1962 = sbr.rel (%p1960) target = $region52
      $region51: #{encode_block_forward.8} parent=47 // pred_region
        %p1963 = scmp.lt.s32.totalorder %s17, 1
        %s1964 = scalar_select %p1963, %s17, 1
        %s1965 = smul.addr %s1964, 14
        %s1966 = smul.addr %s1965, 4
        %s1967 = scalar_lea.vmem %s5, %s1966
      $region52: #{encode_block_forward.8} parent=47 // pred_fallthru
        _
    $region48: #{encode_block_forward.8} parent=5 // pred_fallthru
      _
  $region6: #{encode_block_forward.8} parent=0 // loop_footer
    %s15 = sadd.s32 1, %s11
  $region7: #{encode_block_forward.8} parent=0 // loop_footer_branch
    %10 = sbr.rel target = $region3
  $region8: #{encode_block_forward.8} parent=0 // loop_exit
    _

</llo_original>
